<compile_context>
chip_gen: v7x
topology: tpu7x:2x2x1
jax: 0.10.0
libtpu: 0.0.40
codegen_flags: <defaults>
</compile_context>

<pallas_src>
import math

import jax
import jax.numpy as jnp
from jax.experimental import pallas as pl
from jax.experimental.pallas import tpu as pltpu


_VMEM_LIMIT_BYTES = 32 * 1024 * 1024   # explicit scoped-VMEM request (<= v7x 64 MiB)
_BLOCK_VMEM_BUDGET = 8 * 1024 * 1024   # per-block byte budget fed to the tile picker
_MAX_FOLDED_WEIGHT_BYTES = 4 * 1024 * 1024
_MIN_GRID_BLOCKS = 8                   # >= 4 grid steps per v7x TensorCore
_ROW_TILE_CAP = 2048


# ----------------------------------------------------------------------------
# Pallas kernels
# ----------------------------------------------------------------------------

def _conv_mm_stats_kernel(a_ref, b_ref, bias_ref, y_ref, s_ref, q_ref):
    """One row-block of Yf = Af @ Wbd + bias (bf16 x bf16 -> f32 accumulate)
    plus this block's partial sum / sum-of-squares for BatchNorm statistics.

    All operands are in the row-folded layout (kf original rows packed into
    the lane dimension), so the A load, the epilogue and the Y store are
    128-lane dense (unmasked vst).  Full K is resident in VMEM (no K grid
    axis); Wbd and bias map to the same block every step -> DMA'd once."""
    acc = jnp.dot(a_ref[...], b_ref[...], preferred_element_type=jnp.float32)
    y = acc + bias_ref[...]                      # (trf, Nf) f32, lane-dense
    y_ref[...] = y.astype(y_ref.dtype)
    s_ref[...] = jnp.sum(y, axis=0)[None, None, :]
    q_ref[...] = jnp.sum(y * y, axis=0)[None, None, :]


def _affine_relu_kernel(x_ref, scale_ref, shift_ref, o_ref):
    """Lane-dense y = relu(x * scale + shift); math in f32 (v5e has no bf16 VPU)."""
    y = x_ref[...].astype(jnp.float32) * scale_ref[...] + shift_ref[...]
    o_ref[...] = jnp.maximum(y, 0.0).astype(o_ref.dtype)


# ----------------------------------------------------------------------------
# Tiling helpers
# ----------------------------------------------------------------------------

def _pick_row_tile(rows, bytes_per_row, *, cap=_ROW_TILE_CAP,
                   vmem_budget=_BLOCK_VMEM_BUDGET, min_blocks=_MIN_GRID_BLOCKS):
    """Row-tile size for a 1-D 'parallel' grid.

    Prefers the largest multiple-of-8 divisor of `rows` that (a) keeps one
    block under `vmem_budget` bytes and (b) still leaves >= `min_blocks`
    grid steps (>= 4 per v7x TensorCore).  Falls back to the largest divisor
    under the budget, then to the smallest multiple-of-8 divisor, and only
    uses the full extent when `rows` has no multiple-of-8 divisor at all
    (full extent is always a legal block shape)."""
    cap = min(cap, max(8, vmem_budget // max(bytes_per_row, 1)))
    cap = min(cap, rows)
    cap -= cap % 8
    best = None
    for t in range(cap, 7, -8):
        if rows % t == 0:
            if best is None:
                best = t
            if rows // t >= min_blocks:
                return t
    if best is not None:
        return best
    t = 8
    while t <= rows:
        if rows % t == 0:
            return t
        t += 8
    return rows


def _fold_factor(cout, k, max_weight_bytes=_MAX_FOLDED_WEIGHT_BYTES):
    """Rows-into-lanes fold factor: kf*Cout = lcm(Cout, 128) -> 128-lane-dense
    stores.  Falls back to 1 (narrow, masked stores) if the block-diagonal
    weight would exceed the VMEM budget."""
    kf = 128 // math.gcd(cout, 128)
    if kf * k * kf * cout * 2 > max_weight_bytes:
        return 1
    return kf


# ----------------------------------------------------------------------------
# pallas_call wrappers
# ----------------------------------------------------------------------------

def pallas_conv_matmul_bn_stats(a_f, w_bd, bias_f, *, out_dtype=jnp.bfloat16,
                                row_cap=_ROW_TILE_CAP):
    """Fused Yf = Af @ Wbd + bias with per-block BatchNorm partial statistics.

    a_f:    (Rf, Kf)  bf16 row-folded im2col activations (Kf = kf*27*Cin)
    w_bd:   (Kf, Nf)  bf16 block-diagonal pre-folded conv weights (Nf = kf*Cout)
    bias_f: (1, Nf)   f32 kf-tiled bias
    Returns (y (Rf, Nf) out_dtype, sum (Nf,) f32, sumsq (Nf,) f32)."""
    Rf, Kf = a_f.shape
    Nf = w_bd.shape[1]
    trf = _pick_row_tile(Rf, bytes_per_row=2 * Kf + 2 * Nf + 4 * Nf, cap=row_cap)
    gi = Rf // trf

    # TODO(synk): a third A buffer (pl.Buffered(3) pipeline_mode) could hide
    # any exposed A DMA; left at the default depth to keep lowering robust.
    y, ps, pq = pl.pallas_call(
        _conv_mm_stats_kernel,
        out_shape=(jax.ShapeDtypeStruct((Rf, Nf), out_dtype),
                   jax.ShapeDtypeStruct((gi, 1, Nf), jnp.float32),
                   jax.ShapeDtypeStruct((gi, 1, Nf), jnp.float32)),
        grid_spec=pltpu.PrefetchScalarGridSpec(
            num_scalar_prefetch=0,
            grid=(gi,),
            in_specs=[pl.BlockSpec((trf, Kf), lambda i: (i, 0)),
                      pl.BlockSpec((Kf, Nf), lambda i: (0, 0)),
                      pl.BlockSpec((1, Nf), lambda i: (0, 0))],
            out_specs=(pl.BlockSpec((trf, Nf), lambda i: (i, 0)),
                       pl.BlockSpec((1, 1, Nf), lambda i: (i, 0, 0)),
                       pl.BlockSpec((1, 1, Nf), lambda i: (i, 0, 0)))),
        compiler_params=pltpu.CompilerParams(
            dimension_semantics=("parallel",),
            vmem_limit_bytes=_VMEM_LIMIT_BYTES),
    )(a_f, w_bd, bias_f)

    # Tiny (gi, Nf) partial reductions finished in plain JAX.
    return y, jnp.sum(ps, axis=0)[0], jnp.sum(pq, axis=0)[0]


def pallas_affine_relu(x_f, scale_f, shift_f, *, out_dtype, row_cap=_ROW_TILE_CAP):
    """y = relu(x * scale + shift) in the row-folded (Rf, kf*C) layout so both
    loads and stores are 128-lane dense."""
    Rf, Wd = x_f.shape
    in_b = jnp.dtype(x_f.dtype).itemsize * Wd
    out_b = jnp.dtype(out_dtype).itemsize * Wd
    tr = _pick_row_tile(Rf, bytes_per_row=in_b + out_b + 4 * Wd, cap=row_cap)

    return pl.pallas_call(
        _affine_relu_kernel,
        out_shape=jax.ShapeDtypeStruct((Rf, Wd), out_dtype),
        grid_spec=pltpu.PrefetchScalarGridSpec(
            num_scalar_prefetch=0,
            grid=(Rf // tr,),
            in_specs=[pl.BlockSpec((tr, Wd), lambda i: (i, 0)),
                      pl.BlockSpec((1, Wd), lambda i: (0, 0)),
                      pl.BlockSpec((1, Wd), lambda i: (0, 0))],
            out_specs=pl.BlockSpec((tr, Wd), lambda i: (i, 0))),
        compiler_params=pltpu.CompilerParams(
            dimension_semantics=("parallel",),
            vmem_limit_bytes=_VMEM_LIMIT_BYTES),
    )(x_f, scale_f, shift_f)


# ----------------------------------------------------------------------------
# Layer-level ops
# ----------------------------------------------------------------------------

def _im2col_3x3x3(x):
    # x: (N, D, H, W, Cin) bf16 -> (N*D*H*W, 27*Cin) bf16, zero 'same' padding.
    # TODO(synk): this still materializes the 27x patch tensor in HBM (bf16);
    # fully removing it needs an in-kernel halo-window conv (manual halo DMA of
    # flattened row blocks + boundary masks, or per-depth-plane shifted taps),
    # which is left out here to keep lowering robust for arbitrary shapes.
    n, d, h, w, c = x.shape
    xp = jnp.pad(x, ((0, 0), (1, 1), (1, 1), (1, 1), (0, 0)))
    pats = [xp[:, kd:kd + d, kh:kh + h, kw:kw + w, :]
            for kd in range(3) for kh in range(3) for kw in range(3)]
    return jnp.stack(pats, axis=-2).reshape(n * d * h * w, 27 * c)


def conv3x3_bn_relu(x, cp, bnp, *, out_dtype, eps=1e-5):
    """Conv3d(k=3, s=1, p=1, bias=True) + BatchNorm3d (training-mode batch
    statistics, biased variance) + ReLU."""
    n, d, h, w, _ = x.shape
    cout = cp["wmat"].shape[1]
    kf = cp["wbd"].shape[1] // cout          # static (shape-derived) fold factor

    a = _im2col_3x3x3(x)                     # (M, 27*Cin) bf16
    M, K = a.shape
    if M % kf != 0:                          # static shapes -> Python branch
        kf = 1
    if kf > 1:
        w_use, bias_use = cp["wbd"], cp["bias_f"]
    else:
        w_use, bias_use = cp["wmat"], cp["bias"].reshape(1, cout)
    a_f = jnp.reshape(a, (M // kf, kf * K))  # free row-major relabel

    y_f, s_f, q_f = pallas_conv_matmul_bn_stats(a_f, w_use, bias_use,
                                                out_dtype=jnp.bfloat16)

    # Per-channel statistics from the kf-folded partials.
    s = jnp.sum(s_f.reshape(kf, cout), axis=0)
    q = jnp.sum(q_f.reshape(kf, cout), axis=0)
    cnt = float(M)
    mean = s / cnt
    # TODO(synk): E[x^2]-E[x]^2 in f32 can lose precision vs. PyTorch's
    # effectively two-pass variance when |mean| >> std.
    var = jnp.maximum(q / cnt - mean * mean, 0.0)
    scale = bnp["g"] / jnp.sqrt(var + eps)
    shift = bnp["b"] - mean * scale

    sc = jnp.tile(scale, kf).reshape(1, kf * cout).astype(jnp.float32)
    sh = jnp.tile(shift, kf).reshape(1, kf * cout).astype(jnp.float32)
    out_f = pallas_affine_relu(y_f, sc, sh, out_dtype=out_dtype)
    return out_f.reshape(n, d, h, w, cout)


@jax.jit
def conv_block_3d_forward(x_ncdhw, params):
    """conv_block_3d.forward: (Conv3d 3x3x3 -> BN -> ReLU) x 2.

    Input/output in PyTorch NCDHW layout (f32); internal activations are
    NDHWC bf16 with f32 MXU accumulation and f32 BatchNorm statistics."""
    x = jnp.transpose(x_ncdhw, (0, 2, 3, 4, 1)).astype(jnp.bfloat16)
    h1 = conv3x3_bn_relu(x, params["conv1"], params["bn1"],
                         out_dtype=jnp.bfloat16)
    h2 = conv3x3_bn_relu(h1, params["conv2"], params["bn2"],
                         out_dtype=jnp.bfloat16)
    # bf16 Pallas store for the last layer; the f32 upcast fuses into the
    # NDHWC->NCDHW output transpose.
    return jnp.transpose(h2, (0, 4, 1, 2, 3)).astype(jnp.float32)


# ----------------------------------------------------------------------------
# Deterministic parameter construction (shapes per conv_block_3d.__init__)
# ----------------------------------------------------------------------------

def make_conv_block_3d_params(key, ch_in, ch_out, trilinear=False):
    ch_mid = ch_out if not trilinear else ch_in // 2
    k1, k2 = jax.random.split(key)

    def conv_p(kk, cin, cout):
        kw_, kb_ = jax.random.split(kk)
        bound = 1.0 / math.sqrt(cin * 27)        # PyTorch Conv3d default init
        w = jax.random.uniform(kw_, (cout, cin, 3, 3, 3), jnp.float32,
                               -bound, bound)
        b = jax.random.uniform(kb_, (cout,), jnp.float32, -bound, bound)
        # Fold the weight into the (27*Cin, Cout) matmul layout once, and also
        # pre-build the block-diagonal folded weight Wbd = I_kf (x) W so the
        # forward pass runs fully lane-dense with no per-call transposes.
        wmat = jnp.transpose(w, (2, 3, 4, 1, 0)).reshape(27 * cin, cout)
        kf = _fold_factor(cout, 27 * cin)
        wbd = jnp.kron(jnp.eye(kf, dtype=jnp.float32), wmat)
        return {"wmat": wmat.astype(jnp.bfloat16),
                "wbd": wbd.astype(jnp.bfloat16),
                "bias": b.astype(jnp.float32),
                "bias_f": jnp.tile(b, kf).reshape(1, kf * cout).astype(jnp.float32)}

    def bn_p(c):
        return {"g": jnp.ones((c,), jnp.float32),
                "b": jnp.zeros((c,), jnp.float32)}

    return {"conv1": conv_p(k1, ch_in, ch_mid), "bn1": bn_p(ch_mid),
            "conv2": conv_p(k2, ch_mid, ch_out), "bn2": bn_p(ch_out)}


if __name__ == "__main__":
    key = jax.random.PRNGKey(0)
    pkey, xkey = jax.random.split(key)

    # Small shapes consistent with the module: batch=2, ch_in=4, ch_out=16,
    # 16^3 volume, trilinear=False (so ch_mid == ch_out).
    n, ch_in, ch_out, s = 2, 4, 16, 16
    params = make_conv_block_3d_params(pkey, ch_in, ch_out, trilinear=False)
    x = jax.random.normal(xkey, (n, ch_in, s, s, s), jnp.float32)

    out = conv_block_3d_forward(x, params)
    out = jax.block_until_ready(out)

    assert out.shape == (n, ch_out, s, s, s), out.shape
    assert bool(jnp.all(jnp.isfinite(out)))
    print("KERNEL_OK")
</pallas_src>

<mosaic_0001>
module attributes {stable_mosaic.version = 11 : i64} {
  func.func @_conv_mm_stats_kernel(%arg0: i32, %arg1: memref<128x864xbf16, #tpu.memory_space<vmem>>, %arg2: memref<864x128xbf16, #tpu.memory_space<vmem>>, %arg3: memref<1x128xf32, #tpu.memory_space<vmem>>, %arg4: memref<128x128xbf16, #tpu.memory_space<vmem>>, %arg5: memref<1x1x128xf32, #tpu.memory_space<vmem>>, %arg6: memref<1x1x128xf32, #tpu.memory_space<vmem>>) attributes {dimension_semantics = [#tpu.dimension_semantics<parallel>], iteration_bounds = array<i64: 8>, scalar_prefetch = 0 : i64, scratch_operands = 0 : i64, tpu.core_type = #tpu.core_type<tc>, window_params = [{transform_indices = @transform_0, window_bounds = array<i64: 128, 864>}, {pipeline_mode = #tpu.pipeline_mode<synchronous>, transform_indices = @transform_1, window_bounds = array<i64: 864, 128>}, {pipeline_mode = #tpu.pipeline_mode<synchronous>, transform_indices = @transform_2, window_bounds = array<i64: 1, 128>}, {transform_indices = @transform_3, window_bounds = array<i64: 128, 128>}, {transform_indices = @transform_4, window_bounds = array<i64: 1, 1, 128>}, {transform_indices = @transform_5, window_bounds = array<i64: 1, 1, 128>}]} {
    %c0 = arith.constant 0 : index
    %c0_0 = arith.constant 0 : index
    %0 = vector.load %arg1[%c0, %c0_0] : memref<128x864xbf16, #tpu.memory_space<vmem>>, vector<128x864xbf16>
    %c0_1 = arith.constant 0 : index
    %c0_2 = arith.constant 0 : index
    %1 = vector.load %arg2[%c0_1, %c0_2] : memref<864x128xbf16, #tpu.memory_space<vmem>>, vector<864x128xbf16>
    %cst = arith.constant dense<0.000000e+00> : vector<128x128xf32>
    %2 = tpu.matmul %0, %1, %cst {dimension_numbers = #tpu.dot_dimension_numbers<[1], [0], [0], [1], [0, 0, 1, 1], [], []>} : vector<128x864xbf16>, vector<864x128xbf16>, vector<128x128xf32> -> vector<128x128xf32>
    %c0_3 = arith.constant 0 : index
    %c0_4 = arith.constant 0 : index
    %3 = vector.load %arg3[%c0_3, %c0_4] : memref<1x128xf32, #tpu.memory_space<vmem>>, vector<1x128xf32>
    %4 = vector.broadcast %3 : vector<1x128xf32> to vector<128x128xf32>
    %5 = arith.addf %2, %4 : vector<128x128xf32>
    %6 = arith.truncf %5 : vector<128x128xf32> to vector<128x128xbf16>
    %c0_5 = arith.constant 0 : index
    %c0_6 = arith.constant 0 : index
    %7 = vector.load %arg4[%c0_5, %c0_6] : memref<128x128xbf16, #tpu.memory_space<vmem>>, vector<128x128xbf16>
    tpu.vector_store %arg4[%c0_5, %c0_6], %6 {strides = array<i32>} : memref<128x128xbf16, #tpu.memory_space<vmem>>, vector<128x128xbf16>,
    %cst_7 = arith.constant dense<0.000000e+00> : vector<128xf32>
    %8 = vector.multi_reduction <add>, %5, %cst_7 [0] : vector<128x128xf32> to vector<128xf32>
    %9 = vector.shape_cast %8 : vector<128xf32> to vector<1x1x128xf32>
    %c0_8 = arith.constant 0 : index
    %c0_9 = arith.constant 0 : index
    %c0_10 = arith.constant 0 : index
    %10 = vector.load %arg5[%c0_8, %c0_9, %c0_10] : memref<1x1x128xf32, #tpu.memory_space<vmem>>, vector<1x1x128xf32>
    tpu.vector_store %arg5[%c0_8, %c0_9, %c0_10], %9 {strides = array<i32>} : memref<1x1x128xf32, #tpu.memory_space<vmem>>, vector<1x1x128xf32>,
    %11 = arith.mulf %5, %5 : vector<128x128xf32>
    %cst_11 = arith.constant dense<0.000000e+00> : vector<128xf32>
    %12 = vector.multi_reduction <add>, %11, %cst_11 [0] : vector<128x128xf32> to vector<128xf32>
    %13 = vector.shape_cast %12 : vector<128xf32> to vector<1x1x128xf32>
    %c0_12 = arith.constant 0 : index
    %c0_13 = arith.constant 0 : index
    %c0_14 = arith.constant 0 : index
    %14 = vector.load %arg6[%c0_12, %c0_13, %c0_14] : memref<1x1x128xf32, #tpu.memory_space<vmem>>, vector<1x1x128xf32>
    tpu.vector_store %arg6[%c0_12, %c0_13, %c0_14], %13 {strides = array<i32>} : memref<1x1x128xf32, #tpu.memory_space<vmem>>, vector<1x1x128xf32>,
    return
  }
  func.func @transform_0(%arg0: i32) -> (i32, i32) {
    %c0_i32 = arith.constant 0 : i32
    %c0_i32_0 = arith.constant 0 : i32
    return %arg0, %c0_i32 : i32, i32
  }
  func.func @transform_1(%arg0: i32) -> (i32, i32) {
    %c0_i32 = arith.constant 0 : i32
    %c0_i32_0 = arith.constant 0 : i32
    %c0_i32_1 = arith.constant 0 : i32
    return %c0_i32, %c0_i32_0 : i32, i32
  }
  func.func @transform_2(%arg0: i32) -> (i32, i32) {
    %c0_i32 = arith.constant 0 : i32
    %c0_i32_0 = arith.constant 0 : i32
    %c0_i32_1 = arith.constant 0 : i32
    return %c0_i32, %c0_i32_0 : i32, i32
  }
  func.func @transform_3(%arg0: i32) -> (i32, i32) {
    %c0_i32 = arith.constant 0 : i32
    %c0_i32_0 = arith.constant 0 : i32
    return %arg0, %c0_i32 : i32, i32
  }
  func.func @transform_4(%arg0: i32) -> (i32, i32, i32) {
    %c0_i32 = arith.constant 0 : i32
    %c0_i32_0 = arith.constant 0 : i32
    %c0_i32_1 = arith.constant 0 : i32
    return %arg0, %c0_i32, %c0_i32_0 : i32, i32, i32
  }
  func.func @transform_5(%arg0: i32) -> (i32, i32, i32) {
    %c0_i32 = arith.constant 0 : i32
    %c0_i32_0 = arith.constant 0 : i32
    %c0_i32_1 = arith.constant 0 : i32
    return %arg0, %c0_i32, %c0_i32_0 : i32, i32, i32
  }
}

module attributes {stable_mosaic.version = 11 : i64} {
  func.func @_affine_relu_kernel(%arg0: i32, %arg1: memref<128x128xbf16, #tpu.memory_space<vmem>>, %arg2: memref<1x128xf32, #tpu.memory_space<vmem>>, %arg3: memref<1x128xf32, #tpu.memory_space<vmem>>, %arg4: memref<128x128xbf16, #tpu.memory_space<vmem>>) attributes {dimension_semantics = [#tpu.dimension_semantics<parallel>], iteration_bounds = array<i64: 8>, scalar_prefetch = 0 : i64, scratch_operands = 0 : i64, tpu.core_type = #tpu.core_type<tc>, window_params = [{transform_indices = @transform_0, window_bounds = array<i64: 128, 128>}, {pipeline_mode = #tpu.pipeline_mode<synchronous>, transform_indices = @transform_1, window_bounds = array<i64: 1, 128>}, {pipeline_mode = #tpu.pipeline_mode<synchronous>, transform_indices = @transform_2, window_bounds = array<i64: 1, 128>}, {transform_indices = @transform_3, window_bounds = array<i64: 128, 128>}]} {
    %c0 = arith.constant 0 : index
    %c0_0 = arith.constant 0 : index
    %0 = vector.load %arg1[%c0, %c0_0] : memref<128x128xbf16, #tpu.memory_space<vmem>>, vector<128x128xbf16>
    %1 = arith.extf %0 : vector<128x128xbf16> to vector<128x128xf32>
    %c0_1 = arith.constant 0 : index
    %c0_2 = arith.constant 0 : index
    %2 = vector.load %arg2[%c0_1, %c0_2] : memref<1x128xf32, #tpu.memory_space<vmem>>, vector<1x128xf32>
    %3 = vector.broadcast %2 : vector<1x128xf32> to vector<128x128xf32>
    %4 = arith.mulf %1, %3 : vector<128x128xf32>
    %c0_3 = arith.constant 0 : index
    %c0_4 = arith.constant 0 : index
    %5 = vector.load %arg3[%c0_3, %c0_4] : memref<1x128xf32, #tpu.memory_space<vmem>>, vector<1x128xf32>
    %6 = vector.broadcast %5 : vector<1x128xf32> to vector<128x128xf32>
    %7 = arith.addf %4, %6 : vector<128x128xf32>
    %cst = arith.constant 0.000000e+00 : f32
    %8 = vector.broadcast %cst : f32 to vector<128x128xf32>
    %9 = arith.maximumf %7, %8 : vector<128x128xf32>
    %10 = arith.truncf %9 : vector<128x128xf32> to vector<128x128xbf16>
    %c0_5 = arith.constant 0 : index
    %c0_6 = arith.constant 0 : index
    %11 = vector.load %arg4[%c0_5, %c0_6] : memref<128x128xbf16, #tpu.memory_space<vmem>>, vector<128x128xbf16>
    tpu.vector_store %arg4[%c0_5, %c0_6], %10 {strides = array<i32>} : memref<128x128xbf16, #tpu.memory_space<vmem>>, vector<128x128xbf16>,
    return
  }
  func.func @transform_0(%arg0: i32) -> (i32, i32) {
    %c0_i32 = arith.constant 0 : i32
    %c0_i32_0 = arith.constant 0 : i32
    return %arg0, %c0_i32 : i32, i32
  }
  func.func @transform_1(%arg0: i32) -> (i32, i32) {
    %c0_i32 = arith.constant 0 : i32
    %c0_i32_0 = arith.constant 0 : i32
    %c0_i32_1 = arith.constant 0 : i32
    return %c0_i32, %c0_i32_0 : i32, i32
  }
  func.func @transform_2(%arg0: i32) -> (i32, i32) {
    %c0_i32 = arith.constant 0 : i32
    %c0_i32_0 = arith.constant 0 : i32
    %c0_i32_1 = arith.constant 0 : i32
    return %c0_i32, %c0_i32_0 : i32, i32
  }
  func.func @transform_3(%arg0: i32) -> (i32, i32) {
    %c0_i32 = arith.constant 0 : i32
    %c0_i32_0 = arith.constant 0 : i32
    return %arg0, %c0_i32 : i32, i32
  }
}

module attributes {stable_mosaic.version = 11 : i64} {
  func.func @_conv_mm_stats_kernel(%arg0: i32, %arg1: memref<128x3456xbf16, #tpu.memory_space<vmem>>, %arg2: memref<3456x128xbf16, #tpu.memory_space<vmem>>, %arg3: memref<1x128xf32, #tpu.memory_space<vmem>>, %arg4: memref<128x128xbf16, #tpu.memory_space<vmem>>, %arg5: memref<1x1x128xf32, #tpu.memory_space<vmem>>, %arg6: memref<1x1x128xf32, #tpu.memory_space<vmem>>) attributes {dimension_semantics = [#tpu.dimension_semantics<parallel>], iteration_bounds = array<i64: 8>, scalar_prefetch = 0 : i64, scratch_operands = 0 : i64, tpu.core_type = #tpu.core_type<tc>, window_params = [{transform_indices = @transform_0, window_bounds = array<i64: 128, 3456>}, {pipeline_mode = #tpu.pipeline_mode<synchronous>, transform_indices = @transform_1, window_bounds = array<i64: 3456, 128>}, {pipeline_mode = #tpu.pipeline_mode<synchronous>, transform_indices = @transform_2, window_bounds = array<i64: 1, 128>}, {transform_indices = @transform_3, window_bounds = array<i64: 128, 128>}, {transform_indices = @transform_4, window_bounds = array<i64: 1, 1, 128>}, {transform_indices = @transform_5, window_bounds = array<i64: 1, 1, 128>}]} {
    %c0 = arith.constant 0 : index
    %c0_0 = arith.constant 0 : index
    %0 = vector.load %arg1[%c0, %c0_0] : memref<128x3456xbf16, #tpu.memory_space<vmem>>, vector<128x3456xbf16>
    %c0_1 = arith.constant 0 : index
    %c0_2 = arith.constant 0 : index
    %1 = vector.load %arg2[%c0_1, %c0_2] : memref<3456x128xbf16, #tpu.memory_space<vmem>>, vector<3456x128xbf16>
    %cst = arith.constant dense<0.000000e+00> : vector<128x128xf32>
    %2 = tpu.matmul %0, %1, %cst {dimension_numbers = #tpu.dot_dimension_numbers<[1], [0], [0], [1], [0, 0, 1, 1], [], []>} : vector<128x3456xbf16>, vector<3456x128xbf16>, vector<128x128xf32> -> vector<128x128xf32>
    %c0_3 = arith.constant 0 : index
    %c0_4 = arith.constant 0 : index
    %3 = vector.load %arg3[%c0_3, %c0_4] : memref<1x128xf32, #tpu.memory_space<vmem>>, vector<1x128xf32>
    %4 = vector.broadcast %3 : vector<1x128xf32> to vector<128x128xf32>
    %5 = arith.addf %2, %4 : vector<128x128xf32>
    %6 = arith.truncf %5 : vector<128x128xf32> to vector<128x128xbf16>
    %c0_5 = arith.constant 0 : index
    %c0_6 = arith.constant 0 : index
    %7 = vector.load %arg4[%c0_5, %c0_6] : memref<128x128xbf16, #tpu.memory_space<vmem>>, vector<128x128xbf16>
    tpu.vector_store %arg4[%c0_5, %c0_6], %6 {strides = array<i32>} : memref<128x128xbf16, #tpu.memory_space<vmem>>, vector<128x128xbf16>,
    %cst_7 = arith.constant dense<0.000000e+00> : vector<128xf32>
    %8 = vector.multi_reduction <add>, %5, %cst_7 [0] : vector<128x128xf32> to vector<128xf32>
    %9 = vector.shape_cast %8 : vector<128xf32> to vector<1x1x128xf32>
    %c0_8 = arith.constant 0 : index
    %c0_9 = arith.constant 0 : index
    %c0_10 = arith.constant 0 : index
    %10 = vector.load %arg5[%c0_8, %c0_9, %c0_10] : memref<1x1x128xf32, #tpu.memory_space<vmem>>, vector<1x1x128xf32>
    tpu.vector_store %arg5[%c0_8, %c0_9, %c0_10], %9 {strides = array<i32>} : memref<1x1x128xf32, #tpu.memory_space<vmem>>, vector<1x1x128xf32>,
    %11 = arith.mulf %5, %5 : vector<128x128xf32>
    %cst_11 = arith.constant dense<0.000000e+00> : vector<128xf32>
    %12 = vector.multi_reduction <add>, %11, %cst_11 [0] : vector<128x128xf32> to vector<128xf32>
    %13 = vector.shape_cast %12 : vector<128xf32> to vector<1x1x128xf32>
    %c0_12 = arith.constant 0 : index
    %c0_13 = arith.constant 0 : index
    %c0_14 = arith.constant 0 : index
    %14 = vector.load %arg6[%c0_12, %c0_13, %c0_14] : memref<1x1x128xf32, #tpu.memory_space<vmem>>, vector<1x1x128xf32>
    tpu.vector_store %arg6[%c0_12, %c0_13, %c0_14], %13 {strides = array<i32>} : memref<1x1x128xf32, #tpu.memory_space<vmem>>, vector<1x1x128xf32>,
    return
  }
  func.func @transform_0(%arg0: i32) -> (i32, i32) {
    %c0_i32 = arith.constant 0 : i32
    %c0_i32_0 = arith.constant 0 : i32
    return %arg0, %c0_i32 : i32, i32
  }
  func.func @transform_1(%arg0: i32) -> (i32, i32) {
    %c0_i32 = arith.constant 0 : i32
    %c0_i32_0 = arith.constant 0 : i32
    %c0_i32_1 = arith.constant 0 : i32
    return %c0_i32, %c0_i32_0 : i32, i32
  }
  func.func @transform_2(%arg0: i32) -> (i32, i32) {
    %c0_i32 = arith.constant 0 : i32
    %c0_i32_0 = arith.constant 0 : i32
    %c0_i32_1 = arith.constant 0 : i32
    return %c0_i32, %c0_i32_0 : i32, i32
  }
  func.func @transform_3(%arg0: i32) -> (i32, i32) {
    %c0_i32 = arith.constant 0 : i32
    %c0_i32_0 = arith.constant 0 : i32
    return %arg0, %c0_i32 : i32, i32
  }
  func.func @transform_4(%arg0: i32) -> (i32, i32, i32) {
    %c0_i32 = arith.constant 0 : i32
    %c0_i32_0 = arith.constant 0 : i32
    %c0_i32_1 = arith.constant 0 : i32
    return %arg0, %c0_i32, %c0_i32_0 : i32, i32, i32
  }
  func.func @transform_5(%arg0: i32) -> (i32, i32, i32) {
    %c0_i32 = arith.constant 0 : i32
    %c0_i32_0 = arith.constant 0 : i32
    %c0_i32_1 = arith.constant 0 : i32
    return %arg0, %c0_i32, %c0_i32_0 : i32, i32, i32
  }
}

</mosaic_0001>

<llo_original>
// kernel: squeeze.4
$region0: #{squeeze.4}
  %s0 = inlined_call_operand.vmem [shape: f32[128], index: 0, kind: input, shape index: {}]
  %s1 = inlined_call_operand.vmem [shape: f32[8,16], index: 1, kind: output, shape index: {}]
  $region1: #{squeeze.4} parent=0
    #allocation0 [shape = 'u8[4096]{0}', space=vmem, size = 0x1000, scoped, tag = 'scoped mem for input reshape']
    %s3 = sshllo.u32 0, 1
    %v4 = vld [vmem:[%s0] sm:%s3]
    %5 = vst [vmem:[#allocation0] sm:%s3] %v4
    %v6 = vld [vmem:[#allocation0] sm:$0x1]
    %vm7 = vcmask 130048
    %8 = vst.msk [vmem:[%s1] sm:$0x1] %vm7, %v6
    %v9 = vld [vmem:[#allocation0] sm:$0x1]
    %10 = vrot.lane.b32.xlu0 %v9, 112
    %v11 = vpop.permute.xlu0 %10
    %vm12 = vcmask 130048
    %s13 = scalar_lea.vmem %s1, 1
    %14 = vst.msk [vmem:[%s13] sm:$0x1] %vm12, %v11
    %v15 = vld [vmem:[#allocation0] sm:$0x1]
    %16 = vrot.lane.b32.xlu0 %v15, 96
    %v17 = vpop.permute.xlu0 %16
    %vm18 = vcmask 130048
    %s19 = scalar_lea.vmem %s1, 2
    %20 = vst.msk [vmem:[%s19] sm:$0x1] %vm18, %v17
    %v21 = vld [vmem:[#allocation0] sm:$0x1]
    %22 = vrot.lane.b32.xlu0 %v21, 80
    %v23 = vpop.permute.xlu0 %22
    %vm24 = vcmask 130048
    %s25 = scalar_lea.vmem %s1, 3
    %26 = vst.msk [vmem:[%s25] sm:$0x1] %vm24, %v23
    %v27 = vld [vmem:[#allocation0] sm:$0x1]
    %28 = vrot.lane.b32.xlu0 %v27, 64
    %v29 = vpop.permute.xlu0 %28
    %vm30 = vcmask 130048
    %s31 = scalar_lea.vmem %s1, 4
    %32 = vst.msk [vmem:[%s31] sm:$0x1] %vm30, %v29
    %v33 = vld [vmem:[#allocation0] sm:$0x1]
    %34 = vrot.lane.b32.xlu0 %v33, 48
    %v35 = vpop.permute.xlu0 %34
    %vm36 = vcmask 130048
    %s37 = scalar_lea.vmem %s1, 5
    %38 = vst.msk [vmem:[%s37] sm:$0x1] %vm36, %v35
    %v39 = vld [vmem:[#allocation0] sm:$0x1]
    %40 = vrot.lane.b32.xlu0 %v39, 32
    %v41 = vpop.permute.xlu0 %40
    %vm42 = vcmask 130048
    %s43 = scalar_lea.vmem %s1, 6
    %44 = vst.msk [vmem:[%s43] sm:$0x1] %vm42, %v41
    %v45 = vld [vmem:[#allocation0] sm:$0x1]
    %46 = vrot.lane.b32.xlu0 %v45, 16
    %v47 = vpop.permute.xlu0 %46
    %vm48 = vcmask 130048
    %s49 = scalar_lea.vmem %s1, 7
    %50 = vst.msk [vmem:[%s49] sm:$0x1] %vm48, %v47

// kernel: tile.28
$region0: #{tile.28}
  #allocation0 [shape = 's32[1]{0}', space=sflag, size = 0x4, scoped, tag = 'scoped memory for tile.28']
  %s0 = inlined_call_operand.vmem [shape: f32[16], index: 0, kind: input, shape index: {}]
  %s1 = inlined_call_operand.vmem [shape: f32[8,16], index: 1, kind: output, shape index: {}]
  // Predicated region
  $region2: #{tile.28} parent=0 // pred_check
    _
  $region3: #{tile.28} parent=0 // pred_check_branch
    %3 = sbr.rel (0) target = $region5
  $region4: #{tile.28} parent=0 // pred_region
    _
  $region5: #{tile.28} parent=0 // pred_fallthru
    _
  %v4 = vld [vmem:[%s0] ss:$0 sm:$0xff]
  %5 = vst [vmem:[%s1] sm:$0xff] %v4

// kernel: tile.29
$region0: #{tile.29}
  %s0 = inlined_call_operand.vmem [shape: f32[8,16], index: 0, kind: input, shape index: {}]
  %s1 = inlined_call_operand.vmem [shape: f32[1,128], index: 1, kind: output, shape index: {}]
  $region1: #{tile.29} parent=0
    #allocation0 [shape = 'u8[4096]{0}', space=vmem, size = 0x1000, scoped, tag = 'scoped mem for output reshape']
    %v2 = vld [vmem:[%s0] sm:$0x1]
    %vm3 = vcmask 130048
    %4 = vst.msk [vmem:[#allocation0] sm:$0x1] %vm3, %v2
    %s5 = scalar_lea.vmem %s0, 7
    %v6 = vld [vmem:[%s5] sm:$0x1]
    %7 = vrot.lane.b32.xlu0 %v6, 112
    %v8 = vpop.permute.xlu0 %7
    %vm9 = vcmask 1048448
    %10 = vst.msk [vmem:[#allocation0] sm:$0x1] %vm9, %v8
    %s11 = scalar_lea.vmem %s0, 6
    %v12 = vld [vmem:[%s11] sm:$0x1]
    %13 = vrot.lane.b32.xlu0 %v12, 96
    %v14 = vpop.permute.xlu0 %13
    %vm15 = vcmask 917248
    %16 = vst.msk [vmem:[#allocation0] sm:$0x1] %vm15, %v14
    %s17 = scalar_lea.vmem %s0, 5
    %v18 = vld [vmem:[%s17] sm:$0x1]
    %19 = vrot.lane.b32.xlu0 %v18, 80
    %v20 = vpop.permute.xlu0 %19
    %vm21 = vcmask 786048
    %22 = vst.msk [vmem:[#allocation0] sm:$0x1] %vm21, %v20
    %s23 = scalar_lea.vmem %s0, 4
    %v24 = vld [vmem:[%s23] sm:$0x1]
    %25 = vrot.lane.b32.xlu0 %v24, 64
    %v26 = vpop.permute.xlu0 %25
    %vm27 = vcmask 654848
    %28 = vst.msk [vmem:[#allocation0] sm:$0x1] %vm27, %v26
    %s29 = scalar_lea.vmem %s0, 3
    %v30 = vld [vmem:[%s29] sm:$0x1]
    %31 = vrot.lane.b32.xlu0 %v30, 48
    %v32 = vpop.permute.xlu0 %31
    %vm33 = vcmask 523648
    %34 = vst.msk [vmem:[#allocation0] sm:$0x1] %vm33, %v32
    %s35 = scalar_lea.vmem %s0, 2
    %v36 = vld [vmem:[%s35] sm:$0x1]
    %37 = vrot.lane.b32.xlu0 %v36, 32
    %v38 = vpop.permute.xlu0 %37
    %vm39 = vcmask 392448
    %40 = vst.msk [vmem:[#allocation0] sm:$0x1] %vm39, %v38
    %s41 = scalar_lea.vmem %s0, 1
    %v42 = vld [vmem:[%s41] sm:$0x1]
    %43 = vrot.lane.b32.xlu0 %v42, 16
    %v44 = vpop.permute.xlu0 %43
    %vm45 = vcmask 261248
    %46 = vst.msk [vmem:[#allocation0] sm:$0x1] %vm45, %v44
    %s48 = sshllo.u32 0, 1
    %v50 = vld [vmem:[#allocation0] sm:%s48]
    %s51 = sshllo.u32 0, 1
    %52 = vst [vmem:[%s1] sm:%s51] %v50

// kernel: conv_block_3d_forward.5
$region0: #{conv_block_3d_forward.5}
  #allocation0 [shape = 'u32[]', space=smem, size = 0x4, offset = 0x4, fixed_abs, tag = 'smem constant byte address 0x4 - core index']
  #allocation1 [shape = 'u32[144,128]{1,0:T(1,128)}', space=vmem, size = 0x12000, scoped, tag = 'internal scratch']
  %s0 = inlined_call_operand.vmem [shape: bf16[1024,128], index: 0, kind: input, shape index: {}]
  %s1 = inlined_call_operand.vmem [shape: f32[1,128], index: 1, kind: input, shape index: {}]
  %s2 = inlined_call_operand.vmem [shape: f32[1,128], index: 2, kind: input, shape index: {}]
  %s3 = inlined_call_operand.vmem [shape: bf16[1024,128], index: 3, kind: output, shape index: {}]
  %s4 = sld [smem:[#allocation0]]
  $region45: #{conv_block_3d_forward.5} parent=0
    _
  %s6 = ssub.s32 1, %s4
  %s7 = scalar_select 0, %s6, %s4
  loop: start=0, step=1, limit=10
  $region2: #{conv_block_3d_forward.5} parent=0 // loop_pre_header
    _
  $region3: #{conv_block_3d_forward.5} parent=0 // loop_header
    %s9 = sphi 0, %s13
    %p10 = scmp.ge.s32.totalorder %s9, 10
    %s19 = sphi 0, %s21
    %s22 = sphi 0, %s19
    %s23 = sphi 0, %s22
    %s39 = sphi 0, %s23
    %s43 = sphi 0, %s43
    %s45 = sphi 0, %s43
    %s46 = sphi 0, %s45
    %s60 = sphi 0, %s46
    %s64 = sphi 0, %s64
    %s66 = sphi 0, %s64
    %s67 = sphi 0, %s66
    %s81 = sphi 0, %s67
    %s87 = sphi 0, %s89
    %s90 = sphi 0, %s87
    %s91 = sphi 0, %s90
    %s107 = sphi 0, %s91
  $region4: #{conv_block_3d_forward.5} parent=0 // loop_header_branch
    %12 = sbr.rel (%p10) target = $region8
  $region5: #{conv_block_3d_forward.5} parent=0 // loop_body
    %s14 = ssub.s32 %s9, 1
    %s15 = ssub.s32 %s9, 2
    %s16 = sadd.s32 %s9, 1
    %s17 = ssub.s32 %s9, %s16
    %p18 = scmp.eq.s32.totalorder %s17, 0
    %s20 = sadd.s32 %s19, 1
    %s21 = scalar_select %p18, %s19, %s20
    %p24 = pneg %p18
    %p25 = scmp.eq.s32.totalorder %s9, 7
    %p26 = por %p24, %p25
    %p27 = scmp.ne.s32.totalorder %s19, %s22
    %p28 = scmp.eq.s32.totalorder %s9, 0
    %p29 = por %p27, %p28
    %p30 = scmp.ne.s32.totalorder %s19, %s22
    %p31 = scmp.eq.s32.totalorder %s14, 7
    %p32 = por %p30, %p31
    %p33 = scmp.ne.s32.totalorder %s22, %s23
    %p34 = scmp.eq.s32.totalorder %s14, 0
    %p35 = por %p33, %p34
    %p36 = scmp.ne.s32.totalorder %s22, %s23
    %p37 = scmp.eq.s32.totalorder %s15, 7
    %p38 = por %p36, %p37
    %p40 = scmp.ne.s32.totalorder %s23, %s39
    %p41 = scmp.eq.s32.totalorder %s15, 0
    %p42 = por %p40, %p41
    %s44 = sadd.s32 %s43, 1
    %p47 = scmp.eq.s32.totalorder %s9, 7
    %p48 = scmp.ne.s32.totalorder %s43, %s45
    %p49 = scmp.eq.s32.totalorder %s9, 0
    %p50 = por %p48, %p49
    %p51 = scmp.ne.s32.totalorder %s43, %s45
    %p52 = scmp.eq.s32.totalorder %s14, 7
    %p53 = por %p51, %p52
    %p54 = scmp.ne.s32.totalorder %s45, %s46
    %p55 = scmp.eq.s32.totalorder %s14, 0
    %p56 = por %p54, %p55
    %p57 = scmp.ne.s32.totalorder %s45, %s46
    %p58 = scmp.eq.s32.totalorder %s15, 7
    %p59 = por %p57, %p58
    %p61 = scmp.ne.s32.totalorder %s46, %s60
    %p62 = scmp.eq.s32.totalorder %s15, 0
    %p63 = por %p61, %p62
    %s65 = sadd.s32 %s64, 1
    %p68 = scmp.eq.s32.totalorder %s9, 7
    %p69 = scmp.ne.s32.totalorder %s64, %s66
    %p70 = scmp.eq.s32.totalorder %s9, 0
    %p71 = por %p69, %p70
    %p72 = scmp.ne.s32.totalorder %s64, %s66
    %p73 = scmp.eq.s32.totalorder %s14, 7
    %p74 = por %p72, %p73
    %p75 = scmp.ne.s32.totalorder %s66, %s67
    %p76 = scmp.eq.s32.totalorder %s14, 0
    %p77 = por %p75, %p76
    %p78 = scmp.ne.s32.totalorder %s66, %s67
    %p79 = scmp.eq.s32.totalorder %s15, 7
    %p80 = por %p78, %p79
    %p82 = scmp.ne.s32.totalorder %s67, %s81
    %p83 = scmp.eq.s32.totalorder %s15, 0
    %p84 = por %p82, %p83
    %s85 = ssub.s32 %s9, %s16
    %p86 = scmp.eq.s32.totalorder %s85, 0
    %s88 = sadd.s32 %s87, 1
    %s89 = scalar_select %p86, %s87, %s88
    %p92 = pneg %p86
    %p93 = scmp.eq.s32.totalorder %s9, 7
    %p94 = por %p92, %p93
    %p95 = scmp.ne.s32.totalorder %s87, %s90
    %p96 = scmp.eq.s32.totalorder %s9, 0
    %p97 = por %p95, %p96
    %p98 = scmp.ne.s32.totalorder %s87, %s90
    %p99 = scmp.eq.s32.totalorder %s14, 7
    %p100 = por %p98, %p99
    %p101 = scmp.ne.s32.totalorder %s90, %s91
    %p102 = scmp.eq.s32.totalorder %s14, 0
    %p103 = por %p101, %p102
    %p104 = scmp.ne.s32.totalorder %s90, %s91
    %p105 = scmp.eq.s32.totalorder %s15, 7
    %p106 = por %p104, %p105
    %p108 = scmp.ne.s32.totalorder %s91, %s107
    %p109 = scmp.eq.s32.totalorder %s15, 0
    %p110 = por %p108, %p109
    %p111 = scmp.le.s32.totalorder 1, %s9
    %p112 = scmp.lt.s32.totalorder %s9, 9
    %p113 = pnand %p111, %p112
    %p114 = pneg %p113
    // Predicated region
    $region9: #{conv_block_3d_forward.5} parent=5 // pred_check
      _
    $region10: #{conv_block_3d_forward.5} parent=5 // pred_check_branch
      %116 = sbr.rel (%p113) target = $region12
    $region11: #{conv_block_3d_forward.5} parent=5 // pred_region
      %s117 = ssub.s32 %s9, 1
      // Predicated region
      $region13: #{conv_block_3d_forward.5} parent=11 // pred_check
        %p118 = pneg %p56
      $region14: #{conv_block_3d_forward.5} parent=11 // pred_check_branch
        %120 = sbr.rel (%p118) target = $region16
      $region15: #{conv_block_3d_forward.5} parent=11 // pred_region
        _
      $region16: #{conv_block_3d_forward.5} parent=11 // pred_fallthru
        _
      // Predicated region
      $region17: #{conv_block_3d_forward.5} parent=11 // pred_check
        %p121 = pneg %p77
      $region18: #{conv_block_3d_forward.5} parent=11 // pred_check_branch
        %123 = sbr.rel (%p121) target = $region20
      $region19: #{conv_block_3d_forward.5} parent=11 // pred_region
        _
      $region20: #{conv_block_3d_forward.5} parent=11 // pred_fallthru
        _
    $region12: #{conv_block_3d_forward.5} parent=5 // pred_fallthru
      _
    %p124 = scmp.lt.s32.totalorder %s9, 8
    // Predicated region
    $region21: #{conv_block_3d_forward.5} parent=5 // pred_check
      %p125 = pneg %p124
    $region22: #{conv_block_3d_forward.5} parent=5 // pred_check_branch
      %127 = sbr.rel (%p125) target = $region24
    $region23: #{conv_block_3d_forward.5} parent=5 // pred_region
      // Predicated region
      $region25: #{conv_block_3d_forward.5} parent=23 // pred_check
        %p128 = pneg %p29
      $region26: #{conv_block_3d_forward.5} parent=23 // pred_check_branch
        %130 = sbr.rel (%p128) target = $region28
      $region27: #{conv_block_3d_forward.5} parent=23 // pred_region
        %s131 = smul.u32 16, %s9
        %p132 = scmp.lt.s32.totalorder %s131, 127
        %s133 = scalar_select %p132, %s131, 127
        %s134 = smul.addr %s133, 4
        %s135 = scalar_lea.vmem %s0, %s134
        %s136 = smul.u32 16, %s9
      $region28: #{conv_block_3d_forward.5} parent=23 // pred_fallthru
        _
    $region24: #{conv_block_3d_forward.5} parent=5 // pred_fallthru
      _
    %p137 = scmp.le.s32.totalorder 1, %s9
    %p138 = scmp.lt.s32.totalorder %s9, 9
    %p139 = pnand %p137, %p138
    %p140 = pneg %p139
    // Predicated region
    $region29: #{conv_block_3d_forward.5} parent=5 // pred_check
      _
    $region30: #{conv_block_3d_forward.5} parent=5 // pred_check_branch
      %142 = sbr.rel (%p139) target = $region32
    $region31: #{conv_block_3d_forward.5} parent=5 // pred_region
      %s143 = ssub.s32 %s9, 1
      %s144 = smul.u32 16, %s14
      %p145 = scmp.lt.s32.totalorder %s144, 127
      %s146 = scalar_select %p145, %s144, 127
      %s147 = smul.addr %s146, 4
      %s148 = scalar_lea.vmem %s0, %s147
      %p149 = pneg %p35
      %p150 = pneg %p32
      %p151 = pneg %p56
      %p152 = pneg %p53
      %p153 = pneg %p77
      %p154 = pneg %p74
      %p155 = pneg %p103
      %p156 = pneg %p100
      %s157 = smul.u32 16, %s14
      %p158 = scmp.lt.s32.totalorder %s157, 127
      %s159 = scalar_select %p158, %s157, 127
      %s160 = smul.addr %s159, 4
      %s161 = scalar_lea.vmem %s3, %s160
      %s162 = smul.u32 16, %s14
      %p163 = scmp.lt.s32.totalorder %s162, 127
      %s164 = scalar_select %p163, %s162, 127
      %s165 = smul.addr %s164, 4
      %s166 = scalar_lea.vmem %s0, %s165
      %s167 = smul.u32 16, %s14
      %s168 = smul.u32 16, %s14
      %p169 = scmp.lt.s32.totalorder %s168, 127
      %s170 = scalar_select %p169, %s168, 127
      %s171 = smul.addr %s170, 4
      %s172 = scalar_lea.vmem %s3, %s171
      %s173 = smul.u32 16, %s14
      %v174 = vld [vmem:[%s166] sm:$0xf]
      %v175 = vld [vmem:[%s166 + $0x4] sm:$0xf]
      %v176 = vld [vmem:[%s166 + $0x8] sm:$0xf]
      %v177 = vld [vmem:[%s166 + $0xc] sm:$0xf]
      %v178 = vld [vmem:[%s166 + $0x10] sm:$0xf]
      %v179 = vld [vmem:[%s166 + $0x14] sm:$0xf]
      %v180 = vld [vmem:[%s166 + $0x18] sm:$0xf]
      %v181 = vld [vmem:[%s166 + $0x1c] sm:$0xf]
      %v182 = vld [vmem:[%s166 + $0x20] sm:$0xf]
      %v183 = vld [vmem:[%s166 + $0x24] sm:$0xf]
      %v184 = vld [vmem:[%s166 + $0x28] sm:$0xf]
      %v185 = vld [vmem:[%s166 + $0x2c] sm:$0xf]
      %v186 = vld [vmem:[%s166 + $0x30] sm:$0xf]
      %v187 = vld [vmem:[%s166 + $0x34] sm:$0xf]
      %v188 = vld [vmem:[%s166 + $0x38] sm:$0xf]
      %v189 = vld [vmem:[%s166 + $0x3c] sm:$0xf]
      %v190 = vunpack.c.l.bf16 %v174
      %v191 = vunpack.c.l.bf16 %v175
      %v192 = vunpack.c.l.bf16 %v176
      %v193 = vunpack.c.l.bf16 %v177
      %v194 = vunpack.c.l.bf16 %v178
      %v195 = vunpack.c.l.bf16 %v179
      %v196 = vunpack.c.l.bf16 %v180
      %v197 = vunpack.c.l.bf16 %v181
      %v198 = vunpack.c.l.bf16 %v182
      %v199 = vunpack.c.l.bf16 %v183
      %v200 = vunpack.c.l.bf16 %v184
      %v201 = vunpack.c.l.bf16 %v185
      %v202 = vunpack.c.l.bf16 %v186
      %v203 = vunpack.c.l.bf16 %v187
      %v204 = vunpack.c.l.bf16 %v188
      %v205 = vunpack.c.l.bf16 %v189
      %v206 = vld [vmem:[%s1] sm:$0x1]
      %v208 = vlaneseq
      %v209 = vshrl.u32 %v208, 7
      %v210 = vsub.s32 0, %v209
      %v211 = vrot.slane %v206, %v210
      %v213 = vmul.f32 %v190, %v211
      %v214 = vmul.f32 %v191, %v211
      %v215 = vmul.f32 %v192, %v211
      %v216 = vmul.f32 %v193, %v211
      %v217 = vmul.f32 %v194, %v211
      %v218 = vmul.f32 %v195, %v211
      %v219 = vmul.f32 %v196, %v211
      %v220 = vmul.f32 %v197, %v211
      %v221 = vmul.f32 %v198, %v211
      %v222 = vmul.f32 %v199, %v211
      %v223 = vmul.f32 %v200, %v211
      %v224 = vmul.f32 %v201, %v211
      %v225 = vmul.f32 %v202, %v211
      %v226 = vmul.f32 %v203, %v211
      %v227 = vmul.f32 %v204, %v211
      %v228 = vmul.f32 %v205, %v211
      %v229 = vld [vmem:[%s2] sm:$0x1]
      %v231 = vlaneseq
      %v232 = vshrl.u32 %v231, 7
      %v233 = vsub.s32 0, %v232
      %v234 = vrot.slane %v229, %v233
      %v236 = vadd.f32 %v213, %v234
      %v237 = vadd.f32 %v214, %v234
      %v238 = vadd.f32 %v215, %v234
      %v239 = vadd.f32 %v216, %v234
      %v240 = vadd.f32 %v217, %v234
      %v241 = vadd.f32 %v218, %v234
      %v242 = vadd.f32 %v219, %v234
      %v243 = vadd.f32 %v220, %v234
      %v244 = vadd.f32 %v221, %v234
      %v245 = vadd.f32 %v222, %v234
      %v246 = vadd.f32 %v223, %v234
      %v247 = vadd.f32 %v224, %v234
      %v248 = vadd.f32 %v225, %v234
      %v249 = vadd.f32 %v226, %v234
      %v250 = vadd.f32 %v227, %v234
      %v251 = vadd.f32 %v228, %v234
      %v252 = vmax.f32 %v236, 0.0
      %v253 = vmax.f32 %v237, 0.0
      %v254 = vmax.f32 %v238, 0.0
      %v255 = vmax.f32 %v239, 0.0
      %v256 = vmax.f32 %v240, 0.0
      %v257 = vmax.f32 %v241, 0.0
      %v258 = vmax.f32 %v242, 0.0
      %v259 = vmax.f32 %v243, 0.0
      %v260 = vmax.f32 %v244, 0.0
      %v261 = vmax.f32 %v245, 0.0
      %v262 = vmax.f32 %v246, 0.0
      %v263 = vmax.f32 %v247, 0.0
      %v264 = vmax.f32 %v248, 0.0
      %v265 = vmax.f32 %v249, 0.0
      %v266 = vmax.f32 %v250, 0.0
      %v267 = vmax.f32 %v251, 0.0
      %v268 = vpack.c.bf16 %v253, %v252
      %v269 = vpack.c.bf16 %v255, %v254
      %v270 = vpack.c.bf16 %v257, %v256
      %v271 = vpack.c.bf16 %v259, %v258
      %v272 = vpack.c.bf16 %v261, %v260
      %v273 = vpack.c.bf16 %v263, %v262
      %v274 = vpack.c.bf16 %v265, %v264
      %v275 = vpack.c.bf16 %v267, %v266
      %v284 = vunpack.c.l.b16 %v268
      %v285 = vunpack.c.h.b16 %v268
      %v286 = vunpack.c.l.b16 %v269
      %v287 = vunpack.c.h.b16 %v269
      %v288 = vunpack.c.l.b16 %v270
      %v289 = vunpack.c.h.b16 %v270
      %v290 = vunpack.c.l.b16 %v271
      %v291 = vunpack.c.h.b16 %v271
      %v292 = vunpack.c.l.b16 %v272
      %v293 = vunpack.c.h.b16 %v272
      %v294 = vunpack.c.l.b16 %v273
      %v295 = vunpack.c.h.b16 %v273
      %v296 = vunpack.c.l.b16 %v274
      %v297 = vunpack.c.h.b16 %v274
      %v298 = vunpack.c.l.b16 %v275
      %v299 = vunpack.c.h.b16 %v275
      %v300 = vpack.c.b16 %v284, %v284
      %v301 = vpack.c.b16 %v285, %v285
      %v302 = vpack.c.b16 %v286, %v286
      %v303 = vpack.c.b16 %v287, %v287
      %v304 = vpack.c.b16 %v288, %v288
      %v305 = vpack.c.b16 %v289, %v289
      %v306 = vpack.c.b16 %v290, %v290
      %v307 = vpack.c.b16 %v291, %v291
      %v308 = vpack.c.b16 %v292, %v292
      %v309 = vpack.c.b16 %v293, %v293
      %v310 = vpack.c.b16 %v294, %v294
      %v311 = vpack.c.b16 %v295, %v295
      %v312 = vpack.c.b16 %v296, %v296
      %v313 = vpack.c.b16 %v297, %v297
      %v314 = vpack.c.b16 %v298, %v298
      %v315 = vpack.c.b16 %v299, %v299
      %332 = vst [vmem:[%s172] sm:$0xf] %v300
      %333 = vst [vmem:[%s172 + $0x4] sm:$0xf] %v301
      %334 = vst [vmem:[%s172 + $0x8] sm:$0xf] %v302
      %335 = vst [vmem:[%s172 + $0xc] sm:$0xf] %v303
      %336 = vst [vmem:[%s172 + $0x10] sm:$0xf] %v304
      %337 = vst [vmem:[%s172 + $0x14] sm:$0xf] %v305
      %338 = vst [vmem:[%s172 + $0x18] sm:$0xf] %v306
      %339 = vst [vmem:[%s172 + $0x1c] sm:$0xf] %v307
      %340 = vst [vmem:[%s172 + $0x20] sm:$0xf] %v308
      %341 = vst [vmem:[%s172 + $0x24] sm:$0xf] %v309
      %342 = vst [vmem:[%s172 + $0x28] sm:$0xf] %v310
      %343 = vst [vmem:[%s172 + $0x2c] sm:$0xf] %v311
      %344 = vst [vmem:[%s172 + $0x30] sm:$0xf] %v312
      %345 = vst [vmem:[%s172 + $0x34] sm:$0xf] %v313
      %346 = vst [vmem:[%s172 + $0x38] sm:$0xf] %v314
      %347 = vst [vmem:[%s172 + $0x3c] sm:$0xf] %v315
      %s348 = smul.u32 16, %s14
      %p349 = scmp.lt.s32.totalorder %s348, 127
      %s350 = scalar_select %p349, %s348, 127
      %s351 = smul.addr %s350, 4
      %s352 = scalar_lea.vmem %s3, %s351
      // Predicated region
      $region33: #{conv_block_3d_forward.5} parent=31 // pred_check
        %p353 = pneg %p100
      $region34: #{conv_block_3d_forward.5} parent=31 // pred_check_branch
        %355 = sbr.rel (%p353) target = $region36
      $region35: #{conv_block_3d_forward.5} parent=31 // pred_region
        %s356 = smul.u32 16, %s14
      $region36: #{conv_block_3d_forward.5} parent=31 // pred_fallthru
        _
    $region32: #{conv_block_3d_forward.5} parent=5 // pred_fallthru
      _
    %p357 = scmp.le.s32.totalorder 2, %s9
    // Predicated region
    $region37: #{conv_block_3d_forward.5} parent=5 // pred_check
      %p358 = pneg %p357
    $region38: #{conv_block_3d_forward.5} parent=5 // pred_check_branch
      %360 = sbr.rel (%p358) target = $region40
    $region39: #{conv_block_3d_forward.5} parent=5 // pred_region
      %s361 = ssub.s32 %s9, 2
      // Predicated region
      $region41: #{conv_block_3d_forward.5} parent=39 // pred_check
        %p362 = pneg %p106
      $region42: #{conv_block_3d_forward.5} parent=39 // pred_check_branch
        %364 = sbr.rel (%p362) target = $region44
      $region43: #{conv_block_3d_forward.5} parent=39 // pred_region
        %s365 = smul.u32 16, %s15
        %p366 = scmp.lt.s32.totalorder %s365, 127
        %s367 = scalar_select %p366, %s365, 127
        %s368 = smul.addr %s367, 4
        %s369 = scalar_lea.vmem %s3, %s368
      $region44: #{conv_block_3d_forward.5} parent=39 // pred_fallthru
        _
    $region40: #{conv_block_3d_forward.5} parent=5 // pred_fallthru
      _
  $region6: #{conv_block_3d_forward.5} parent=0 // loop_footer
    %s13 = sadd.s32 1, %s9
  $region7: #{conv_block_3d_forward.5} parent=0 // loop_footer_branch
    %8 = sbr.rel target = $region3
  $region8: #{conv_block_3d_forward.5} parent=0 // loop_exit
    _

// kernel: conv_block_3d_forward.4
$region0: #{conv_block_3d_forward.4}
  #allocation0 [shape = 'u32[]', space=smem, size = 0x4, offset = 0x4, fixed_abs, tag = 'smem constant byte address 0x4 - core index']
  #allocation1 [shape = 'u32[144,128]{1,0:T(1,128)}', space=vmem, size = 0x12000, scoped, tag = 'internal scratch']
  %s0 = inlined_call_operand.vmem [shape: bf16[1024,864], index: 0, kind: input, shape index: {}]
  %s1 = inlined_call_operand.vmem [shape: bf16[864,128], index: 1, kind: input, shape index: {}]
  %s2 = inlined_call_operand.vmem [shape: f32[1,128], index: 2, kind: input, shape index: {}]
  %s3 = inlined_call_operand.vmem [shape: bf16[1024,128], index: 3, kind: output, shape index: {0}]
  %s4 = inlined_call_operand.vmem [shape: f32[8,1,128], index: 4, kind: output, shape index: {1}]
  %s5 = inlined_call_operand.vmem [shape: f32[8,1,128], index: 5, kind: output, shape index: {2}]
  %6 = xla_tuple %s3, %s4, %s5
  %s7 = sld [smem:[#allocation0]]
  $region61: #{conv_block_3d_forward.4} parent=0
    _
  %s9 = ssub.s32 1, %s7
  %s10 = scalar_select 0, %s9, %s7
  loop: start=0, step=1, limit=10
  $region2: #{conv_block_3d_forward.4} parent=0 // loop_pre_header
    _
  $region3: #{conv_block_3d_forward.4} parent=0 // loop_header
    %s12 = sphi 0, %s16
    %p13 = scmp.ge.s32.totalorder %s12, 10
    %s22 = sphi 0, %s24
    %s25 = sphi 0, %s22
    %s26 = sphi 0, %s25
    %s42 = sphi 0, %s26
    %s46 = sphi 0, %s46
    %s48 = sphi 0, %s46
    %s49 = sphi 0, %s48
    %s63 = sphi 0, %s49
    %s67 = sphi 0, %s67
    %s69 = sphi 0, %s67
    %s70 = sphi 0, %s69
    %s84 = sphi 0, %s70
    %s90 = sphi 0, %s92
    %s93 = sphi 0, %s90
    %s94 = sphi 0, %s93
    %s110 = sphi 0, %s94
    %s116 = sphi 0, %s118
    %s119 = sphi 0, %s116
    %s120 = sphi 0, %s119
    %s136 = sphi 0, %s120
    %s142 = sphi 0, %s144
    %s145 = sphi 0, %s142
    %s146 = sphi 0, %s145
    %s162 = sphi 0, %s146
  $region4: #{conv_block_3d_forward.4} parent=0 // loop_header_branch
    %15 = sbr.rel (%p13) target = $region8
  $region5: #{conv_block_3d_forward.4} parent=0 // loop_body
    %s17 = ssub.s32 %s12, 1
    %s18 = ssub.s32 %s12, 2
    %s19 = sadd.s32 %s12, 1
    %s20 = ssub.s32 %s12, %s19
    %p21 = scmp.eq.s32.totalorder %s20, 0
    %s23 = sadd.s32 %s22, 1
    %s24 = scalar_select %p21, %s22, %s23
    %p27 = pneg %p21
    %p28 = scmp.eq.s32.totalorder %s12, 7
    %p29 = por %p27, %p28
    %p30 = scmp.ne.s32.totalorder %s22, %s25
    %p31 = scmp.eq.s32.totalorder %s12, 0
    %p32 = por %p30, %p31
    %p33 = scmp.ne.s32.totalorder %s22, %s25
    %p34 = scmp.eq.s32.totalorder %s17, 7
    %p35 = por %p33, %p34
    %p36 = scmp.ne.s32.totalorder %s25, %s26
    %p37 = scmp.eq.s32.totalorder %s17, 0
    %p38 = por %p36, %p37
    %p39 = scmp.ne.s32.totalorder %s25, %s26
    %p40 = scmp.eq.s32.totalorder %s18, 7
    %p41 = por %p39, %p40
    %p43 = scmp.ne.s32.totalorder %s26, %s42
    %p44 = scmp.eq.s32.totalorder %s18, 0
    %p45 = por %p43, %p44
    %s47 = sadd.s32 %s46, 1
    %p50 = scmp.eq.s32.totalorder %s12, 7
    %p51 = scmp.ne.s32.totalorder %s46, %s48
    %p52 = scmp.eq.s32.totalorder %s12, 0
    %p53 = por %p51, %p52
    %p54 = scmp.ne.s32.totalorder %s46, %s48
    %p55 = scmp.eq.s32.totalorder %s17, 7
    %p56 = por %p54, %p55
    %p57 = scmp.ne.s32.totalorder %s48, %s49
    %p58 = scmp.eq.s32.totalorder %s17, 0
    %p59 = por %p57, %p58
    %p60 = scmp.ne.s32.totalorder %s48, %s49
    %p61 = scmp.eq.s32.totalorder %s18, 7
    %p62 = por %p60, %p61
    %p64 = scmp.ne.s32.totalorder %s49, %s63
    %p65 = scmp.eq.s32.totalorder %s18, 0
    %p66 = por %p64, %p65
    %s68 = sadd.s32 %s67, 1
    %p71 = scmp.eq.s32.totalorder %s12, 7
    %p72 = scmp.ne.s32.totalorder %s67, %s69
    %p73 = scmp.eq.s32.totalorder %s12, 0
    %p74 = por %p72, %p73
    %p75 = scmp.ne.s32.totalorder %s67, %s69
    %p76 = scmp.eq.s32.totalorder %s17, 7
    %p77 = por %p75, %p76
    %p78 = scmp.ne.s32.totalorder %s69, %s70
    %p79 = scmp.eq.s32.totalorder %s17, 0
    %p80 = por %p78, %p79
    %p81 = scmp.ne.s32.totalorder %s69, %s70
    %p82 = scmp.eq.s32.totalorder %s18, 7
    %p83 = por %p81, %p82
    %p85 = scmp.ne.s32.totalorder %s70, %s84
    %p86 = scmp.eq.s32.totalorder %s18, 0
    %p87 = por %p85, %p86
    %s88 = ssub.s32 %s12, %s19
    %p89 = scmp.eq.s32.totalorder %s88, 0
    %s91 = sadd.s32 %s90, 1
    %s92 = scalar_select %p89, %s90, %s91
    %p95 = pneg %p89
    %p96 = scmp.eq.s32.totalorder %s12, 7
    %p97 = por %p95, %p96
    %p98 = scmp.ne.s32.totalorder %s90, %s93
    %p99 = scmp.eq.s32.totalorder %s12, 0
    %p100 = por %p98, %p99
    %p101 = scmp.ne.s32.totalorder %s90, %s93
    %p102 = scmp.eq.s32.totalorder %s17, 7
    %p103 = por %p101, %p102
    %p104 = scmp.ne.s32.totalorder %s93, %s94
    %p105 = scmp.eq.s32.totalorder %s17, 0
    %p106 = por %p104, %p105
    %p107 = scmp.ne.s32.totalorder %s93, %s94
    %p108 = scmp.eq.s32.totalorder %s18, 7
    %p109 = por %p107, %p108
    %p111 = scmp.ne.s32.totalorder %s94, %s110
    %p112 = scmp.eq.s32.totalorder %s18, 0
    %p113 = por %p111, %p112
    %s114 = ssub.s32 %s12, %s19
    %p115 = scmp.eq.s32.totalorder %s114, 0
    %s117 = sadd.s32 %s116, 1
    %s118 = scalar_select %p115, %s116, %s117
    %p121 = pneg %p115
    %p122 = scmp.eq.s32.totalorder %s12, 7
    %p123 = por %p121, %p122
    %p124 = scmp.ne.s32.totalorder %s116, %s119
    %p125 = scmp.eq.s32.totalorder %s12, 0
    %p126 = por %p124, %p125
    %p127 = scmp.ne.s32.totalorder %s116, %s119
    %p128 = scmp.eq.s32.totalorder %s17, 7
    %p129 = por %p127, %p128
    %p130 = scmp.ne.s32.totalorder %s119, %s120
    %p131 = scmp.eq.s32.totalorder %s17, 0
    %p132 = por %p130, %p131
    %p133 = scmp.ne.s32.totalorder %s119, %s120
    %p134 = scmp.eq.s32.totalorder %s18, 7
    %p135 = por %p133, %p134
    %p137 = scmp.ne.s32.totalorder %s120, %s136
    %p138 = scmp.eq.s32.totalorder %s18, 0
    %p139 = por %p137, %p138
    %s140 = ssub.s32 %s12, %s19
    %p141 = scmp.eq.s32.totalorder %s140, 0
    %s143 = sadd.s32 %s142, 1
    %s144 = scalar_select %p141, %s142, %s143
    %p147 = pneg %p141
    %p148 = scmp.eq.s32.totalorder %s12, 7
    %p149 = por %p147, %p148
    %p150 = scmp.ne.s32.totalorder %s142, %s145
    %p151 = scmp.eq.s32.totalorder %s12, 0
    %p152 = por %p150, %p151
    %p153 = scmp.ne.s32.totalorder %s142, %s145
    %p154 = scmp.eq.s32.totalorder %s17, 7
    %p155 = por %p153, %p154
    %p156 = scmp.ne.s32.totalorder %s145, %s146
    %p157 = scmp.eq.s32.totalorder %s17, 0
    %p158 = por %p156, %p157
    %p159 = scmp.ne.s32.totalorder %s145, %s146
    %p160 = scmp.eq.s32.totalorder %s18, 7
    %p161 = por %p159, %p160
    %p163 = scmp.ne.s32.totalorder %s146, %s162
    %p164 = scmp.eq.s32.totalorder %s18, 0
    %p165 = por %p163, %p164
    %p166 = scmp.le.s32.totalorder 1, %s12
    %p167 = scmp.lt.s32.totalorder %s12, 9
    %p168 = pnand %p166, %p167
    %p169 = pneg %p168
    // Predicated region
    $region9: #{conv_block_3d_forward.4} parent=5 // pred_check
      _
    $region10: #{conv_block_3d_forward.4} parent=5 // pred_check_branch
      %171 = sbr.rel (%p168) target = $region12
    $region11: #{conv_block_3d_forward.4} parent=5 // pred_region
      %s172 = ssub.s32 %s12, 1
      // Predicated region
      $region13: #{conv_block_3d_forward.4} parent=11 // pred_check
        %p173 = pneg %p59
      $region14: #{conv_block_3d_forward.4} parent=11 // pred_check_branch
        %175 = sbr.rel (%p173) target = $region16
      $region15: #{conv_block_3d_forward.4} parent=11 // pred_region
        _
      $region16: #{conv_block_3d_forward.4} parent=11 // pred_fallthru
        _
      // Predicated region
      $region17: #{conv_block_3d_forward.4} parent=11 // pred_check
        %p176 = pneg %p80
      $region18: #{conv_block_3d_forward.4} parent=11 // pred_check_branch
        %178 = sbr.rel (%p176) target = $region20
      $region19: #{conv_block_3d_forward.4} parent=11 // pred_region
        _
      $region20: #{conv_block_3d_forward.4} parent=11 // pred_fallthru
        _
    $region12: #{conv_block_3d_forward.4} parent=5 // pred_fallthru
      _
    %p179 = scmp.lt.s32.totalorder %s12, 8
    // Predicated region
    $region21: #{conv_block_3d_forward.4} parent=5 // pred_check
      %p180 = pneg %p179
    $region22: #{conv_block_3d_forward.4} parent=5 // pred_check_branch
      %182 = sbr.rel (%p180) target = $region24
    $region23: #{conv_block_3d_forward.4} parent=5 // pred_region
      // Predicated region
      $region25: #{conv_block_3d_forward.4} parent=23 // pred_check
        %p183 = pneg %p32
      $region26: #{conv_block_3d_forward.4} parent=23 // pred_check_branch
        %185 = sbr.rel (%p183) target = $region28
      $region27: #{conv_block_3d_forward.4} parent=23 // pred_region
        %s186 = smul.u32 16, %s12
        %p187 = scmp.lt.s32.totalorder %s186, 127
        %s188 = scalar_select %p187, %s186, 127
        %s189 = smul.addr %s188, 7
        %s190 = smul.addr %s189, 4
        %s191 = scalar_lea.vmem %s0, %s190
        %s192 = smul.u32 16, %s12
      $region28: #{conv_block_3d_forward.4} parent=23 // pred_fallthru
        _
    $region24: #{conv_block_3d_forward.4} parent=5 // pred_fallthru
      _
    %p193 = scmp.le.s32.totalorder 1, %s12
    %p194 = scmp.lt.s32.totalorder %s12, 9
    %p195 = pnand %p193, %p194
    %p196 = pneg %p195
    // Predicated region
    $region29: #{conv_block_3d_forward.4} parent=5 // pred_check
      _
    $region30: #{conv_block_3d_forward.4} parent=5 // pred_check_branch
      %198 = sbr.rel (%p195) target = $region32
    $region31: #{conv_block_3d_forward.4} parent=5 // pred_region
      %s199 = ssub.s32 %s12, 1
      %s200 = smul.u32 16, %s17
      %p201 = scmp.lt.s32.totalorder %s200, 127
      %s202 = scalar_select %p201, %s200, 127
      %s203 = smul.addr %s202, 7
      %s204 = smul.addr %s203, 4
      %s205 = scalar_lea.vmem %s0, %s204
      %p206 = pneg %p38
      %p207 = pneg %p35
      %p208 = pneg %p59
      %p209 = pneg %p56
      %p210 = pneg %p80
      %p211 = pneg %p77
      %p212 = pneg %p106
      %p213 = pneg %p103
      %s214 = smul.u32 16, %s17
      %p215 = scmp.lt.s32.totalorder %s214, 127
      %s216 = scalar_select %p215, %s214, 127
      %s217 = smul.addr %s216, 4
      %s218 = scalar_lea.vmem %s3, %s217
      %p219 = pneg %p132
      %p220 = pneg %p129
      %p221 = scmp.lt.s32.totalorder %s17, 7
      %s222 = scalar_select %p221, %s17, 7
      %s223 = scalar_lea.vmem %s4, %s222
      %p224 = pneg %p158
      %p225 = pneg %p155
      %p226 = scmp.lt.s32.totalorder %s17, 7
      %s227 = scalar_select %p226, %s17, 7
      %s228 = scalar_lea.vmem %s5, %s227
      %s229 = smul.u32 16, %s17
      %p230 = scmp.lt.s32.totalorder %s229, 127
      %s231 = scalar_select %p230, %s229, 127
      %s232 = smul.addr %s231, 7
      %s233 = smul.addr %s232, 4
      %s234 = scalar_lea.vmem %s0, %s233
      %s235 = smul.u32 16, %s17
      %s236 = smul.u32 16, %s17
      %p237 = scmp.lt.s32.totalorder %s236, 127
      %s238 = scalar_select %p237, %s236, 127
      %s239 = smul.addr %s238, 4
      %s240 = scalar_lea.vmem %s3, %s239
      %s241 = smul.u32 16, %s17
      %p242 = scmp.lt.s32.totalorder %s17, 7
      %s243 = scalar_select %p242, %s17, 7
      %s244 = scalar_lea.vmem %s4, %s243
      %p245 = scmp.lt.s32.totalorder %s17, 7
      %s246 = scalar_select %p245, %s17, 7
      %s247 = scalar_lea.vmem %s5, %s246
      %v249 = vld [vmem:[%s234] sm:$0xff]
      %v250 = vld [vmem:[%s234 + $0x8] sm:$0xff]
      %v251 = vld [vmem:[%s234 + $0x10] sm:$0xff]
      %v252 = vld [vmem:[%s234 + $0x18] sm:$0xf]
      %v253 = vld [vmem:[%s234 + $0x1c] sm:$0xff]
      %v254 = vld [vmem:[%s234 + $0x24] sm:$0xff]
      %v255 = vld [vmem:[%s234 + $0x2c] sm:$0xff]
      %v256 = vld [vmem:[%s234 + $0x34] sm:$0xf]
      %v257 = vld [vmem:[%s234 + $0x38] sm:$0xff]
      %v258 = vld [vmem:[%s234 + $0x40] sm:$0xff]
      %v259 = vld [vmem:[%s234 + $0x48] sm:$0xff]
      %v260 = vld [vmem:[%s234 + $0x50] sm:$0xf]
      %v261 = vld [vmem:[%s234 + $0x54] sm:$0xff]
      %v262 = vld [vmem:[%s234 + $0x5c] sm:$0xff]
      %v263 = vld [vmem:[%s234 + $0x64] sm:$0xff]
      %v264 = vld [vmem:[%s234 + $0x6c] sm:$0xf]
      %v265 = vld [vmem:[%s234 + $0x70] sm:$0xff]
      %v266 = vld [vmem:[%s234 + $0x78] sm:$0xff]
      %v267 = vld [vmem:[%s234 + $0x80] sm:$0xff]
      %v268 = vld [vmem:[%s234 + $0x88] sm:$0xf]
      %v269 = vld [vmem:[%s234 + $0x8c] sm:$0xff]
      %v270 = vld [vmem:[%s234 + $0x94] sm:$0xff]
      %v271 = vld [vmem:[%s234 + $0x9c] sm:$0xff]
      %v272 = vld [vmem:[%s234 + $0xa4] sm:$0xf]
      %v273 = vld [vmem:[%s234 + $0xa8] sm:$0xff]
      %v274 = vld [vmem:[%s234 + $0xb0] sm:$0xff]
      %v275 = vld [vmem:[%s234 + $0xb8] sm:$0xff]
      %v276 = vld [vmem:[%s234 + $0xc0] sm:$0xf]
      %v277 = vld [vmem:[%s234 + $0xc4] sm:$0xff]
      %v278 = vld [vmem:[%s234 + $0xcc] sm:$0xff]
      %v279 = vld [vmem:[%s234 + $0xd4] sm:$0xff]
      %v280 = vld [vmem:[%s234 + $0xdc] sm:$0xf]
      %v281 = vld [vmem:[%s234 + $0xe0] sm:$0xff]
      %v282 = vld [vmem:[%s234 + $0xe8] sm:$0xff]
      %v283 = vld [vmem:[%s234 + $0xf0] sm:$0xff]
      %v284 = vld [vmem:[%s234 + $0xf8] sm:$0xf]
      %v285 = vld [vmem:[%s234 + $0xfc] sm:$0xff]
      %v286 = vld [vmem:[%s234 + $0x104] sm:$0xff]
      %v287 = vld [vmem:[%s234 + $0x10c] sm:$0xff]
      %v288 = vld [vmem:[%s234 + $0x114] sm:$0xf]
      %v289 = vld [vmem:[%s234 + $0x118] sm:$0xff]
      %v290 = vld [vmem:[%s234 + $0x120] sm:$0xff]
      %v291 = vld [vmem:[%s234 + $0x128] sm:$0xff]
      %v292 = vld [vmem:[%s234 + $0x130] sm:$0xf]
      %v293 = vld [vmem:[%s234 + $0x134] sm:$0xff]
      %v294 = vld [vmem:[%s234 + $0x13c] sm:$0xff]
      %v295 = vld [vmem:[%s234 + $0x144] sm:$0xff]
      %v296 = vld [vmem:[%s234 + $0x14c] sm:$0xf]
      %v297 = vld [vmem:[%s234 + $0x150] sm:$0xff]
      %v298 = vld [vmem:[%s234 + $0x158] sm:$0xff]
      %v299 = vld [vmem:[%s234 + $0x160] sm:$0xff]
      %v300 = vld [vmem:[%s234 + $0x168] sm:$0xf]
      %v301 = vld [vmem:[%s234 + $0x16c] sm:$0xff]
      %v302 = vld [vmem:[%s234 + $0x174] sm:$0xff]
      %v303 = vld [vmem:[%s234 + $0x17c] sm:$0xff]
      %v304 = vld [vmem:[%s234 + $0x184] sm:$0xf]
      %v305 = vld [vmem:[%s234 + $0x188] sm:$0xff]
      %v306 = vld [vmem:[%s234 + $0x190] sm:$0xff]
      %v307 = vld [vmem:[%s234 + $0x198] sm:$0xff]
      %v308 = vld [vmem:[%s234 + $0x1a0] sm:$0xf]
      %v309 = vld [vmem:[%s234 + $0x1a4] sm:$0xff]
      %v310 = vld [vmem:[%s234 + $0x1ac] sm:$0xff]
      %v311 = vld [vmem:[%s234 + $0x1b4] sm:$0xff]
      %v312 = vld [vmem:[%s234 + $0x1bc] sm:$0xf]
      %v313 = vld [vmem:[%s1] sm:$0xf]
      %v314 = vld [vmem:[%s1 + $0x4] sm:$0xf]
      %v315 = vld [vmem:[%s1 + $0x8] sm:$0xf]
      %v316 = vld [vmem:[%s1 + $0xc] sm:$0xf]
      %v317 = vld [vmem:[%s1 + $0x10] sm:$0xf]
      %v318 = vld [vmem:[%s1 + $0x14] sm:$0xf]
      %v319 = vld [vmem:[%s1 + $0x18] sm:$0xf]
      %v320 = vld [vmem:[%s1 + $0x1c] sm:$0xf]
      %v321 = vld [vmem:[%s1 + $0x20] sm:$0xf]
      %v322 = vld [vmem:[%s1 + $0x24] sm:$0xf]
      %v323 = vld [vmem:[%s1 + $0x28] sm:$0xf]
      %v324 = vld [vmem:[%s1 + $0x2c] sm:$0xf]
      %v325 = vld [vmem:[%s1 + $0x30] sm:$0xf]
      %v326 = vld [vmem:[%s1 + $0x34] sm:$0xf]
      %v327 = vld [vmem:[%s1 + $0x38] sm:$0xf]
      %v328 = vld [vmem:[%s1 + $0x3c] sm:$0xf]
      %v329 = vld [vmem:[%s1 + $0x40] sm:$0xf]
      %v330 = vld [vmem:[%s1 + $0x44] sm:$0xf]
      %v331 = vld [vmem:[%s1 + $0x48] sm:$0xf]
      %v332 = vld [vmem:[%s1 + $0x4c] sm:$0xf]
      %v333 = vld [vmem:[%s1 + $0x50] sm:$0xf]
      %v334 = vld [vmem:[%s1 + $0x54] sm:$0xf]
      %v335 = vld [vmem:[%s1 + $0x58] sm:$0xf]
      %v336 = vld [vmem:[%s1 + $0x5c] sm:$0xf]
      %v337 = vld [vmem:[%s1 + $0x60] sm:$0xf]
      %v338 = vld [vmem:[%s1 + $0x64] sm:$0xf]
      %v339 = vld [vmem:[%s1 + $0x68] sm:$0xf]
      %v340 = vld [vmem:[%s1 + $0x6c] sm:$0xf]
      %v341 = vld [vmem:[%s1 + $0x70] sm:$0xf]
      %v342 = vld [vmem:[%s1 + $0x74] sm:$0xf]
      %v343 = vld [vmem:[%s1 + $0x78] sm:$0xf]
      %v344 = vld [vmem:[%s1 + $0x7c] sm:$0xf]
      %v345 = vld [vmem:[%s1 + $0x80] sm:$0xf]
      %v346 = vld [vmem:[%s1 + $0x84] sm:$0xf]
      %v347 = vld [vmem:[%s1 + $0x88] sm:$0xf]
      %v348 = vld [vmem:[%s1 + $0x8c] sm:$0xf]
      %v349 = vld [vmem:[%s1 + $0x90] sm:$0xf]
      %v350 = vld [vmem:[%s1 + $0x94] sm:$0xf]
      %v351 = vld [vmem:[%s1 + $0x98] sm:$0xf]
      %v352 = vld [vmem:[%s1 + $0x9c] sm:$0xf]
      %v353 = vld [vmem:[%s1 + $0xa0] sm:$0xf]
      %v354 = vld [vmem:[%s1 + $0xa4] sm:$0xf]
      %v355 = vld [vmem:[%s1 + $0xa8] sm:$0xf]
      %v356 = vld [vmem:[%s1 + $0xac] sm:$0xf]
      %v357 = vld [vmem:[%s1 + $0xb0] sm:$0xf]
      %v358 = vld [vmem:[%s1 + $0xb4] sm:$0xf]
      %v359 = vld [vmem:[%s1 + $0xb8] sm:$0xf]
      %v360 = vld [vmem:[%s1 + $0xbc] sm:$0xf]
      %v361 = vld [vmem:[%s1 + $0xc0] sm:$0xf]
      %v362 = vld [vmem:[%s1 + $0xc4] sm:$0xf]
      %v363 = vld [vmem:[%s1 + $0xc8] sm:$0xf]
      %v364 = vld [vmem:[%s1 + $0xcc] sm:$0xf]
      %v365 = vld [vmem:[%s1 + $0xd0] sm:$0xf]
      %v366 = vld [vmem:[%s1 + $0xd4] sm:$0xf]
      %v367 = vld [vmem:[%s1 + $0xd8] sm:$0xf]
      %v368 = vld [vmem:[%s1 + $0xdc] sm:$0xf]
      %v369 = vld [vmem:[%s1 + $0xe0] sm:$0xf]
      %v370 = vld [vmem:[%s1 + $0xe4] sm:$0xf]
      %v371 = vld [vmem:[%s1 + $0xe8] sm:$0xf]
      %v372 = vld [vmem:[%s1 + $0xec] sm:$0xf]
      %v373 = vld [vmem:[%s1 + $0xf0] sm:$0xf]
      %v374 = vld [vmem:[%s1 + $0xf4] sm:$0xf]
      %v375 = vld [vmem:[%s1 + $0xf8] sm:$0xf]
      %v376 = vld [vmem:[%s1 + $0xfc] sm:$0xf]
      %v377 = vld [vmem:[%s1 + $0x100] sm:$0xf]
      %v378 = vld [vmem:[%s1 + $0x104] sm:$0xf]
      %v379 = vld [vmem:[%s1 + $0x108] sm:$0xf]
      %v380 = vld [vmem:[%s1 + $0x10c] sm:$0xf]
      %v381 = vld [vmem:[%s1 + $0x110] sm:$0xf]
      %v382 = vld [vmem:[%s1 + $0x114] sm:$0xf]
      %v383 = vld [vmem:[%s1 + $0x118] sm:$0xf]
      %v384 = vld [vmem:[%s1 + $0x11c] sm:$0xf]
      %v385 = vld [vmem:[%s1 + $0x120] sm:$0xf]
      %v386 = vld [vmem:[%s1 + $0x124] sm:$0xf]
      %v387 = vld [vmem:[%s1 + $0x128] sm:$0xf]
      %v388 = vld [vmem:[%s1 + $0x12c] sm:$0xf]
      %v389 = vld [vmem:[%s1 + $0x130] sm:$0xf]
      %v390 = vld [vmem:[%s1 + $0x134] sm:$0xf]
      %v391 = vld [vmem:[%s1 + $0x138] sm:$0xf]
      %v392 = vld [vmem:[%s1 + $0x13c] sm:$0xf]
      %v393 = vld [vmem:[%s1 + $0x140] sm:$0xf]
      %v394 = vld [vmem:[%s1 + $0x144] sm:$0xf]
      %v395 = vld [vmem:[%s1 + $0x148] sm:$0xf]
      %v396 = vld [vmem:[%s1 + $0x14c] sm:$0xf]
      %v397 = vld [vmem:[%s1 + $0x150] sm:$0xf]
      %v398 = vld [vmem:[%s1 + $0x154] sm:$0xf]
      %v399 = vld [vmem:[%s1 + $0x158] sm:$0xf]
      %v400 = vld [vmem:[%s1 + $0x15c] sm:$0xf]
      %v401 = vld [vmem:[%s1 + $0x160] sm:$0xf]
      %v402 = vld [vmem:[%s1 + $0x164] sm:$0xf]
      %v403 = vld [vmem:[%s1 + $0x168] sm:$0xf]
      %v404 = vld [vmem:[%s1 + $0x16c] sm:$0xf]
      %v405 = vld [vmem:[%s1 + $0x170] sm:$0xf]
      %v406 = vld [vmem:[%s1 + $0x174] sm:$0xf]
      %v407 = vld [vmem:[%s1 + $0x178] sm:$0xf]
      %v408 = vld [vmem:[%s1 + $0x17c] sm:$0xf]
      %v409 = vld [vmem:[%s1 + $0x180] sm:$0xf]
      %v410 = vld [vmem:[%s1 + $0x184] sm:$0xf]
      %v411 = vld [vmem:[%s1 + $0x188] sm:$0xf]
      %v412 = vld [vmem:[%s1 + $0x18c] sm:$0xf]
      %v413 = vld [vmem:[%s1 + $0x190] sm:$0xf]
      %v414 = vld [vmem:[%s1 + $0x194] sm:$0xf]
      %v415 = vld [vmem:[%s1 + $0x198] sm:$0xf]
      %v416 = vld [vmem:[%s1 + $0x19c] sm:$0xf]
      %v417 = vld [vmem:[%s1 + $0x1a0] sm:$0xf]
      %v418 = vld [vmem:[%s1 + $0x1a4] sm:$0xf]
      %v419 = vld [vmem:[%s1 + $0x1a8] sm:$0xf]
      %v420 = vld [vmem:[%s1 + $0x1ac] sm:$0xf]
      %v421 = vld [vmem:[%s2] sm:$0x1]
      %v423 = vlaneseq
      %v424 = vshrl.u32 %v423, 7
      %v425 = vsub.s32 0, %v424
      %v426 = vrot.slane %v421, %v425
      %v492 = vunpack.c.l.b16 %v249
      %v493 = vunpack.c.h.b16 %v249
      %v494 = vunpack.c.l.b16 %v250
      %v495 = vunpack.c.h.b16 %v250
      %v496 = vunpack.c.l.b16 %v251
      %v497 = vunpack.c.h.b16 %v251
      %v498 = vunpack.c.l.b16 %v252
      %v499 = vunpack.c.l.b16 %v253
      %v500 = vunpack.c.h.b16 %v253
      %v501 = vunpack.c.l.b16 %v254
      %v502 = vunpack.c.h.b16 %v254
      %v503 = vunpack.c.l.b16 %v255
      %v504 = vunpack.c.h.b16 %v255
      %v505 = vunpack.c.l.b16 %v256
      %v506 = vunpack.c.l.b16 %v257
      %v507 = vunpack.c.h.b16 %v257
      %v508 = vunpack.c.l.b16 %v258
      %v509 = vunpack.c.h.b16 %v258
      %v510 = vunpack.c.l.b16 %v259
      %v511 = vunpack.c.h.b16 %v259
      %v512 = vunpack.c.l.b16 %v260
      %v513 = vunpack.c.l.b16 %v261
      %v514 = vunpack.c.h.b16 %v261
      %v515 = vunpack.c.l.b16 %v262
      %v516 = vunpack.c.h.b16 %v262
      %v517 = vunpack.c.l.b16 %v263
      %v518 = vunpack.c.h.b16 %v263
      %v519 = vunpack.c.l.b16 %v264
      %v520 = vunpack.c.l.b16 %v265
      %v521 = vunpack.c.h.b16 %v265
      %v522 = vunpack.c.l.b16 %v266
      %v523 = vunpack.c.h.b16 %v266
      %v524 = vunpack.c.l.b16 %v267
      %v525 = vunpack.c.h.b16 %v267
      %v526 = vunpack.c.l.b16 %v268
      %v527 = vunpack.c.l.b16 %v269
      %v528 = vunpack.c.h.b16 %v269
      %v529 = vunpack.c.l.b16 %v270
      %v530 = vunpack.c.h.b16 %v270
      %v531 = vunpack.c.l.b16 %v271
      %v532 = vunpack.c.h.b16 %v271
      %v533 = vunpack.c.l.b16 %v272
      %v534 = vunpack.c.l.b16 %v273
      %v535 = vunpack.c.h.b16 %v273
      %v536 = vunpack.c.l.b16 %v274
      %v537 = vunpack.c.h.b16 %v274
      %v538 = vunpack.c.l.b16 %v275
      %v539 = vunpack.c.h.b16 %v275
      %v540 = vunpack.c.l.b16 %v276
      %v541 = vunpack.c.l.b16 %v277
      %v542 = vunpack.c.h.b16 %v277
      %v543 = vunpack.c.l.b16 %v278
      %v544 = vunpack.c.h.b16 %v278
      %v545 = vunpack.c.l.b16 %v279
      %v546 = vunpack.c.h.b16 %v279
      %v547 = vunpack.c.l.b16 %v280
      %v548 = vunpack.c.l.b16 %v281
      %v549 = vunpack.c.h.b16 %v281
      %v550 = vunpack.c.l.b16 %v282
      %v551 = vunpack.c.h.b16 %v282
      %v552 = vunpack.c.l.b16 %v283
      %v553 = vunpack.c.h.b16 %v283
      %v554 = vunpack.c.l.b16 %v284
      %v555 = vunpack.c.l.b16 %v285
      %v556 = vunpack.c.h.b16 %v285
      %v557 = vunpack.c.l.b16 %v286
      %v558 = vunpack.c.h.b16 %v286
      %v559 = vunpack.c.l.b16 %v287
      %v560 = vunpack.c.h.b16 %v287
      %v561 = vunpack.c.l.b16 %v288
      %v562 = vunpack.c.l.b16 %v289
      %v563 = vunpack.c.h.b16 %v289
      %v564 = vunpack.c.l.b16 %v290
      %v565 = vunpack.c.h.b16 %v290
      %v566 = vunpack.c.l.b16 %v291
      %v567 = vunpack.c.h.b16 %v291
      %v568 = vunpack.c.l.b16 %v292
      %v569 = vunpack.c.l.b16 %v293
      %v570 = vunpack.c.h.b16 %v293
      %v571 = vunpack.c.l.b16 %v294
      %v572 = vunpack.c.h.b16 %v294
      %v573 = vunpack.c.l.b16 %v295
      %v574 = vunpack.c.h.b16 %v295
      %v575 = vunpack.c.l.b16 %v296
      %v576 = vunpack.c.l.b16 %v297
      %v577 = vunpack.c.h.b16 %v297
      %v578 = vunpack.c.l.b16 %v298
      %v579 = vunpack.c.h.b16 %v298
      %v580 = vunpack.c.l.b16 %v299
      %v581 = vunpack.c.h.b16 %v299
      %v582 = vunpack.c.l.b16 %v300
      %v583 = vunpack.c.l.b16 %v301
      %v584 = vunpack.c.h.b16 %v301
      %v585 = vunpack.c.l.b16 %v302
      %v586 = vunpack.c.h.b16 %v302
      %v587 = vunpack.c.l.b16 %v303
      %v588 = vunpack.c.h.b16 %v303
      %v589 = vunpack.c.l.b16 %v304
      %v590 = vunpack.c.l.b16 %v305
      %v591 = vunpack.c.h.b16 %v305
      %v592 = vunpack.c.l.b16 %v306
      %v593 = vunpack.c.h.b16 %v306
      %v594 = vunpack.c.l.b16 %v307
      %v595 = vunpack.c.h.b16 %v307
      %v596 = vunpack.c.l.b16 %v308
      %v597 = vunpack.c.l.b16 %v309
      %v598 = vunpack.c.h.b16 %v309
      %v599 = vunpack.c.l.b16 %v310
      %v600 = vunpack.c.h.b16 %v310
      %v601 = vunpack.c.l.b16 %v311
      %v602 = vunpack.c.h.b16 %v311
      %v603 = vunpack.c.l.b16 %v312
      %v604 = vpack.c.b16 %v499, %v492
      %v605 = vpack.c.b16 %v500, %v493
      %v606 = vpack.c.b16 %v501, %v494
      %v607 = vpack.c.b16 %v502, %v495
      %v608 = vpack.c.b16 %v503, %v496
      %v609 = vpack.c.b16 %v504, %v497
      %v610 = vpack.c.b16 %v505, %v498
      %v611 = vpack.c.b16 %v513, %v506
      %v612 = vpack.c.b16 %v514, %v507
      %v613 = vpack.c.b16 %v515, %v508
      %v614 = vpack.c.b16 %v516, %v509
      %v615 = vpack.c.b16 %v517, %v510
      %v616 = vpack.c.b16 %v518, %v511
      %v617 = vpack.c.b16 %v519, %v512
      %v618 = vpack.c.b16 %v527, %v520
      %v619 = vpack.c.b16 %v528, %v521
      %v620 = vpack.c.b16 %v529, %v522
      %v621 = vpack.c.b16 %v530, %v523
      %v622 = vpack.c.b16 %v531, %v524
      %v623 = vpack.c.b16 %v532, %v525
      %v624 = vpack.c.b16 %v533, %v526
      %v625 = vpack.c.b16 %v541, %v534
      %v626 = vpack.c.b16 %v542, %v535
      %v627 = vpack.c.b16 %v543, %v536
      %v628 = vpack.c.b16 %v544, %v537
      %v629 = vpack.c.b16 %v545, %v538
      %v630 = vpack.c.b16 %v546, %v539
      %v631 = vpack.c.b16 %v547, %v540
      %v632 = vpack.c.b16 %v555, %v548
      %v633 = vpack.c.b16 %v556, %v549
      %v634 = vpack.c.b16 %v557, %v550
      %v635 = vpack.c.b16 %v558, %v551
      %v636 = vpack.c.b16 %v559, %v552
      %v637 = vpack.c.b16 %v560, %v553
      %v638 = vpack.c.b16 %v561, %v554
      %v639 = vpack.c.b16 %v569, %v562
      %v640 = vpack.c.b16 %v570, %v563
      %v641 = vpack.c.b16 %v571, %v564
      %v642 = vpack.c.b16 %v572, %v565
      %v643 = vpack.c.b16 %v573, %v566
      %v644 = vpack.c.b16 %v574, %v567
      %v645 = vpack.c.b16 %v575, %v568
      %v646 = vpack.c.b16 %v583, %v576
      %v647 = vpack.c.b16 %v584, %v577
      %v648 = vpack.c.b16 %v585, %v578
      %v649 = vpack.c.b16 %v586, %v579
      %v650 = vpack.c.b16 %v587, %v580
      %v651 = vpack.c.b16 %v588, %v581
      %v652 = vpack.c.b16 %v589, %v582
      %v653 = vpack.c.b16 %v597, %v590
      %v654 = vpack.c.b16 %v598, %v591
      %v655 = vpack.c.b16 %v599, %v592
      %v656 = vpack.c.b16 %v600, %v593
      %v657 = vpack.c.b16 %v601, %v594
      %v658 = vpack.c.b16 %v602, %v595
      %v659 = vpack.c.b16 %v603, %v596
      %v816 = vunpack.c.l.b16 %v313
      %v817 = vunpack.c.l.b16 %v314
      %v818 = vunpack.c.l.b16 %v315
      %v819 = vunpack.c.l.b16 %v316
      %v820 = vunpack.c.l.b16 %v317
      %v821 = vunpack.c.l.b16 %v318
      %v822 = vunpack.c.l.b16 %v319
      %v823 = vunpack.c.l.b16 %v320
      %v824 = vunpack.c.l.b16 %v321
      %v825 = vunpack.c.l.b16 %v322
      %v826 = vunpack.c.l.b16 %v323
      %v827 = vunpack.c.l.b16 %v324
      %v828 = vunpack.c.l.b16 %v325
      %v829 = vunpack.c.l.b16 %v326
      %v830 = vunpack.c.l.b16 %v327
      %v831 = vunpack.c.l.b16 %v328
      %v832 = vunpack.c.l.b16 %v329
      %v833 = vunpack.c.l.b16 %v330
      %v834 = vunpack.c.l.b16 %v331
      %v835 = vunpack.c.l.b16 %v332
      %v836 = vunpack.c.l.b16 %v333
      %v837 = vunpack.c.l.b16 %v334
      %v838 = vunpack.c.l.b16 %v335
      %v839 = vunpack.c.l.b16 %v336
      %v840 = vunpack.c.l.b16 %v337
      %v841 = vunpack.c.l.b16 %v338
      %v842 = vunpack.c.l.b16 %v339
      %v843 = vunpack.c.l.b16 %v340
      %v844 = vunpack.c.l.b16 %v341
      %v845 = vunpack.c.l.b16 %v342
      %v846 = vunpack.c.l.b16 %v343
      %v847 = vunpack.c.l.b16 %v344
      %v848 = vunpack.c.l.b16 %v345
      %v849 = vunpack.c.l.b16 %v346
      %v850 = vunpack.c.l.b16 %v347
      %v851 = vunpack.c.l.b16 %v348
      %v852 = vunpack.c.l.b16 %v349
      %v853 = vunpack.c.l.b16 %v350
      %v854 = vunpack.c.l.b16 %v351
      %v855 = vunpack.c.l.b16 %v352
      %v856 = vunpack.c.l.b16 %v353
      %v857 = vunpack.c.l.b16 %v354
      %v858 = vunpack.c.l.b16 %v355
      %v859 = vunpack.c.l.b16 %v356
      %v860 = vunpack.c.l.b16 %v357
      %v861 = vunpack.c.l.b16 %v358
      %v862 = vunpack.c.l.b16 %v359
      %v863 = vunpack.c.l.b16 %v360
      %v864 = vunpack.c.l.b16 %v361
      %v865 = vunpack.c.l.b16 %v362
      %v866 = vunpack.c.l.b16 %v363
      %v867 = vunpack.c.l.b16 %v364
      %v868 = vunpack.c.l.b16 %v365
      %v869 = vunpack.c.l.b16 %v366
      %v870 = vunpack.c.l.b16 %v367
      %v871 = vunpack.c.l.b16 %v368
      %v872 = vunpack.c.l.b16 %v369
      %v873 = vunpack.c.l.b16 %v370
      %v874 = vunpack.c.l.b16 %v371
      %v875 = vunpack.c.l.b16 %v372
      %v876 = vunpack.c.l.b16 %v373
      %v877 = vunpack.c.l.b16 %v374
      %v878 = vunpack.c.l.b16 %v375
      %v879 = vunpack.c.l.b16 %v376
      %v880 = vunpack.c.l.b16 %v377
      %v881 = vunpack.c.l.b16 %v378
      %v882 = vunpack.c.l.b16 %v379
      %v883 = vunpack.c.l.b16 %v380
      %v884 = vunpack.c.l.b16 %v381
      %v885 = vunpack.c.l.b16 %v382
      %v886 = vunpack.c.l.b16 %v383
      %v887 = vunpack.c.l.b16 %v384
      %v888 = vunpack.c.l.b16 %v385
      %v889 = vunpack.c.l.b16 %v386
      %v890 = vunpack.c.l.b16 %v387
      %v891 = vunpack.c.l.b16 %v388
      %v892 = vunpack.c.l.b16 %v389
      %v893 = vunpack.c.l.b16 %v390
      %v894 = vunpack.c.l.b16 %v391
      %v895 = vunpack.c.l.b16 %v392
      %v896 = vunpack.c.l.b16 %v393
      %v897 = vunpack.c.l.b16 %v394
      %v898 = vunpack.c.l.b16 %v395
      %v899 = vunpack.c.l.b16 %v396
      %v900 = vunpack.c.l.b16 %v397
      %v901 = vunpack.c.l.b16 %v398
      %v902 = vunpack.c.l.b16 %v399
      %v903 = vunpack.c.l.b16 %v400
      %v904 = vunpack.c.l.b16 %v401
      %v905 = vunpack.c.l.b16 %v402
      %v906 = vunpack.c.l.b16 %v403
      %v907 = vunpack.c.l.b16 %v404
      %v908 = vunpack.c.l.b16 %v405
      %v909 = vunpack.c.l.b16 %v406
      %v910 = vunpack.c.l.b16 %v407
      %v911 = vunpack.c.l.b16 %v408
      %v912 = vunpack.c.l.b16 %v409
      %v913 = vunpack.c.l.b16 %v410
      %v914 = vunpack.c.l.b16 %v411
      %v915 = vunpack.c.l.b16 %v412
      %v916 = vunpack.c.l.b16 %v413
      %v917 = vunpack.c.l.b16 %v414
      %v918 = vunpack.c.l.b16 %v415
      %v919 = vunpack.c.l.b16 %v416
      %v920 = vunpack.c.l.b16 %v417
      %v921 = vunpack.c.l.b16 %v418
      %v922 = vunpack.c.l.b16 %v419
      %v923 = vunpack.c.l.b16 %v420
      %v924 = vpack.c.b16 %v817, %v816
      %v925 = vpack.c.b16 %v819, %v818
      %v926 = vpack.c.b16 %v821, %v820
      %v927 = vpack.c.b16 %v823, %v822
      %v928 = vpack.c.b16 %v825, %v824
      %v929 = vpack.c.b16 %v827, %v826
      %v930 = vpack.c.b16 %v829, %v828
      %v931 = vpack.c.b16 %v831, %v830
      %v932 = vpack.c.b16 %v833, %v832
      %v933 = vpack.c.b16 %v835, %v834
      %v934 = vpack.c.b16 %v837, %v836
      %v935 = vpack.c.b16 %v839, %v838
      %v936 = vpack.c.b16 %v841, %v840
      %v937 = vpack.c.b16 %v843, %v842
      %v938 = vpack.c.b16 %v845, %v844
      %v939 = vpack.c.b16 %v847, %v846
      %v940 = vpack.c.b16 %v849, %v848
      %v941 = vpack.c.b16 %v851, %v850
      %v942 = vpack.c.b16 %v853, %v852
      %v943 = vpack.c.b16 %v855, %v854
      %v944 = vpack.c.b16 %v857, %v856
      %v945 = vpack.c.b16 %v859, %v858
      %v946 = vpack.c.b16 %v861, %v860
      %v947 = vpack.c.b16 %v863, %v862
      %v948 = vpack.c.b16 %v865, %v864
      %v949 = vpack.c.b16 %v867, %v866
      %v950 = vpack.c.b16 %v869, %v868
      %v951 = vpack.c.b16 %v871, %v870
      %v952 = vpack.c.b16 %v873, %v872
      %v953 = vpack.c.b16 %v875, %v874
      %v954 = vpack.c.b16 %v877, %v876
      %v955 = vpack.c.b16 %v879, %v878
      %v956 = vpack.c.b16 %v881, %v880
      %v957 = vpack.c.b16 %v883, %v882
      %v958 = vpack.c.b16 %v885, %v884
      %v959 = vpack.c.b16 %v887, %v886
      %v960 = vpack.c.b16 %v889, %v888
      %v961 = vpack.c.b16 %v891, %v890
      %v962 = vpack.c.b16 %v893, %v892
      %v963 = vpack.c.b16 %v895, %v894
      %v964 = vpack.c.b16 %v897, %v896
      %v965 = vpack.c.b16 %v899, %v898
      %v966 = vpack.c.b16 %v901, %v900
      %v967 = vpack.c.b16 %v903, %v902
      %v968 = vpack.c.b16 %v905, %v904
      %v969 = vpack.c.b16 %v907, %v906
      %v970 = vpack.c.b16 %v909, %v908
      %v971 = vpack.c.b16 %v911, %v910
      %v972 = vpack.c.b16 %v913, %v912
      %v973 = vpack.c.b16 %v915, %v914
      %v974 = vpack.c.b16 %v917, %v916
      %v975 = vpack.c.b16 %v919, %v918
      %v976 = vpack.c.b16 %v921, %v920
      %v977 = vpack.c.b16 %v923, %v922
      %vm1032 = vcmask 785408
      %v1034 = vsel %vm1032, %v610, 0
      %v1037 = vsel %vm1032, %v617, 0
      %v1040 = vsel %vm1032, %v624, 0
      %v1043 = vsel %vm1032, %v631, 0
      %v1046 = vsel %vm1032, %v638, 0
      %v1049 = vsel %vm1032, %v645, 0
      %v1052 = vsel %vm1032, %v652, 0
      %v1055 = vsel %vm1032, %v659, 0
      %1057 = vmatprep.subr.bf16.mxu0 0
      %1058 = vmatpush1.bf16.msra.mxu0 %v924
      %1059 = vmatprep.subr.bf16.mxu0 0
      %1060 = vmatpush1.bf16.msra.mxu0 %v925
      %1061 = vmatprep.subr.bf16.mxu0 0
      %1062 = vmatpush1.bf16.msra.mxu0 %v926
      %1063 = vmatprep.subr.bf16.mxu0 0
      %1064 = vmatpush1.bf16.msra.mxu0 %v927
      %1065 = vmatprep.subr.bf16.mxu0 0
      %1066 = vmatpush1.bf16.msra.mxu0 %v928
      %1067 = vmatprep.subr.bf16.mxu0 0
      %1068 = vmatpush1.bf16.msra.mxu0 %v929
      %1069 = vmatprep.subr.bf16.mxu0 0
      %1070 = vmatpush1.bf16.msra.mxu0 %v930
      %1071 = vmatprep.subr.bf16.mxu0 0
      %1072 = vmatpush1.bf16.msra.mxu0 %v931
      %1073 = vmatprep.subr.bf16.mxu0 0
      %1074 = vmatpush1.bf16.msra.mxu0 %v932
      %1075 = vmatprep.subr.bf16.mxu0 0
      %1076 = vmatpush1.bf16.msra.mxu0 %v933
      %1077 = vmatprep.subr.bf16.mxu0 0
      %1078 = vmatpush1.bf16.msra.mxu0 %v934
      %1079 = vmatprep.subr.bf16.mxu0 0
      %1080 = vmatpush1.bf16.msra.mxu0 %v935
      %1081 = vmatprep.subr.bf16.mxu0 0
      %1082 = vmatpush1.bf16.msra.mxu0 %v936
      %1083 = vmatprep.subr.bf16.mxu0 0
      %1084 = vmatpush1.bf16.msra.mxu0 %v937
      %1085 = vmatprep.subr.bf16.mxu0 0
      %1086 = vmatpush1.bf16.msra.mxu0 %v938
      %1087 = vmatprep.subr.bf16.mxu0 0
      %1088 = vmatpush1.bf16.msra.mxu0 %v939
      %1089 = vmatprep.mubr.bf16.mxu0 %v605
      %1090 = vmatmul.mubr.bf16.gmra.mrb[0].mxu0 %v604
      %v1091 = vpop.f32.mrb[0].mxu0
      %v1092 = vadd.f32 %v426, %v1091
      %v1093 = vpop.f32.mrb[0].mxu0
      %v1094 = vpop.f32.mrb[0].mxu0
      %v1095 = vadd.f32 %v426, %v1094
      %v1096 = vpop.f32.mrb[0].mxu0
      %1097 = vmatprep.mubr.bf16.mxu0 %v612
      %1098 = vmatmul.mubr.bf16.gmra.mrb[0].mxu0 %v611
      %v1099 = vpop.f32.mrb[0].mxu0
      %v1100 = vadd.f32 %v426, %v1099
      %v1101 = vpop.f32.mrb[0].mxu0
      %v1102 = vpop.f32.mrb[0].mxu0
      %v1103 = vadd.f32 %v426, %v1102
      %v1104 = vpop.f32.mrb[0].mxu0
      %1105 = vmatprep.mubr.bf16.mxu0 %v619
      %1106 = vmatmul.mubr.bf16.gmra.mrb[0].mxu0 %v618
      %v1107 = vpop.f32.mrb[0].mxu0
      %v1108 = vadd.f32 %v426, %v1107
      %v1109 = vpop.f32.mrb[0].mxu0
      %v1110 = vpop.f32.mrb[0].mxu0
      %v1111 = vadd.f32 %v426, %v1110
      %v1112 = vpop.f32.mrb[0].mxu0
      %1113 = vmatprep.mubr.bf16.mxu0 %v626
      %1114 = vmatmul.mubr.bf16.gmra.mrb[0].mxu0 %v625
      %v1115 = vpop.f32.mrb[0].mxu0
      %v1116 = vadd.f32 %v426, %v1115
      %v1117 = vpop.f32.mrb[0].mxu0
      %v1118 = vpop.f32.mrb[0].mxu0
      %v1119 = vadd.f32 %v426, %v1118
      %v1120 = vpop.f32.mrb[0].mxu0
      %1121 = vmatprep.mubr.bf16.mxu0 %v633
      %1122 = vmatmul.mubr.bf16.gmra.mrb[0].mxu0 %v632
      %v1123 = vpop.f32.mrb[0].mxu0
      %v1124 = vadd.f32 %v426, %v1123
      %v1125 = vpop.f32.mrb[0].mxu0
      %v1126 = vpop.f32.mrb[0].mxu0
      %v1127 = vadd.f32 %v426, %v1126
      %v1128 = vpop.f32.mrb[0].mxu0
      %1129 = vmatprep.mubr.bf16.mxu0 %v640
      %1130 = vmatmul.mubr.bf16.gmra.mrb[0].mxu0 %v639
      %v1131 = vpop.f32.mrb[0].mxu0
      %v1132 = vadd.f32 %v426, %v1131
      %v1133 = vpop.f32.mrb[0].mxu0
      %v1134 = vpop.f32.mrb[0].mxu0
      %v1135 = vadd.f32 %v426, %v1134
      %v1136 = vpop.f32.mrb[0].mxu0
      %1137 = vmatprep.mubr.bf16.mxu0 %v647
      %1138 = vmatmul.mubr.bf16.gmra.mrb[0].mxu0 %v646
      %v1139 = vpop.f32.mrb[0].mxu0
      %v1140 = vadd.f32 %v426, %v1139
      %v1141 = vpop.f32.mrb[0].mxu0
      %v1142 = vpop.f32.mrb[0].mxu0
      %v1143 = vadd.f32 %v426, %v1142
      %v1144 = vpop.f32.mrb[0].mxu0
      %1145 = vmatprep.mubr.bf16.mxu0 %v654
      %1146 = vmatmul.mubr.bf16.gmra.mrb[0].mxu0 %v653
      %v1147 = vpop.f32.mrb[0].mxu0
      %v1148 = vadd.f32 %v426, %v1147
      %v1149 = vpop.f32.mrb[0].mxu0
      %v1150 = vpop.f32.mrb[0].mxu0
      %v1151 = vadd.f32 %v426, %v1150
      %v1152 = vpop.f32.mrb[0].mxu0
      %1153 = vdwg.mxu0
      %1154 = vmatprep.subr.bf16.mxu0 0
      %1155 = vmatpush1.bf16.msra.mxu0 %v940
      %1156 = vmatprep.subr.bf16.mxu0 0
      %1157 = vmatpush1.bf16.msra.mxu0 %v941
      %1158 = vmatprep.subr.bf16.mxu0 0
      %1159 = vmatpush1.bf16.msra.mxu0 %v942
      %1160 = vmatprep.subr.bf16.mxu0 0
      %1161 = vmatpush1.bf16.msra.mxu0 %v943
      %1162 = vmatprep.subr.bf16.mxu0 0
      %1163 = vmatpush1.bf16.msra.mxu0 %v944
      %1164 = vmatprep.subr.bf16.mxu0 0
      %1165 = vmatpush1.bf16.msra.mxu0 %v945
      %1166 = vmatprep.subr.bf16.mxu0 0
      %1167 = vmatpush1.bf16.msra.mxu0 %v946
      %1168 = vmatprep.subr.bf16.mxu0 0
      %1169 = vmatpush1.bf16.msra.mxu0 %v947
      %1170 = vmatprep.subr.bf16.mxu0 0
      %1171 = vmatpush1.bf16.msra.mxu0 %v948
      %1172 = vmatprep.subr.bf16.mxu0 0
      %1173 = vmatpush1.bf16.msra.mxu0 %v949
      %1174 = vmatprep.subr.bf16.mxu0 0
      %1175 = vmatpush1.bf16.msra.mxu0 %v950
      %1176 = vmatprep.subr.bf16.mxu0 0
      %1177 = vmatpush1.bf16.msra.mxu0 %v951
      %1178 = vmatprep.subr.bf16.mxu0 0
      %1179 = vmatpush1.bf16.msra.mxu0 %v952
      %1180 = vmatprep.subr.bf16.mxu0 0
      %1181 = vmatpush1.bf16.msra.mxu0 %v953
      %1182 = vmatprep.subr.bf16.mxu0 0
      %1183 = vmatpush1.bf16.msra.mxu0 %v954
      %1184 = vmatprep.subr.bf16.mxu0 0
      %1185 = vmatpush1.bf16.msra.mxu0 %v955
      %1186 = vmatprep.mubr.bf16.mxu0 %v607
      %1187 = vmatmul.mubr.bf16.gmra.mrb[0].mxu0 %v606
      %v1188 = vpop.f32.mrb[0].mxu0
      %v1189 = vadd.f32 %v1092, %v1188
      %v1190 = vpop.f32.mrb[0].mxu0
      %v1191 = vpop.f32.mrb[0].mxu0
      %v1192 = vadd.f32 %v1095, %v1191
      %v1193 = vpop.f32.mrb[0].mxu0
      %1194 = vmatprep.mubr.bf16.mxu0 %v614
      %1195 = vmatmul.mubr.bf16.gmra.mrb[0].mxu0 %v613
      %v1196 = vpop.f32.mrb[0].mxu0
      %v1197 = vadd.f32 %v1100, %v1196
      %v1198 = vpop.f32.mrb[0].mxu0
      %v1199 = vpop.f32.mrb[0].mxu0
      %v1200 = vadd.f32 %v1103, %v1199
      %v1201 = vpop.f32.mrb[0].mxu0
      %1202 = vmatprep.mubr.bf16.mxu0 %v621
      %1203 = vmatmul.mubr.bf16.gmra.mrb[0].mxu0 %v620
      %v1204 = vpop.f32.mrb[0].mxu0
      %v1205 = vadd.f32 %v1108, %v1204
      %v1206 = vpop.f32.mrb[0].mxu0
      %v1207 = vpop.f32.mrb[0].mxu0
      %v1208 = vadd.f32 %v1111, %v1207
      %v1209 = vpop.f32.mrb[0].mxu0
      %1210 = vmatprep.mubr.bf16.mxu0 %v628
      %1211 = vmatmul.mubr.bf16.gmra.mrb[0].mxu0 %v627
      %v1212 = vpop.f32.mrb[0].mxu0
      %v1213 = vadd.f32 %v1116, %v1212
      %v1214 = vpop.f32.mrb[0].mxu0
      %v1215 = vpop.f32.mrb[0].mxu0
      %v1216 = vadd.f32 %v1119, %v1215
      %v1217 = vpop.f32.mrb[0].mxu0
      %1218 = vmatprep.mubr.bf16.mxu0 %v635
      %1219 = vmatmul.mubr.bf16.gmra.mrb[0].mxu0 %v634
      %v1220 = vpop.f32.mrb[0].mxu0
      %v1221 = vadd.f32 %v1124, %v1220
      %v1222 = vpop.f32.mrb[0].mxu0
      %v1223 = vpop.f32.mrb[0].mxu0
      %v1224 = vadd.f32 %v1127, %v1223
      %v1225 = vpop.f32.mrb[0].mxu0
      %1226 = vmatprep.mubr.bf16.mxu0 %v642
      %1227 = vmatmul.mubr.bf16.gmra.mrb[0].mxu0 %v641
      %v1228 = vpop.f32.mrb[0].mxu0
      %v1229 = vadd.f32 %v1132, %v1228
      %v1230 = vpop.f32.mrb[0].mxu0
      %v1231 = vpop.f32.mrb[0].mxu0
      %v1232 = vadd.f32 %v1135, %v1231
      %v1233 = vpop.f32.mrb[0].mxu0
      %1234 = vmatprep.mubr.bf16.mxu0 %v649
      %1235 = vmatmul.mubr.bf16.gmra.mrb[0].mxu0 %v648
      %v1236 = vpop.f32.mrb[0].mxu0
      %v1237 = vadd.f32 %v1140, %v1236
      %v1238 = vpop.f32.mrb[0].mxu0
      %v1239 = vpop.f32.mrb[0].mxu0
      %v1240 = vadd.f32 %v1143, %v1239
      %v1241 = vpop.f32.mrb[0].mxu0
      %1242 = vmatprep.mubr.bf16.mxu0 %v656
      %1243 = vmatmul.mubr.bf16.gmra.mrb[0].mxu0 %v655
      %v1244 = vpop.f32.mrb[0].mxu0
      %v1245 = vadd.f32 %v1148, %v1244
      %v1246 = vpop.f32.mrb[0].mxu0
      %v1247 = vpop.f32.mrb[0].mxu0
      %v1248 = vadd.f32 %v1151, %v1247
      %v1249 = vpop.f32.mrb[0].mxu0
      %1250 = vdwg.mxu0
      %1251 = vmatprep.subr.bf16.mxu0 0
      %1252 = vmatpush1.bf16.msra.mxu0 %v956
      %1253 = vmatprep.subr.bf16.mxu0 0
      %1254 = vmatpush1.bf16.msra.mxu0 %v957
      %1255 = vmatprep.subr.bf16.mxu0 0
      %1256 = vmatpush1.bf16.msra.mxu0 %v958
      %1257 = vmatprep.subr.bf16.mxu0 0
      %1258 = vmatpush1.bf16.msra.mxu0 %v959
      %1259 = vmatprep.subr.bf16.mxu0 0
      %1260 = vmatpush1.bf16.msra.mxu0 %v960
      %1261 = vmatprep.subr.bf16.mxu0 0
      %1262 = vmatpush1.bf16.msra.mxu0 %v961
      %1263 = vmatprep.subr.bf16.mxu0 0
      %1264 = vmatpush1.bf16.msra.mxu0 %v962
      %1265 = vmatprep.subr.bf16.mxu0 0
      %1266 = vmatpush1.bf16.msra.mxu0 %v963
      %1267 = vmatprep.subr.bf16.mxu0 0
      %1268 = vmatpush1.bf16.msra.mxu0 %v964
      %1269 = vmatprep.subr.bf16.mxu0 0
      %1270 = vmatpush1.bf16.msra.mxu0 %v965
      %1271 = vmatprep.subr.bf16.mxu0 0
      %1272 = vmatpush1.bf16.msra.mxu0 %v966
      %1273 = vmatprep.subr.bf16.mxu0 0
      %1274 = vmatpush1.bf16.msra.mxu0 %v967
      %1275 = vmatprep.subr.bf16.mxu0 0
      %1276 = vmatpush1.bf16.msra.mxu0 %v968
      %1277 = vmatprep.subr.bf16.mxu0 0
      %1278 = vmatpush1.bf16.msra.mxu0 %v969
      %1279 = vmatprep.subr.bf16.mxu0 0
      %1280 = vmatpush1.bf16.msra.mxu0 %v970
      %1281 = vmatprep.subr.bf16.mxu0 0
      %1282 = vmatpush1.bf16.msra.mxu0 %v971
      %1283 = vmatprep.mubr.bf16.mxu0 %v609
      %1284 = vmatmul.mubr.bf16.gmra.mrb[0].mxu0 %v608
      %v1285 = vpop.f32.mrb[0].mxu0
      %v1286 = vadd.f32 %v1189, %v1285
      %v1287 = vpop.f32.mrb[0].mxu0
      %v1288 = vpop.f32.mrb[0].mxu0
      %v1289 = vadd.f32 %v1192, %v1288
      %v1290 = vpop.f32.mrb[0].mxu0
      %1291 = vmatprep.mubr.bf16.mxu0 %v616
      %1292 = vmatmul.mubr.bf16.gmra.mrb[0].mxu0 %v615
      %v1293 = vpop.f32.mrb[0].mxu0
      %v1294 = vadd.f32 %v1197, %v1293
      %v1295 = vpop.f32.mrb[0].mxu0
      %v1296 = vpop.f32.mrb[0].mxu0
      %v1297 = vadd.f32 %v1200, %v1296
      %v1298 = vpop.f32.mrb[0].mxu0
      %1299 = vmatprep.mubr.bf16.mxu0 %v623
      %1300 = vmatmul.mubr.bf16.gmra.mrb[0].mxu0 %v622
      %v1301 = vpop.f32.mrb[0].mxu0
      %v1302 = vadd.f32 %v1205, %v1301
      %v1303 = vpop.f32.mrb[0].mxu0
      %v1304 = vpop.f32.mrb[0].mxu0
      %v1305 = vadd.f32 %v1208, %v1304
      %v1306 = vpop.f32.mrb[0].mxu0
      %1307 = vmatprep.mubr.bf16.mxu0 %v630
      %1308 = vmatmul.mubr.bf16.gmra.mrb[0].mxu0 %v629
      %v1309 = vpop.f32.mrb[0].mxu0
      %v1310 = vadd.f32 %v1213, %v1309
      %v1311 = vpop.f32.mrb[0].mxu0
      %v1312 = vpop.f32.mrb[0].mxu0
      %v1313 = vadd.f32 %v1216, %v1312
      %v1314 = vpop.f32.mrb[0].mxu0
      %1315 = vmatprep.mubr.bf16.mxu0 %v637
      %1316 = vmatmul.mubr.bf16.gmra.mrb[0].mxu0 %v636
      %v1317 = vpop.f32.mrb[0].mxu0
      %v1318 = vadd.f32 %v1221, %v1317
      %v1319 = vpop.f32.mrb[0].mxu0
      %v1320 = vpop.f32.mrb[0].mxu0
      %v1321 = vadd.f32 %v1224, %v1320
      %v1322 = vpop.f32.mrb[0].mxu0
      %1323 = vmatprep.mubr.bf16.mxu0 %v644
      %1324 = vmatmul.mubr.bf16.gmra.mrb[0].mxu0 %v643
      %v1325 = vpop.f32.mrb[0].mxu0
      %v1326 = vadd.f32 %v1229, %v1325
      %v1327 = vpop.f32.mrb[0].mxu0
      %v1328 = vpop.f32.mrb[0].mxu0
      %v1329 = vadd.f32 %v1232, %v1328
      %v1330 = vpop.f32.mrb[0].mxu0
      %1331 = vmatprep.mubr.bf16.mxu0 %v651
      %1332 = vmatmul.mubr.bf16.gmra.mrb[0].mxu0 %v650
      %v1333 = vpop.f32.mrb[0].mxu0
      %v1334 = vadd.f32 %v1237, %v1333
      %v1335 = vpop.f32.mrb[0].mxu0
      %v1336 = vpop.f32.mrb[0].mxu0
      %v1337 = vadd.f32 %v1240, %v1336
      %v1338 = vpop.f32.mrb[0].mxu0
      %1339 = vmatprep.mubr.bf16.mxu0 %v658
      %1340 = vmatmul.mubr.bf16.gmra.mrb[0].mxu0 %v657
      %v1341 = vpop.f32.mrb[0].mxu0
      %v1342 = vadd.f32 %v1245, %v1341
      %v1343 = vpop.f32.mrb[0].mxu0
      %v1344 = vpop.f32.mrb[0].mxu0
      %v1345 = vadd.f32 %v1248, %v1344
      %v1346 = vpop.f32.mrb[0].mxu0
      %1347 = vdwg.mxu0
      %1348 = vmatprep.subr.bf16.mxu0 0
      %1349 = vmatpush1.bf16.msra.mxu0 %v972
      %1350 = vmatprep.subr.bf16.mxu0 0
      %1351 = vmatpush1.bf16.msra.mxu0 %v973
      %1352 = vmatprep.subr.bf16.mxu0 0
      %1353 = vmatpush1.bf16.msra.mxu0 %v974
      %1354 = vmatprep.subr.bf16.mxu0 0
      %1355 = vmatpush1.bf16.msra.mxu0 %v975
      %1356 = vmatprep.subr.bf16.mxu0 0
      %1357 = vmatpush1.bf16.msra.mxu0 %v976
      %1358 = vmatprep.subr.bf16.mxu0 0
      %1359 = vmatpush1.bf16.msra.mxu0 %v977
      %1360 = vmatprep.subr.bf16.mxu0 0
      %1361 = vmatpush1.bf16.msra.mxu0 0
      %1362 = vmatprep.subr.bf16.mxu0 0
      %1363 = vmatpush1.bf16.msra.mxu0 0
      %1364 = vmatprep.subr.bf16.mxu0 0
      %1365 = vmatpush1.bf16.msra.mxu0 0
      %1366 = vmatprep.subr.bf16.mxu0 0
      %1367 = vmatpush1.bf16.msra.mxu0 0
      %1368 = vmatprep.subr.bf16.mxu0 0
      %1369 = vmatpush1.bf16.msra.mxu0 0
      %1370 = vmatprep.subr.bf16.mxu0 0
      %1371 = vmatpush1.bf16.msra.mxu0 0
      %1372 = vmatprep.subr.bf16.mxu0 0
      %1373 = vmatpush1.bf16.msra.mxu0 0
      %1374 = vmatprep.subr.bf16.mxu0 0
      %1375 = vmatpush1.bf16.msra.mxu0 0
      %1376 = vmatprep.subr.bf16.mxu0 0
      %1377 = vmatpush1.bf16.msra.mxu0 0
      %1378 = vmatprep.subr.bf16.mxu0 0
      %1379 = vmatpush1.bf16.msra.mxu0 0
      %1380 = vmatprep.mubr.bf16.mxu0 0
      %1381 = vmatmul.mubr.bf16.gmra.mrb[0].mxu0 %v1034
      %v1382 = vpop.f32.mrb[0].mxu0
      %v1383 = vadd.f32 %v1286, %v1382
      %v1384 = vpop.f32.mrb[0].mxu0
      %v1385 = vpop.f32.mrb[0].mxu0
      %v1386 = vadd.f32 %v1289, %v1385
      %v1387 = vpop.f32.mrb[0].mxu0
      %1388 = vmatprep.mubr.bf16.mxu0 0
      %1389 = vmatmul.mubr.bf16.gmra.mrb[0].mxu0 %v1037
      %v1390 = vpop.f32.mrb[0].mxu0
      %v1391 = vadd.f32 %v1294, %v1390
      %v1392 = vpop.f32.mrb[0].mxu0
      %v1393 = vpop.f32.mrb[0].mxu0
      %v1394 = vadd.f32 %v1297, %v1393
      %v1395 = vpop.f32.mrb[0].mxu0
      %1396 = vmatprep.mubr.bf16.mxu0 0
      %1397 = vmatmul.mubr.bf16.gmra.mrb[0].mxu0 %v1040
      %v1398 = vpop.f32.mrb[0].mxu0
      %v1399 = vadd.f32 %v1302, %v1398
      %v1400 = vpop.f32.mrb[0].mxu0
      %v1401 = vpop.f32.mrb[0].mxu0
      %v1402 = vadd.f32 %v1305, %v1401
      %v1403 = vpop.f32.mrb[0].mxu0
      %1404 = vmatprep.mubr.bf16.mxu0 0
      %1405 = vmatmul.mubr.bf16.gmra.mrb[0].mxu0 %v1043
      %v1406 = vpop.f32.mrb[0].mxu0
      %v1407 = vadd.f32 %v1310, %v1406
      %v1408 = vpop.f32.mrb[0].mxu0
      %v1409 = vpop.f32.mrb[0].mxu0
      %v1410 = vadd.f32 %v1313, %v1409
      %v1411 = vpop.f32.mrb[0].mxu0
      %1412 = vmatprep.mubr.bf16.mxu0 0
      %1413 = vmatmul.mubr.bf16.gmra.mrb[0].mxu0 %v1046
      %v1414 = vpop.f32.mrb[0].mxu0
      %v1415 = vadd.f32 %v1318, %v1414
      %v1416 = vpop.f32.mrb[0].mxu0
      %v1417 = vpop.f32.mrb[0].mxu0
      %v1418 = vadd.f32 %v1321, %v1417
      %v1419 = vpop.f32.mrb[0].mxu0
      %1420 = vmatprep.mubr.bf16.mxu0 0
      %1421 = vmatmul.mubr.bf16.gmra.mrb[0].mxu0 %v1049
      %v1422 = vpop.f32.mrb[0].mxu0
      %v1423 = vadd.f32 %v1326, %v1422
      %v1424 = vpop.f32.mrb[0].mxu0
      %v1425 = vpop.f32.mrb[0].mxu0
      %v1426 = vadd.f32 %v1329, %v1425
      %v1427 = vpop.f32.mrb[0].mxu0
      %1428 = vmatprep.mubr.bf16.mxu0 0
      %1429 = vmatmul.mubr.bf16.gmra.mrb[0].mxu0 %v1052
      %v1430 = vpop.f32.mrb[0].mxu0
      %v1431 = vadd.f32 %v1334, %v1430
      %v1432 = vpop.f32.mrb[0].mxu0
      %v1433 = vpop.f32.mrb[0].mxu0
      %v1434 = vadd.f32 %v1337, %v1433
      %v1435 = vpop.f32.mrb[0].mxu0
      %1436 = vmatprep.mubr.bf16.mxu0 0
      %1437 = vmatmul.mubr.bf16.gmra.mrb[0].mxu0 %v1055
      %v1438 = vpop.f32.mrb[0].mxu0
      %v1439 = vadd.f32 %v1342, %v1438
      %v1440 = vpop.f32.mrb[0].mxu0
      %v1441 = vpop.f32.mrb[0].mxu0
      %v1442 = vadd.f32 %v1345, %v1441
      %v1443 = vpop.f32.mrb[0].mxu0
      %1444 = vdwg.mxu0
      %v1445 = vpack.c.bf16 %v1386, %v1383
      %v1446 = vpack.c.bf16 %v1394, %v1391
      %v1447 = vpack.c.bf16 %v1402, %v1399
      %v1448 = vpack.c.bf16 %v1410, %v1407
      %v1449 = vpack.c.bf16 %v1418, %v1415
      %v1450 = vpack.c.bf16 %v1426, %v1423
      %v1451 = vpack.c.bf16 %v1434, %v1431
      %v1452 = vpack.c.bf16 %v1442, %v1439
      %v1461 = vunpack.c.l.b16 %v1445
      %v1462 = vunpack.c.h.b16 %v1445
      %v1463 = vunpack.c.l.b16 %v1446
      %v1464 = vunpack.c.h.b16 %v1446
      %v1465 = vunpack.c.l.b16 %v1447
      %v1466 = vunpack.c.h.b16 %v1447
      %v1467 = vunpack.c.l.b16 %v1448
      %v1468 = vunpack.c.h.b16 %v1448
      %v1469 = vunpack.c.l.b16 %v1449
      %v1470 = vunpack.c.h.b16 %v1449
      %v1471 = vunpack.c.l.b16 %v1450
      %v1472 = vunpack.c.h.b16 %v1450
      %v1473 = vunpack.c.l.b16 %v1451
      %v1474 = vunpack.c.h.b16 %v1451
      %v1475 = vunpack.c.l.b16 %v1452
      %v1476 = vunpack.c.h.b16 %v1452
      %v1477 = vpack.c.b16 %v1461, %v1461
      %v1478 = vpack.c.b16 %v1462, %v1462
      %v1479 = vpack.c.b16 %v1463, %v1463
      %v1480 = vpack.c.b16 %v1464, %v1464
      %v1481 = vpack.c.b16 %v1465, %v1465
      %v1482 = vpack.c.b16 %v1466, %v1466
      %v1483 = vpack.c.b16 %v1467, %v1467
      %v1484 = vpack.c.b16 %v1468, %v1468
      %v1485 = vpack.c.b16 %v1469, %v1469
      %v1486 = vpack.c.b16 %v1470, %v1470
      %v1487 = vpack.c.b16 %v1471, %v1471
      %v1488 = vpack.c.b16 %v1472, %v1472
      %v1489 = vpack.c.b16 %v1473, %v1473
      %v1490 = vpack.c.b16 %v1474, %v1474
      %v1491 = vpack.c.b16 %v1475, %v1475
      %v1492 = vpack.c.b16 %v1476, %v1476
      %1509 = vst [vmem:[%s240] sm:$0xf] %v1477
      %1510 = vst [vmem:[%s240 + $0x4] sm:$0xf] %v1478
      %1511 = vst [vmem:[%s240 + $0x8] sm:$0xf] %v1479
      %1512 = vst [vmem:[%s240 + $0xc] sm:$0xf] %v1480
      %1513 = vst [vmem:[%s240 + $0x10] sm:$0xf] %v1481
      %1514 = vst [vmem:[%s240 + $0x14] sm:$0xf] %v1482
      %1515 = vst [vmem:[%s240 + $0x18] sm:$0xf] %v1483
      %1516 = vst [vmem:[%s240 + $0x1c] sm:$0xf] %v1484
      %1517 = vst [vmem:[%s240 + $0x20] sm:$0xf] %v1485
      %1518 = vst [vmem:[%s240 + $0x24] sm:$0xf] %v1486
      %1519 = vst [vmem:[%s240 + $0x28] sm:$0xf] %v1487
      %1520 = vst [vmem:[%s240 + $0x2c] sm:$0xf] %v1488
      %1521 = vst [vmem:[%s240 + $0x30] sm:$0xf] %v1489
      %1522 = vst [vmem:[%s240 + $0x34] sm:$0xf] %v1490
      %1523 = vst [vmem:[%s240 + $0x38] sm:$0xf] %v1491
      %1524 = vst [vmem:[%s240 + $0x3c] sm:$0xf] %v1492
      %v1525 = vadd.f32 %v1383, %v1386
      %v1526 = vadd.f32 %v1525, %v1391
      %v1527 = vadd.f32 %v1526, %v1394
      %v1528 = vadd.f32 %v1527, %v1399
      %v1529 = vadd.f32 %v1528, %v1402
      %v1530 = vadd.f32 %v1529, %v1407
      %v1531 = vadd.f32 %v1530, %v1410
      %v1532 = vadd.f32 %v1531, %v1415
      %v1533 = vadd.f32 %v1532, %v1418
      %v1534 = vadd.f32 %v1533, %v1423
      %v1535 = vadd.f32 %v1534, %v1426
      %v1536 = vadd.f32 %v1535, %v1431
      %v1537 = vadd.f32 %v1536, %v1434
      %v1538 = vadd.f32 %v1537, %v1439
      %v1539 = vadd.f32 %v1538, %v1442
      %v1540 = vrot.slane %v1539, 4
      %v1541 = vadd.f32 %v1539, %v1540
      %v1542 = vrot.slane %v1541, 2
      %v1543 = vadd.f32 %v1541, %v1542
      %v1544 = vrot.slane %v1543, 1
      %v1545 = vadd.f32 %v1543, %v1544
      %1546 = vst [vmem:[%s244] sm:$0x1] %v1545
      %v1547 = vmul.f32 %v1383, %v1383
      %v1548 = vmul.f32 %v1386, %v1386
      %v1549 = vmul.f32 %v1391, %v1391
      %v1550 = vmul.f32 %v1394, %v1394
      %v1551 = vmul.f32 %v1399, %v1399
      %v1552 = vmul.f32 %v1402, %v1402
      %v1553 = vmul.f32 %v1407, %v1407
      %v1554 = vmul.f32 %v1410, %v1410
      %v1555 = vmul.f32 %v1415, %v1415
      %v1556 = vmul.f32 %v1418, %v1418
      %v1557 = vmul.f32 %v1423, %v1423
      %v1558 = vmul.f32 %v1426, %v1426
      %v1559 = vmul.f32 %v1431, %v1431
      %v1560 = vmul.f32 %v1434, %v1434
      %v1561 = vmul.f32 %v1439, %v1439
      %v1562 = vmul.f32 %v1442, %v1442
      %v1563 = vadd.f32 %v1547, %v1548
      %v1564 = vadd.f32 %v1563, %v1549
      %v1565 = vadd.f32 %v1564, %v1550
      %v1566 = vadd.f32 %v1565, %v1551
      %v1567 = vadd.f32 %v1566, %v1552
      %v1568 = vadd.f32 %v1567, %v1553
      %v1569 = vadd.f32 %v1568, %v1554
      %v1570 = vadd.f32 %v1569, %v1555
      %v1571 = vadd.f32 %v1570, %v1556
      %v1572 = vadd.f32 %v1571, %v1557
      %v1573 = vadd.f32 %v1572, %v1558
      %v1574 = vadd.f32 %v1573, %v1559
      %v1575 = vadd.f32 %v1574, %v1560
      %v1576 = vadd.f32 %v1575, %v1561
      %v1577 = vadd.f32 %v1576, %v1562
      %v1578 = vrot.slane %v1577, 4
      %v1579 = vadd.f32 %v1577, %v1578
      %v1580 = vrot.slane %v1579, 2
      %v1581 = vadd.f32 %v1579, %v1580
      %v1582 = vrot.slane %v1581, 1
      %v1583 = vadd.f32 %v1581, %v1582
      %1584 = vst [vmem:[%s247] sm:$0x1] %v1583
      %s1585 = smul.u32 16, %s17
      %p1586 = scmp.lt.s32.totalorder %s1585, 127
      %s1587 = scalar_select %p1586, %s1585, 127
      %s1588 = smul.addr %s1587, 4
      %s1589 = scalar_lea.vmem %s3, %s1588
      %p1590 = scmp.lt.s32.totalorder %s17, 7
      %s1591 = scalar_select %p1590, %s17, 7
      %s1592 = scalar_lea.vmem %s4, %s1591
      %p1593 = scmp.lt.s32.totalorder %s17, 7
      %s1594 = scalar_select %p1593, %s17, 7
      %s1595 = scalar_lea.vmem %s5, %s1594
      // Predicated region
      $region33: #{conv_block_3d_forward.4} parent=31 // pred_check
        %p1596 = pneg %p103
      $region34: #{conv_block_3d_forward.4} parent=31 // pred_check_branch
        %1598 = sbr.rel (%p1596) target = $region36
      $region35: #{conv_block_3d_forward.4} parent=31 // pred_region
        %s1599 = smul.u32 16, %s17
      $region36: #{conv_block_3d_forward.4} parent=31 // pred_fallthru
        _
      // Predicated region
      $region37: #{conv_block_3d_forward.4} parent=31 // pred_check
        %p1600 = pneg %p129
      $region38: #{conv_block_3d_forward.4} parent=31 // pred_check_branch
        %1602 = sbr.rel (%p1600) target = $region40
      $region39: #{conv_block_3d_forward.4} parent=31 // pred_region
        _
      $region40: #{conv_block_3d_forward.4} parent=31 // pred_fallthru
        _
      // Predicated region
      $region41: #{conv_block_3d_forward.4} parent=31 // pred_check
        %p1603 = pneg %p155
      $region42: #{conv_block_3d_forward.4} parent=31 // pred_check_branch
        %1605 = sbr.rel (%p1603) target = $region44
      $region43: #{conv_block_3d_forward.4} parent=31 // pred_region
        _
      $region44: #{conv_block_3d_forward.4} parent=31 // pred_fallthru
        _
    $region32: #{conv_block_3d_forward.4} parent=5 // pred_fallthru
      _
    %p1606 = scmp.le.s32.totalorder 2, %s12
    // Predicated region
    $region45: #{conv_block_3d_forward.4} parent=5 // pred_check
      %p1607 = pneg %p1606
    $region46: #{conv_block_3d_forward.4} parent=5 // pred_check_branch
      %1609 = sbr.rel (%p1607) target = $region48
    $region47: #{conv_block_3d_forward.4} parent=5 // pred_region
      %s1610 = ssub.s32 %s12, 2
      // Predicated region
      $region49: #{conv_block_3d_forward.4} parent=47 // pred_check
        %p1611 = pneg %p109
      $region50: #{conv_block_3d_forward.4} parent=47 // pred_check_branch
        %1613 = sbr.rel (%p1611) target = $region52
      $region51: #{conv_block_3d_forward.4} parent=47 // pred_region
        %s1614 = smul.u32 16, %s18
        %p1615 = scmp.lt.s32.totalorder %s1614, 127
        %s1616 = scalar_select %p1615, %s1614, 127
        %s1617 = smul.addr %s1616, 4
        %s1618 = scalar_lea.vmem %s3, %s1617
      $region52: #{conv_block_3d_forward.4} parent=47 // pred_fallthru
        _
      // Predicated region
      $region53: #{conv_block_3d_forward.4} parent=47 // pred_check
        %p1619 = pneg %p135
      $region54: #{conv_block_3d_forward.4} parent=47 // pred_check_branch
        %1621 = sbr.rel (%p1619) target = $region56
      $region55: #{conv_block_3d_forward.4} parent=47 // pred_region
        %p1622 = scmp.lt.s32.totalorder %s18, 7
        %s1623 = scalar_select %p1622, %s18, 7
        %s1624 = scalar_lea.vmem %s4, %s1623
      $region56: #{conv_block_3d_forward.4} parent=47 // pred_fallthru
        _
      // Predicated region
      $region57: #{conv_block_3d_forward.4} parent=47 // pred_check
        %p1625 = pneg %p161
      $region58: #{conv_block_3d_forward.4} parent=47 // pred_check_branch
        %1627 = sbr.rel (%p1625) target = $region60
      $region59: #{conv_block_3d_forward.4} parent=47 // pred_region
        %p1628 = scmp.lt.s32.totalorder %s18, 7
        %s1629 = scalar_select %p1628, %s18, 7
        %s1630 = scalar_lea.vmem %s5, %s1629
      $region60: #{conv_block_3d_forward.4} parent=47 // pred_fallthru
        _
    $region48: #{conv_block_3d_forward.4} parent=5 // pred_fallthru
      _
  $region6: #{conv_block_3d_forward.4} parent=0 // loop_footer
    %s16 = sadd.s32 1, %s12
  $region7: #{conv_block_3d_forward.4} parent=0 // loop_footer_branch
    %11 = sbr.rel target = $region3
  $region8: #{conv_block_3d_forward.4} parent=0 // loop_exit
    _

// kernel: conv_block_3d_forward.6
$region0: #{conv_block_3d_forward.6}
  #allocation0 [shape = 'u32[]', space=smem, size = 0x4, offset = 0x4, fixed_abs, tag = 'smem constant byte address 0x4 - core index']
  #allocation1 [shape = 'u32[144,128]{1,0:T(1,128)}', space=vmem, size = 0x12000, scoped, tag = 'internal scratch']
  %s0 = inlined_call_operand.vmem [shape: bf16[1024,3456], index: 0, kind: input, shape index: {}]
  %s1 = inlined_call_operand.vmem [shape: bf16[3456,128], index: 1, kind: input, shape index: {}]
  %s2 = inlined_call_operand.vmem [shape: f32[1,128], index: 2, kind: input, shape index: {}]
  %s3 = inlined_call_operand.vmem [shape: bf16[1024,128], index: 3, kind: output, shape index: {0}]
  %s4 = inlined_call_operand.vmem [shape: f32[8,1,128], index: 4, kind: output, shape index: {1}]
  %s5 = inlined_call_operand.vmem [shape: f32[8,1,128], index: 5, kind: output, shape index: {2}]
  %6 = xla_tuple %s3, %s4, %s5
  %s7 = sld [smem:[#allocation0]]
  $region61: #{conv_block_3d_forward.6} parent=0
    _
  %s9 = ssub.s32 1, %s7
  %s10 = scalar_select 0, %s9, %s7
  loop: start=0, step=1, limit=10
  $region2: #{conv_block_3d_forward.6} parent=0 // loop_pre_header
    _
  $region3: #{conv_block_3d_forward.6} parent=0 // loop_header
    %s12 = sphi 0, %s16
    %p13 = scmp.ge.s32.totalorder %s12, 10
    %s22 = sphi 0, %s24
    %s25 = sphi 0, %s22
    %s26 = sphi 0, %s25
    %s42 = sphi 0, %s26
    %s46 = sphi 0, %s46
    %s48 = sphi 0, %s46
    %s49 = sphi 0, %s48
    %s63 = sphi 0, %s49
    %s67 = sphi 0, %s67
    %s69 = sphi 0, %s67
    %s70 = sphi 0, %s69
    %s84 = sphi 0, %s70
    %s90 = sphi 0, %s92
    %s93 = sphi 0, %s90
    %s94 = sphi 0, %s93
    %s110 = sphi 0, %s94
    %s116 = sphi 0, %s118
    %s119 = sphi 0, %s116
    %s120 = sphi 0, %s119
    %s136 = sphi 0, %s120
    %s142 = sphi 0, %s144
    %s145 = sphi 0, %s142
    %s146 = sphi 0, %s145
    %s162 = sphi 0, %s146
  $region4: #{conv_block_3d_forward.6} parent=0 // loop_header_branch
    %15 = sbr.rel (%p13) target = $region8
  $region5: #{conv_block_3d_forward.6} parent=0 // loop_body
    %s17 = ssub.s32 %s12, 1
    %s18 = ssub.s32 %s12, 2
    %s19 = sadd.s32 %s12, 1
    %s20 = ssub.s32 %s12, %s19
    %p21 = scmp.eq.s32.totalorder %s20, 0
    %s23 = sadd.s32 %s22, 1
    %s24 = scalar_select %p21, %s22, %s23
    %p27 = pneg %p21
    %p28 = scmp.eq.s32.totalorder %s12, 7
    %p29 = por %p27, %p28
    %p30 = scmp.ne.s32.totalorder %s22, %s25
    %p31 = scmp.eq.s32.totalorder %s12, 0
    %p32 = por %p30, %p31
    %p33 = scmp.ne.s32.totalorder %s22, %s25
    %p34 = scmp.eq.s32.totalorder %s17, 7
    %p35 = por %p33, %p34
    %p36 = scmp.ne.s32.totalorder %s25, %s26
    %p37 = scmp.eq.s32.totalorder %s17, 0
    %p38 = por %p36, %p37
    %p39 = scmp.ne.s32.totalorder %s25, %s26
    %p40 = scmp.eq.s32.totalorder %s18, 7
    %p41 = por %p39, %p40
    %p43 = scmp.ne.s32.totalorder %s26, %s42
    %p44 = scmp.eq.s32.totalorder %s18, 0
    %p45 = por %p43, %p44
    %s47 = sadd.s32 %s46, 1
    %p50 = scmp.eq.s32.totalorder %s12, 7
    %p51 = scmp.ne.s32.totalorder %s46, %s48
    %p52 = scmp.eq.s32.totalorder %s12, 0
    %p53 = por %p51, %p52
    %p54 = scmp.ne.s32.totalorder %s46, %s48
    %p55 = scmp.eq.s32.totalorder %s17, 7
    %p56 = por %p54, %p55
    %p57 = scmp.ne.s32.totalorder %s48, %s49
    %p58 = scmp.eq.s32.totalorder %s17, 0
    %p59 = por %p57, %p58
    %p60 = scmp.ne.s32.totalorder %s48, %s49
    %p61 = scmp.eq.s32.totalorder %s18, 7
    %p62 = por %p60, %p61
    %p64 = scmp.ne.s32.totalorder %s49, %s63
    %p65 = scmp.eq.s32.totalorder %s18, 0
    %p66 = por %p64, %p65
    %s68 = sadd.s32 %s67, 1
    %p71 = scmp.eq.s32.totalorder %s12, 7
    %p72 = scmp.ne.s32.totalorder %s67, %s69
    %p73 = scmp.eq.s32.totalorder %s12, 0
    %p74 = por %p72, %p73
    %p75 = scmp.ne.s32.totalorder %s67, %s69
    %p76 = scmp.eq.s32.totalorder %s17, 7
    %p77 = por %p75, %p76
    %p78 = scmp.ne.s32.totalorder %s69, %s70
    %p79 = scmp.eq.s32.totalorder %s17, 0
    %p80 = por %p78, %p79
    %p81 = scmp.ne.s32.totalorder %s69, %s70
    %p82 = scmp.eq.s32.totalorder %s18, 7
    %p83 = por %p81, %p82
    %p85 = scmp.ne.s32.totalorder %s70, %s84
    %p86 = scmp.eq.s32.totalorder %s18, 0
    %p87 = por %p85, %p86
    %s88 = ssub.s32 %s12, %s19
    %p89 = scmp.eq.s32.totalorder %s88, 0
    %s91 = sadd.s32 %s90, 1
    %s92 = scalar_select %p89, %s90, %s91
    %p95 = pneg %p89
    %p96 = scmp.eq.s32.totalorder %s12, 7
    %p97 = por %p95, %p96
    %p98 = scmp.ne.s32.totalorder %s90, %s93
    %p99 = scmp.eq.s32.totalorder %s12, 0
    %p100 = por %p98, %p99
    %p101 = scmp.ne.s32.totalorder %s90, %s93
    %p102 = scmp.eq.s32.totalorder %s17, 7
    %p103 = por %p101, %p102
    %p104 = scmp.ne.s32.totalorder %s93, %s94
    %p105 = scmp.eq.s32.totalorder %s17, 0
    %p106 = por %p104, %p105
    %p107 = scmp.ne.s32.totalorder %s93, %s94
    %p108 = scmp.eq.s32.totalorder %s18, 7
    %p109 = por %p107, %p108
    %p111 = scmp.ne.s32.totalorder %s94, %s110
    %p112 = scmp.eq.s32.totalorder %s18, 0
    %p113 = por %p111, %p112
    %s114 = ssub.s32 %s12, %s19
    %p115 = scmp.eq.s32.totalorder %s114, 0
    %s117 = sadd.s32 %s116, 1
    %s118 = scalar_select %p115, %s116, %s117
    %p121 = pneg %p115
    %p122 = scmp.eq.s32.totalorder %s12, 7
    %p123 = por %p121, %p122
    %p124 = scmp.ne.s32.totalorder %s116, %s119
    %p125 = scmp.eq.s32.totalorder %s12, 0
    %p126 = por %p124, %p125
    %p127 = scmp.ne.s32.totalorder %s116, %s119
    %p128 = scmp.eq.s32.totalorder %s17, 7
    %p129 = por %p127, %p128
    %p130 = scmp.ne.s32.totalorder %s119, %s120
    %p131 = scmp.eq.s32.totalorder %s17, 0
    %p132 = por %p130, %p131
    %p133 = scmp.ne.s32.totalorder %s119, %s120
    %p134 = scmp.eq.s32.totalorder %s18, 7
    %p135 = por %p133, %p134
    %p137 = scmp.ne.s32.totalorder %s120, %s136
    %p138 = scmp.eq.s32.totalorder %s18, 0
    %p139 = por %p137, %p138
    %s140 = ssub.s32 %s12, %s19
    %p141 = scmp.eq.s32.totalorder %s140, 0
    %s143 = sadd.s32 %s142, 1
    %s144 = scalar_select %p141, %s142, %s143
    %p147 = pneg %p141
    %p148 = scmp.eq.s32.totalorder %s12, 7
    %p149 = por %p147, %p148
    %p150 = scmp.ne.s32.totalorder %s142, %s145
    %p151 = scmp.eq.s32.totalorder %s12, 0
    %p152 = por %p150, %p151
    %p153 = scmp.ne.s32.totalorder %s142, %s145
    %p154 = scmp.eq.s32.totalorder %s17, 7
    %p155 = por %p153, %p154
    %p156 = scmp.ne.s32.totalorder %s145, %s146
    %p157 = scmp.eq.s32.totalorder %s17, 0
    %p158 = por %p156, %p157
    %p159 = scmp.ne.s32.totalorder %s145, %s146
    %p160 = scmp.eq.s32.totalorder %s18, 7
    %p161 = por %p159, %p160
    %p163 = scmp.ne.s32.totalorder %s146, %s162
    %p164 = scmp.eq.s32.totalorder %s18, 0
    %p165 = por %p163, %p164
    %p166 = scmp.le.s32.totalorder 1, %s12
    %p167 = scmp.lt.s32.totalorder %s12, 9
    %p168 = pnand %p166, %p167
    %p169 = pneg %p168
    // Predicated region
    $region9: #{conv_block_3d_forward.6} parent=5 // pred_check
      _
    $region10: #{conv_block_3d_forward.6} parent=5 // pred_check_branch
      %171 = sbr.rel (%p168) target = $region12
    $region11: #{conv_block_3d_forward.6} parent=5 // pred_region
      %s172 = ssub.s32 %s12, 1
      // Predicated region
      $region13: #{conv_block_3d_forward.6} parent=11 // pred_check
        %p173 = pneg %p59
      $region14: #{conv_block_3d_forward.6} parent=11 // pred_check_branch
        %175 = sbr.rel (%p173) target = $region16
      $region15: #{conv_block_3d_forward.6} parent=11 // pred_region
        _
      $region16: #{conv_block_3d_forward.6} parent=11 // pred_fallthru
        _
      // Predicated region
      $region17: #{conv_block_3d_forward.6} parent=11 // pred_check
        %p176 = pneg %p80
      $region18: #{conv_block_3d_forward.6} parent=11 // pred_check_branch
        %178 = sbr.rel (%p176) target = $region20
      $region19: #{conv_block_3d_forward.6} parent=11 // pred_region
        _
      $region20: #{conv_block_3d_forward.6} parent=11 // pred_fallthru
        _
    $region12: #{conv_block_3d_forward.6} parent=5 // pred_fallthru
      _
    %p179 = scmp.lt.s32.totalorder %s12, 8
    // Predicated region
    $region21: #{conv_block_3d_forward.6} parent=5 // pred_check
      %p180 = pneg %p179
    $region22: #{conv_block_3d_forward.6} parent=5 // pred_check_branch
      %182 = sbr.rel (%p180) target = $region24
    $region23: #{conv_block_3d_forward.6} parent=5 // pred_region
      // Predicated region
      $region25: #{conv_block_3d_forward.6} parent=23 // pred_check
        %p183 = pneg %p32
      $region26: #{conv_block_3d_forward.6} parent=23 // pred_check_branch
        %185 = sbr.rel (%p183) target = $region28
      $region27: #{conv_block_3d_forward.6} parent=23 // pred_region
        %s186 = smul.u32 16, %s12
        %p187 = scmp.lt.s32.totalorder %s186, 127
        %s188 = scalar_select %p187, %s186, 127
        %s189 = smul.addr %s188, 27
        %s190 = smul.addr %s189, 4
        %s191 = scalar_lea.vmem %s0, %s190
        %s192 = smul.u32 16, %s12
      $region28: #{conv_block_3d_forward.6} parent=23 // pred_fallthru
        _
    $region24: #{conv_block_3d_forward.6} parent=5 // pred_fallthru
      _
    %p193 = scmp.le.s32.totalorder 1, %s12
    %p194 = scmp.lt.s32.totalorder %s12, 9
    %p195 = pnand %p193, %p194
    %p196 = pneg %p195
    // Predicated region
    $region29: #{conv_block_3d_forward.6} parent=5 // pred_check
      _
    $region30: #{conv_block_3d_forward.6} parent=5 // pred_check_branch
      %198 = sbr.rel (%p195) target = $region32
    $region31: #{conv_block_3d_forward.6} parent=5 // pred_region
      %s199 = ssub.s32 %s12, 1
      %s200 = smul.u32 16, %s17
      %p201 = scmp.lt.s32.totalorder %s200, 127
      %s202 = scalar_select %p201, %s200, 127
      %s203 = smul.addr %s202, 27
      %s204 = smul.addr %s203, 4
      %s205 = scalar_lea.vmem %s0, %s204
      %p206 = pneg %p38
      %p207 = pneg %p35
      %p208 = pneg %p59
      %p209 = pneg %p56
      %p210 = pneg %p80
      %p211 = pneg %p77
      %p212 = pneg %p106
      %p213 = pneg %p103
      %s214 = smul.u32 16, %s17
      %p215 = scmp.lt.s32.totalorder %s214, 127
      %s216 = scalar_select %p215, %s214, 127
      %s217 = smul.addr %s216, 4
      %s218 = scalar_lea.vmem %s3, %s217
      %p219 = pneg %p132
      %p220 = pneg %p129
      %p221 = scmp.lt.s32.totalorder %s17, 7
      %s222 = scalar_select %p221, %s17, 7
      %s223 = scalar_lea.vmem %s4, %s222
      %p224 = pneg %p158
      %p225 = pneg %p155
      %p226 = scmp.lt.s32.totalorder %s17, 7
      %s227 = scalar_select %p226, %s17, 7
      %s228 = scalar_lea.vmem %s5, %s227
      %s229 = smul.u32 16, %s17
      %p230 = scmp.lt.s32.totalorder %s229, 127
      %s231 = scalar_select %p230, %s229, 127
      %s232 = smul.addr %s231, 27
      %s233 = smul.addr %s232, 4
      %s234 = scalar_lea.vmem %s0, %s233
      %s235 = smul.u32 16, %s17
      %s236 = smul.u32 16, %s17
      %p237 = scmp.lt.s32.totalorder %s236, 127
      %s238 = scalar_select %p237, %s236, 127
      %s239 = smul.addr %s238, 4
      %s240 = scalar_lea.vmem %s3, %s239
      %s241 = smul.u32 16, %s17
      %p242 = scmp.lt.s32.totalorder %s17, 7
      %s243 = scalar_select %p242, %s17, 7
      %s244 = scalar_lea.vmem %s4, %s243
      %p245 = scmp.lt.s32.totalorder %s17, 7
      %s246 = scalar_select %p245, %s17, 7
      %s247 = scalar_lea.vmem %s5, %s246
      %v249 = vld [vmem:[%s234] sm:$0xff]
      %v250 = vld [vmem:[%s234 + $0x8] sm:$0xff]
      %v251 = vld [vmem:[%s234 + $0x10] sm:$0xff]
      %v252 = vld [vmem:[%s234 + $0x18] sm:$0xff]
      %v253 = vld [vmem:[%s234 + $0x20] sm:$0xff]
      %v254 = vld [vmem:[%s234 + $0x28] sm:$0xff]
      %v255 = vld [vmem:[%s234 + $0x30] sm:$0xff]
      %v256 = vld [vmem:[%s234 + $0x38] sm:$0xff]
      %v257 = vld [vmem:[%s234 + $0x40] sm:$0xff]
      %v258 = vld [vmem:[%s234 + $0x48] sm:$0xff]
      %v259 = vld [vmem:[%s234 + $0x50] sm:$0xff]
      %v260 = vld [vmem:[%s234 + $0x58] sm:$0xff]
      %v261 = vld [vmem:[%s234 + $0x60] sm:$0xff]
      %v262 = vld [vmem:[%s234 + $0x68] sm:$0xf]
      %v263 = vld [vmem:[%s234 + $0x6c] sm:$0xff]
      %v264 = vld [vmem:[%s234 + $0x74] sm:$0xff]
      %v265 = vld [vmem:[%s234 + $0x7c] sm:$0xff]
      %v266 = vld [vmem:[%s234 + $0x84] sm:$0xff]
      %v267 = vld [vmem:[%s234 + $0x8c] sm:$0xff]
      %v268 = vld [vmem:[%s234 + $0x94] sm:$0xff]
      %v269 = vld [vmem:[%s234 + $0x9c] sm:$0xff]
      %v270 = vld [vmem:[%s234 + $0xa4] sm:$0xff]
      %v271 = vld [vmem:[%s234 + $0xac] sm:$0xff]
      %v272 = vld [vmem:[%s234 + $0xb4] sm:$0xff]
      %v273 = vld [vmem:[%s234 + $0xbc] sm:$0xff]
      %v274 = vld [vmem:[%s234 + $0xc4] sm:$0xff]
      %v275 = vld [vmem:[%s234 + $0xcc] sm:$0xff]
      %v276 = vld [vmem:[%s234 + $0xd4] sm:$0xf]
      %v277 = vld [vmem:[%s234 + $0xd8] sm:$0xff]
      %v278 = vld [vmem:[%s234 + $0xe0] sm:$0xff]
      %v279 = vld [vmem:[%s234 + $0xe8] sm:$0xff]
      %v280 = vld [vmem:[%s234 + $0xf0] sm:$0xff]
      %v281 = vld [vmem:[%s234 + $0xf8] sm:$0xff]
      %v282 = vld [vmem:[%s234 + $0x100] sm:$0xff]
      %v283 = vld [vmem:[%s234 + $0x108] sm:$0xff]
      %v284 = vld [vmem:[%s234 + $0x110] sm:$0xff]
      %v285 = vld [vmem:[%s234 + $0x118] sm:$0xff]
      %v286 = vld [vmem:[%s234 + $0x120] sm:$0xff]
      %v287 = vld [vmem:[%s234 + $0x128] sm:$0xff]
      %v288 = vld [vmem:[%s234 + $0x130] sm:$0xff]
      %v289 = vld [vmem:[%s234 + $0x138] sm:$0xff]
      %v290 = vld [vmem:[%s234 + $0x140] sm:$0xf]
      %v291 = vld [vmem:[%s234 + $0x144] sm:$0xff]
      %v292 = vld [vmem:[%s234 + $0x14c] sm:$0xff]
      %v293 = vld [vmem:[%s234 + $0x154] sm:$0xff]
      %v294 = vld [vmem:[%s234 + $0x15c] sm:$0xff]
      %v295 = vld [vmem:[%s234 + $0x164] sm:$0xff]
      %v296 = vld [vmem:[%s234 + $0x16c] sm:$0xff]
      %v297 = vld [vmem:[%s234 + $0x174] sm:$0xff]
      %v298 = vld [vmem:[%s234 + $0x17c] sm:$0xff]
      %v299 = vld [vmem:[%s234 + $0x184] sm:$0xff]
      %v300 = vld [vmem:[%s234 + $0x18c] sm:$0xff]
      %v301 = vld [vmem:[%s234 + $0x194] sm:$0xff]
      %v302 = vld [vmem:[%s234 + $0x19c] sm:$0xff]
      %v303 = vld [vmem:[%s234 + $0x1a4] sm:$0xff]
      %v304 = vld [vmem:[%s234 + $0x1ac] sm:$0xf]
      %v305 = vld [vmem:[%s234 + $0x1b0] sm:$0xff]
      %v306 = vld [vmem:[%s234 + $0x1b8] sm:$0xff]
      %v307 = vld [vmem:[%s234 + $0x1c0] sm:$0xff]
      %v308 = vld [vmem:[%s234 + $0x1c8] sm:$0xff]
      %v309 = vld [vmem:[%s234 + $0x1d0] sm:$0xff]
      %v310 = vld [vmem:[%s234 + $0x1d8] sm:$0xff]
      %v311 = vld [vmem:[%s234 + $0x1e0] sm:$0xff]
      %v312 = vld [vmem:[%s234 + $0x1e8] sm:$0xff]
      %v313 = vld [vmem:[%s234 + $0x1f0] sm:$0xff]
      %v314 = vld [vmem:[%s234 + $0x1f8] sm:$0xff]
      %v315 = vld [vmem:[%s234 + $0x200] sm:$0xff]
      %v316 = vld [vmem:[%s234 + $0x208] sm:$0xff]
      %v317 = vld [vmem:[%s234 + $0x210] sm:$0xff]
      %v318 = vld [vmem:[%s234 + $0x218] sm:$0xf]
      %v319 = vld [vmem:[%s234 + $0x21c] sm:$0xff]
      %v320 = vld [vmem:[%s234 + $0x224] sm:$0xff]
      %v321 = vld [vmem:[%s234 + $0x22c] sm:$0xff]
      %v322 = vld [vmem:[%s234 + $0x234] sm:$0xff]
      %v323 = vld [vmem:[%s234 + $0x23c] sm:$0xff]
      %v324 = vld [vmem:[%s234 + $0x244] sm:$0xff]
      %v325 = vld [vmem:[%s234 + $0x24c] sm:$0xff]
      %v326 = vld [vmem:[%s234 + $0x254] sm:$0xff]
      %v327 = vld [vmem:[%s234 + $0x25c] sm:$0xff]
      %v328 = vld [vmem:[%s234 + $0x264] sm:$0xff]
      %v329 = vld [vmem:[%s234 + $0x26c] sm:$0xff]
      %v330 = vld [vmem:[%s234 + $0x274] sm:$0xff]
      %v331 = vld [vmem:[%s234 + $0x27c] sm:$0xff]
      %v332 = vld [vmem:[%s234 + $0x284] sm:$0xf]
      %v333 = vld [vmem:[%s234 + $0x288] sm:$0xff]
      %v334 = vld [vmem:[%s234 + $0x290] sm:$0xff]
      %v335 = vld [vmem:[%s234 + $0x298] sm:$0xff]
      %v336 = vld [vmem:[%s234 + $0x2a0] sm:$0xff]
      %v337 = vld [vmem:[%s234 + $0x2a8] sm:$0xff]
      %v338 = vld [vmem:[%s234 + $0x2b0] sm:$0xff]
      %v339 = vld [vmem:[%s234 + $0x2b8] sm:$0xff]
      %v340 = vld [vmem:[%s234 + $0x2c0] sm:$0xff]
      %v341 = vld [vmem:[%s234 + $0x2c8] sm:$0xff]
      %v342 = vld [vmem:[%s234 + $0x2d0] sm:$0xff]
      %v343 = vld [vmem:[%s234 + $0x2d8] sm:$0xff]
      %v344 = vld [vmem:[%s234 + $0x2e0] sm:$0xff]
      %v345 = vld [vmem:[%s234 + $0x2e8] sm:$0xff]
      %v346 = vld [vmem:[%s234 + $0x2f0] sm:$0xf]
      %v347 = vld [vmem:[%s234 + $0x2f4] sm:$0xff]
      %v348 = vld [vmem:[%s234 + $0x2fc] sm:$0xff]
      %v349 = vld [vmem:[%s234 + $0x304] sm:$0xff]
      %v350 = vld [vmem:[%s234 + $0x30c] sm:$0xff]
      %v351 = vld [vmem:[%s234 + $0x314] sm:$0xff]
      %v352 = vld [vmem:[%s234 + $0x31c] sm:$0xff]
      %v353 = vld [vmem:[%s234 + $0x324] sm:$0xff]
      %v354 = vld [vmem:[%s234 + $0x32c] sm:$0xff]
      %v355 = vld [vmem:[%s234 + $0x334] sm:$0xff]
      %v356 = vld [vmem:[%s234 + $0x33c] sm:$0xff]
      %v357 = vld [vmem:[%s234 + $0x344] sm:$0xff]
      %v358 = vld [vmem:[%s234 + $0x34c] sm:$0xff]
      %v359 = vld [vmem:[%s234 + $0x354] sm:$0xff]
      %v360 = vld [vmem:[%s234 + $0x35c] sm:$0xf]
      %v361 = vld [vmem:[%s234 + $0x360] sm:$0xff]
      %v362 = vld [vmem:[%s234 + $0x368] sm:$0xff]
      %v363 = vld [vmem:[%s234 + $0x370] sm:$0xff]
      %v364 = vld [vmem:[%s234 + $0x378] sm:$0xff]
      %v365 = vld [vmem:[%s234 + $0x380] sm:$0xff]
      %v366 = vld [vmem:[%s234 + $0x388] sm:$0xff]
      %v367 = vld [vmem:[%s234 + $0x390] sm:$0xff]
      %v368 = vld [vmem:[%s234 + $0x398] sm:$0xff]
      %v369 = vld [vmem:[%s234 + $0x3a0] sm:$0xff]
      %v370 = vld [vmem:[%s234 + $0x3a8] sm:$0xff]
      %v371 = vld [vmem:[%s234 + $0x3b0] sm:$0xff]
      %v372 = vld [vmem:[%s234 + $0x3b8] sm:$0xff]
      %v373 = vld [vmem:[%s234 + $0x3c0] sm:$0xff]
      %v374 = vld [vmem:[%s234 + $0x3c8] sm:$0xf]
      %v375 = vld [vmem:[%s234 + $0x3cc] sm:$0xff]
      %v376 = vld [vmem:[%s234 + $0x3d4] sm:$0xff]
      %v377 = vld [vmem:[%s234 + $0x3dc] sm:$0xff]
      %v378 = vld [vmem:[%s234 + $0x3e4] sm:$0xff]
      %v379 = vld [vmem:[%s234 + $0x3ec] sm:$0xff]
      %v380 = vld [vmem:[%s234 + $0x3f4] sm:$0xff]
      %v381 = vld [vmem:[%s234 + $0x3fc] sm:$0xff]
      %v382 = vld [vmem:[%s234 + $0x404] sm:$0xff]
      %v383 = vld [vmem:[%s234 + $0x40c] sm:$0xff]
      %v384 = vld [vmem:[%s234 + $0x414] sm:$0xff]
      %v385 = vld [vmem:[%s234 + $0x41c] sm:$0xff]
      %v386 = vld [vmem:[%s234 + $0x424] sm:$0xff]
      %v387 = vld [vmem:[%s234 + $0x42c] sm:$0xff]
      %v388 = vld [vmem:[%s234 + $0x434] sm:$0xf]
      %v389 = vld [vmem:[%s234 + $0x438] sm:$0xff]
      %v390 = vld [vmem:[%s234 + $0x440] sm:$0xff]
      %v391 = vld [vmem:[%s234 + $0x448] sm:$0xff]
      %v392 = vld [vmem:[%s234 + $0x450] sm:$0xff]
      %v393 = vld [vmem:[%s234 + $0x458] sm:$0xff]
      %v394 = vld [vmem:[%s234 + $0x460] sm:$0xff]
      %v395 = vld [vmem:[%s234 + $0x468] sm:$0xff]
      %v396 = vld [vmem:[%s234 + $0x470] sm:$0xff]
      %v397 = vld [vmem:[%s234 + $0x478] sm:$0xff]
      %v398 = vld [vmem:[%s234 + $0x480] sm:$0xff]
      %v399 = vld [vmem:[%s234 + $0x488] sm:$0xff]
      %v400 = vld [vmem:[%s234 + $0x490] sm:$0xff]
      %v401 = vld [vmem:[%s234 + $0x498] sm:$0xff]
      %v402 = vld [vmem:[%s234 + $0x4a0] sm:$0xf]
      %v403 = vld [vmem:[%s234 + $0x4a4] sm:$0xff]
      %v404 = vld [vmem:[%s234 + $0x4ac] sm:$0xff]
      %v405 = vld [vmem:[%s234 + $0x4b4] sm:$0xff]
      %v406 = vld [vmem:[%s234 + $0x4bc] sm:$0xff]
      %v407 = vld [vmem:[%s234 + $0x4c4] sm:$0xff]
      %v408 = vld [vmem:[%s234 + $0x4cc] sm:$0xff]
      %v409 = vld [vmem:[%s234 + $0x4d4] sm:$0xff]
      %v410 = vld [vmem:[%s234 + $0x4dc] sm:$0xff]
      %v411 = vld [vmem:[%s234 + $0x4e4] sm:$0xff]
      %v412 = vld [vmem:[%s234 + $0x4ec] sm:$0xff]
      %v413 = vld [vmem:[%s234 + $0x4f4] sm:$0xff]
      %v414 = vld [vmem:[%s234 + $0x4fc] sm:$0xff]
      %v415 = vld [vmem:[%s234 + $0x504] sm:$0xff]
      %v416 = vld [vmem:[%s234 + $0x50c] sm:$0xf]
      %v417 = vld [vmem:[%s234 + $0x510] sm:$0xff]
      %v418 = vld [vmem:[%s234 + $0x518] sm:$0xff]
      %v419 = vld [vmem:[%s234 + $0x520] sm:$0xff]
      %v420 = vld [vmem:[%s234 + $0x528] sm:$0xff]
      %v421 = vld [vmem:[%s234 + $0x530] sm:$0xff]
      %v422 = vld [vmem:[%s234 + $0x538] sm:$0xff]
      %v423 = vld [vmem:[%s234 + $0x540] sm:$0xff]
      %v424 = vld [vmem:[%s234 + $0x548] sm:$0xff]
      %v425 = vld [vmem:[%s234 + $0x550] sm:$0xff]
      %v426 = vld [vmem:[%s234 + $0x558] sm:$0xff]
      %v427 = vld [vmem:[%s234 + $0x560] sm:$0xff]
      %v428 = vld [vmem:[%s234 + $0x568] sm:$0xff]
      %v429 = vld [vmem:[%s234 + $0x570] sm:$0xff]
      %v430 = vld [vmem:[%s234 + $0x578] sm:$0xf]
      %v431 = vld [vmem:[%s234 + $0x57c] sm:$0xff]
      %v432 = vld [vmem:[%s234 + $0x584] sm:$0xff]
      %v433 = vld [vmem:[%s234 + $0x58c] sm:$0xff]
      %v434 = vld [vmem:[%s234 + $0x594] sm:$0xff]
      %v435 = vld [vmem:[%s234 + $0x59c] sm:$0xff]
      %v436 = vld [vmem:[%s234 + $0x5a4] sm:$0xff]
      %v437 = vld [vmem:[%s234 + $0x5ac] sm:$0xff]
      %v438 = vld [vmem:[%s234 + $0x5b4] sm:$0xff]
      %v439 = vld [vmem:[%s234 + $0x5bc] sm:$0xff]
      %v440 = vld [vmem:[%s234 + $0x5c4] sm:$0xff]
      %v441 = vld [vmem:[%s234 + $0x5cc] sm:$0xff]
      %v442 = vld [vmem:[%s234 + $0x5d4] sm:$0xff]
      %v443 = vld [vmem:[%s234 + $0x5dc] sm:$0xff]
      %v444 = vld [vmem:[%s234 + $0x5e4] sm:$0xf]
      %v445 = vld [vmem:[%s234 + $0x5e8] sm:$0xff]
      %v446 = vld [vmem:[%s234 + $0x5f0] sm:$0xff]
      %v447 = vld [vmem:[%s234 + $0x5f8] sm:$0xff]
      %v448 = vld [vmem:[%s234 + $0x600] sm:$0xff]
      %v449 = vld [vmem:[%s234 + $0x608] sm:$0xff]
      %v450 = vld [vmem:[%s234 + $0x610] sm:$0xff]
      %v451 = vld [vmem:[%s234 + $0x618] sm:$0xff]
      %v452 = vld [vmem:[%s234 + $0x620] sm:$0xff]
      %v453 = vld [vmem:[%s234 + $0x628] sm:$0xff]
      %v454 = vld [vmem:[%s234 + $0x630] sm:$0xff]
      %v455 = vld [vmem:[%s234 + $0x638] sm:$0xff]
      %v456 = vld [vmem:[%s234 + $0x640] sm:$0xff]
      %v457 = vld [vmem:[%s234 + $0x648] sm:$0xff]
      %v458 = vld [vmem:[%s234 + $0x650] sm:$0xf]
      %v459 = vld [vmem:[%s234 + $0x654] sm:$0xff]
      %v460 = vld [vmem:[%s234 + $0x65c] sm:$0xff]
      %v461 = vld [vmem:[%s234 + $0x664] sm:$0xff]
      %v462 = vld [vmem:[%s234 + $0x66c] sm:$0xff]
      %v463 = vld [vmem:[%s234 + $0x674] sm:$0xff]
      %v464 = vld [vmem:[%s234 + $0x67c] sm:$0xff]
      %v465 = vld [vmem:[%s234 + $0x684] sm:$0xff]
      %v466 = vld [vmem:[%s234 + $0x68c] sm:$0xff]
      %v467 = vld [vmem:[%s234 + $0x694] sm:$0xff]
      %v468 = vld [vmem:[%s234 + $0x69c] sm:$0xff]
      %v469 = vld [vmem:[%s234 + $0x6a4] sm:$0xff]
      %v470 = vld [vmem:[%s234 + $0x6ac] sm:$0xff]
      %v471 = vld [vmem:[%s234 + $0x6b4] sm:$0xff]
      %v472 = vld [vmem:[%s234 + $0x6bc] sm:$0xf]
      %v473 = vld [vmem:[%s1] sm:$0xf]
      %v474 = vld [vmem:[%s1 + $0x4] sm:$0xf]
      %v475 = vld [vmem:[%s1 + $0x8] sm:$0xf]
      %v476 = vld [vmem:[%s1 + $0xc] sm:$0xf]
      %v477 = vld [vmem:[%s1 + $0x10] sm:$0xf]
      %v478 = vld [vmem:[%s1 + $0x14] sm:$0xf]
      %v479 = vld [vmem:[%s1 + $0x18] sm:$0xf]
      %v480 = vld [vmem:[%s1 + $0x1c] sm:$0xf]
      %v481 = vld [vmem:[%s1 + $0x20] sm:$0xf]
      %v482 = vld [vmem:[%s1 + $0x24] sm:$0xf]
      %v483 = vld [vmem:[%s1 + $0x28] sm:$0xf]
      %v484 = vld [vmem:[%s1 + $0x2c] sm:$0xf]
      %v485 = vld [vmem:[%s1 + $0x30] sm:$0xf]
      %v486 = vld [vmem:[%s1 + $0x34] sm:$0xf]
      %v487 = vld [vmem:[%s1 + $0x38] sm:$0xf]
      %v488 = vld [vmem:[%s1 + $0x3c] sm:$0xf]
      %v489 = vld [vmem:[%s1 + $0x40] sm:$0xf]
      %v490 = vld [vmem:[%s1 + $0x44] sm:$0xf]
      %v491 = vld [vmem:[%s1 + $0x48] sm:$0xf]
      %v492 = vld [vmem:[%s1 + $0x4c] sm:$0xf]
      %v493 = vld [vmem:[%s1 + $0x50] sm:$0xf]
      %v494 = vld [vmem:[%s1 + $0x54] sm:$0xf]
      %v495 = vld [vmem:[%s1 + $0x58] sm:$0xf]
      %v496 = vld [vmem:[%s1 + $0x5c] sm:$0xf]
      %v497 = vld [vmem:[%s1 + $0x60] sm:$0xf]
      %v498 = vld [vmem:[%s1 + $0x64] sm:$0xf]
      %v499 = vld [vmem:[%s1 + $0x68] sm:$0xf]
      %v500 = vld [vmem:[%s1 + $0x6c] sm:$0xf]
      %v501 = vld [vmem:[%s1 + $0x70] sm:$0xf]
      %v502 = vld [vmem:[%s1 + $0x74] sm:$0xf]
      %v503 = vld [vmem:[%s1 + $0x78] sm:$0xf]
      %v504 = vld [vmem:[%s1 + $0x7c] sm:$0xf]
      %v505 = vld [vmem:[%s1 + $0x80] sm:$0xf]
      %v506 = vld [vmem:[%s1 + $0x84] sm:$0xf]
      %v507 = vld [vmem:[%s1 + $0x88] sm:$0xf]
      %v508 = vld [vmem:[%s1 + $0x8c] sm:$0xf]
      %v509 = vld [vmem:[%s1 + $0x90] sm:$0xf]
      %v510 = vld [vmem:[%s1 + $0x94] sm:$0xf]
      %v511 = vld [vmem:[%s1 + $0x98] sm:$0xf]
      %v512 = vld [vmem:[%s1 + $0x9c] sm:$0xf]
      %v513 = vld [vmem:[%s1 + $0xa0] sm:$0xf]
      %v514 = vld [vmem:[%s1 + $0xa4] sm:$0xf]
      %v515 = vld [vmem:[%s1 + $0xa8] sm:$0xf]
      %v516 = vld [vmem:[%s1 + $0xac] sm:$0xf]
      %v517 = vld [vmem:[%s1 + $0xb0] sm:$0xf]
      %v518 = vld [vmem:[%s1 + $0xb4] sm:$0xf]
      %v519 = vld [vmem:[%s1 + $0xb8] sm:$0xf]
      %v520 = vld [vmem:[%s1 + $0xbc] sm:$0xf]
      %v521 = vld [vmem:[%s1 + $0xc0] sm:$0xf]
      %v522 = vld [vmem:[%s1 + $0xc4] sm:$0xf]
      %v523 = vld [vmem:[%s1 + $0xc8] sm:$0xf]
      %v524 = vld [vmem:[%s1 + $0xcc] sm:$0xf]
      %v525 = vld [vmem:[%s1 + $0xd0] sm:$0xf]
      %v526 = vld [vmem:[%s1 + $0xd4] sm:$0xf]
      %v527 = vld [vmem:[%s1 + $0xd8] sm:$0xf]
      %v528 = vld [vmem:[%s1 + $0xdc] sm:$0xf]
      %v529 = vld [vmem:[%s1 + $0xe0] sm:$0xf]
      %v530 = vld [vmem:[%s1 + $0xe4] sm:$0xf]
      %v531 = vld [vmem:[%s1 + $0xe8] sm:$0xf]
      %v532 = vld [vmem:[%s1 + $0xec] sm:$0xf]
      %v533 = vld [vmem:[%s1 + $0xf0] sm:$0xf]
      %v534 = vld [vmem:[%s1 + $0xf4] sm:$0xf]
      %v535 = vld [vmem:[%s1 + $0xf8] sm:$0xf]
      %v536 = vld [vmem:[%s1 + $0xfc] sm:$0xf]
      %v537 = vld [vmem:[%s1 + $0x100] sm:$0xf]
      %v538 = vld [vmem:[%s1 + $0x104] sm:$0xf]
      %v539 = vld [vmem:[%s1 + $0x108] sm:$0xf]
      %v540 = vld [vmem:[%s1 + $0x10c] sm:$0xf]
      %v541 = vld [vmem:[%s1 + $0x110] sm:$0xf]
      %v542 = vld [vmem:[%s1 + $0x114] sm:$0xf]
      %v543 = vld [vmem:[%s1 + $0x118] sm:$0xf]
      %v544 = vld [vmem:[%s1 + $0x11c] sm:$0xf]
      %v545 = vld [vmem:[%s1 + $0x120] sm:$0xf]
      %v546 = vld [vmem:[%s1 + $0x124] sm:$0xf]
      %v547 = vld [vmem:[%s1 + $0x128] sm:$0xf]
      %v548 = vld [vmem:[%s1 + $0x12c] sm:$0xf]
      %v549 = vld [vmem:[%s1 + $0x130] sm:$0xf]
      %v550 = vld [vmem:[%s1 + $0x134] sm:$0xf]
      %v551 = vld [vmem:[%s1 + $0x138] sm:$0xf]
      %v552 = vld [vmem:[%s1 + $0x13c] sm:$0xf]
      %v553 = vld [vmem:[%s1 + $0x140] sm:$0xf]
      %v554 = vld [vmem:[%s1 + $0x144] sm:$0xf]
      %v555 = vld [vmem:[%s1 + $0x148] sm:$0xf]
      %v556 = vld [vmem:[%s1 + $0x14c] sm:$0xf]
      %v557 = vld [vmem:[%s1 + $0x150] sm:$0xf]
      %v558 = vld [vmem:[%s1 + $0x154] sm:$0xf]
      %v559 = vld [vmem:[%s1 + $0x158] sm:$0xf]
      %v560 = vld [vmem:[%s1 + $0x15c] sm:$0xf]
      %v561 = vld [vmem:[%s1 + $0x160] sm:$0xf]
      %v562 = vld [vmem:[%s1 + $0x164] sm:$0xf]
      %v563 = vld [vmem:[%s1 + $0x168] sm:$0xf]
      %v564 = vld [vmem:[%s1 + $0x16c] sm:$0xf]
      %v565 = vld [vmem:[%s1 + $0x170] sm:$0xf]
      %v566 = vld [vmem:[%s1 + $0x174] sm:$0xf]
      %v567 = vld [vmem:[%s1 + $0x178] sm:$0xf]
      %v568 = vld [vmem:[%s1 + $0x17c] sm:$0xf]
      %v569 = vld [vmem:[%s1 + $0x180] sm:$0xf]
      %v570 = vld [vmem:[%s1 + $0x184] sm:$0xf]
      %v571 = vld [vmem:[%s1 + $0x188] sm:$0xf]
      %v572 = vld [vmem:[%s1 + $0x18c] sm:$0xf]
      %v573 = vld [vmem:[%s1 + $0x190] sm:$0xf]
      %v574 = vld [vmem:[%s1 + $0x194] sm:$0xf]
      %v575 = vld [vmem:[%s1 + $0x198] sm:$0xf]
      %v576 = vld [vmem:[%s1 + $0x19c] sm:$0xf]
      %v577 = vld [vmem:[%s1 + $0x1a0] sm:$0xf]
      %v578 = vld [vmem:[%s1 + $0x1a4] sm:$0xf]
      %v579 = vld [vmem:[%s1 + $0x1a8] sm:$0xf]
      %v580 = vld [vmem:[%s1 + $0x1ac] sm:$0xf]
      %v581 = vld [vmem:[%s1 + $0x1b0] sm:$0xf]
      %v582 = vld [vmem:[%s1 + $0x1b4] sm:$0xf]
      %v583 = vld [vmem:[%s1 + $0x1b8] sm:$0xf]
      %v584 = vld [vmem:[%s1 + $0x1bc] sm:$0xf]
      %v585 = vld [vmem:[%s1 + $0x1c0] sm:$0xf]
      %v586 = vld [vmem:[%s1 + $0x1c4] sm:$0xf]
      %v587 = vld [vmem:[%s1 + $0x1c8] sm:$0xf]
      %v588 = vld [vmem:[%s1 + $0x1cc] sm:$0xf]
      %v589 = vld [vmem:[%s1 + $0x1d0] sm:$0xf]
      %v590 = vld [vmem:[%s1 + $0x1d4] sm:$0xf]
      %v591 = vld [vmem:[%s1 + $0x1d8] sm:$0xf]
      %v592 = vld [vmem:[%s1 + $0x1dc] sm:$0xf]
      %v593 = vld [vmem:[%s1 + $0x1e0] sm:$0xf]
      %v594 = vld [vmem:[%s1 + $0x1e4] sm:$0xf]
      %v595 = vld [vmem:[%s1 + $0x1e8] sm:$0xf]
      %v596 = vld [vmem:[%s1 + $0x1ec] sm:$0xf]
      %v597 = vld [vmem:[%s1 + $0x1f0] sm:$0xf]
      %v598 = vld [vmem:[%s1 + $0x1f4] sm:$0xf]
      %v599 = vld [vmem:[%s1 + $0x1f8] sm:$0xf]
      %v600 = vld [vmem:[%s1 + $0x1fc] sm:$0xf]
      %v601 = vld [vmem:[%s1 + $0x200] sm:$0xf]
      %v602 = vld [vmem:[%s1 + $0x204] sm:$0xf]
      %v603 = vld [vmem:[%s1 + $0x208] sm:$0xf]
      %v604 = vld [vmem:[%s1 + $0x20c] sm:$0xf]
      %v605 = vld [vmem:[%s1 + $0x210] sm:$0xf]
      %v606 = vld [vmem:[%s1 + $0x214] sm:$0xf]
      %v607 = vld [vmem:[%s1 + $0x218] sm:$0xf]
      %v608 = vld [vmem:[%s1 + $0x21c] sm:$0xf]
      %v609 = vld [vmem:[%s1 + $0x220] sm:$0xf]
      %v610 = vld [vmem:[%s1 + $0x224] sm:$0xf]
      %v611 = vld [vmem:[%s1 + $0x228] sm:$0xf]
      %v612 = vld [vmem:[%s1 + $0x22c] sm:$0xf]
      %v613 = vld [vmem:[%s1 + $0x230] sm:$0xf]
      %v614 = vld [vmem:[%s1 + $0x234] sm:$0xf]
      %v615 = vld [vmem:[%s1 + $0x238] sm:$0xf]
      %v616 = vld [vmem:[%s1 + $0x23c] sm:$0xf]
      %v617 = vld [vmem:[%s1 + $0x240] sm:$0xf]
      %v618 = vld [vmem:[%s1 + $0x244] sm:$0xf]
      %v619 = vld [vmem:[%s1 + $0x248] sm:$0xf]
      %v620 = vld [vmem:[%s1 + $0x24c] sm:$0xf]
      %v621 = vld [vmem:[%s1 + $0x250] sm:$0xf]
      %v622 = vld [vmem:[%s1 + $0x254] sm:$0xf]
      %v623 = vld [vmem:[%s1 + $0x258] sm:$0xf]
      %v624 = vld [vmem:[%s1 + $0x25c] sm:$0xf]
      %v625 = vld [vmem:[%s1 + $0x260] sm:$0xf]
      %v626 = vld [vmem:[%s1 + $0x264] sm:$0xf]
      %v627 = vld [vmem:[%s1 + $0x268] sm:$0xf]
      %v628 = vld [vmem:[%s1 + $0x26c] sm:$0xf]
      %v629 = vld [vmem:[%s1 + $0x270] sm:$0xf]
      %v630 = vld [vmem:[%s1 + $0x274] sm:$0xf]
      %v631 = vld [vmem:[%s1 + $0x278] sm:$0xf]
      %v632 = vld [vmem:[%s1 + $0x27c] sm:$0xf]
      %v633 = vld [vmem:[%s1 + $0x280] sm:$0xf]
      %v634 = vld [vmem:[%s1 + $0x284] sm:$0xf]
      %v635 = vld [vmem:[%s1 + $0x288] sm:$0xf]
      %v636 = vld [vmem:[%s1 + $0x28c] sm:$0xf]
      %v637 = vld [vmem:[%s1 + $0x290] sm:$0xf]
      %v638 = vld [vmem:[%s1 + $0x294] sm:$0xf]
      %v639 = vld [vmem:[%s1 + $0x298] sm:$0xf]
      %v640 = vld [vmem:[%s1 + $0x29c] sm:$0xf]
      %v641 = vld [vmem:[%s1 + $0x2a0] sm:$0xf]
      %v642 = vld [vmem:[%s1 + $0x2a4] sm:$0xf]
      %v643 = vld [vmem:[%s1 + $0x2a8] sm:$0xf]
      %v644 = vld [vmem:[%s1 + $0x2ac] sm:$0xf]
      %v645 = vld [vmem:[%s1 + $0x2b0] sm:$0xf]
      %v646 = vld [vmem:[%s1 + $0x2b4] sm:$0xf]
      %v647 = vld [vmem:[%s1 + $0x2b8] sm:$0xf]
      %v648 = vld [vmem:[%s1 + $0x2bc] sm:$0xf]
      %v649 = vld [vmem:[%s1 + $0x2c0] sm:$0xf]
      %v650 = vld [vmem:[%s1 + $0x2c4] sm:$0xf]
      %v651 = vld [vmem:[%s1 + $0x2c8] sm:$0xf]
      %v652 = vld [vmem:[%s1 + $0x2cc] sm:$0xf]
      %v653 = vld [vmem:[%s1 + $0x2d0] sm:$0xf]
      %v654 = vld [vmem:[%s1 + $0x2d4] sm:$0xf]
      %v655 = vld [vmem:[%s1 + $0x2d8] sm:$0xf]
      %v656 = vld [vmem:[%s1 + $0x2dc] sm:$0xf]
      %v657 = vld [vmem:[%s1 + $0x2e0] sm:$0xf]
      %v658 = vld [vmem:[%s1 + $0x2e4] sm:$0xf]
      %v659 = vld [vmem:[%s1 + $0x2e8] sm:$0xf]
      %v660 = vld [vmem:[%s1 + $0x2ec] sm:$0xf]
      %v661 = vld [vmem:[%s1 + $0x2f0] sm:$0xf]
      %v662 = vld [vmem:[%s1 + $0x2f4] sm:$0xf]
      %v663 = vld [vmem:[%s1 + $0x2f8] sm:$0xf]
      %v664 = vld [vmem:[%s1 + $0x2fc] sm:$0xf]
      %v665 = vld [vmem:[%s1 + $0x300] sm:$0xf]
      %v666 = vld [vmem:[%s1 + $0x304] sm:$0xf]
      %v667 = vld [vmem:[%s1 + $0x308] sm:$0xf]
      %v668 = vld [vmem:[%s1 + $0x30c] sm:$0xf]
      %v669 = vld [vmem:[%s1 + $0x310] sm:$0xf]
      %v670 = vld [vmem:[%s1 + $0x314] sm:$0xf]
      %v671 = vld [vmem:[%s1 + $0x318] sm:$0xf]
      %v672 = vld [vmem:[%s1 + $0x31c] sm:$0xf]
      %v673 = vld [vmem:[%s1 + $0x320] sm:$0xf]
      %v674 = vld [vmem:[%s1 + $0x324] sm:$0xf]
      %v675 = vld [vmem:[%s1 + $0x328] sm:$0xf]
      %v676 = vld [vmem:[%s1 + $0x32c] sm:$0xf]
      %v677 = vld [vmem:[%s1 + $0x330] sm:$0xf]
      %v678 = vld [vmem:[%s1 + $0x334] sm:$0xf]
      %v679 = vld [vmem:[%s1 + $0x338] sm:$0xf]
      %v680 = vld [vmem:[%s1 + $0x33c] sm:$0xf]
      %v681 = vld [vmem:[%s1 + $0x340] sm:$0xf]
      %v682 = vld [vmem:[%s1 + $0x344] sm:$0xf]
      %v683 = vld [vmem:[%s1 + $0x348] sm:$0xf]
      %v684 = vld [vmem:[%s1 + $0x34c] sm:$0xf]
      %v685 = vld [vmem:[%s1 + $0x350] sm:$0xf]
      %v686 = vld [vmem:[%s1 + $0x354] sm:$0xf]
      %v687 = vld [vmem:[%s1 + $0x358] sm:$0xf]
      %v688 = vld [vmem:[%s1 + $0x35c] sm:$0xf]
      %v689 = vld [vmem:[%s1 + $0x360] sm:$0xf]
      %v690 = vld [vmem:[%s1 + $0x364] sm:$0xf]
      %v691 = vld [vmem:[%s1 + $0x368] sm:$0xf]
      %v692 = vld [vmem:[%s1 + $0x36c] sm:$0xf]
      %v693 = vld [vmem:[%s1 + $0x370] sm:$0xf]
      %v694 = vld [vmem:[%s1 + $0x374] sm:$0xf]
      %v695 = vld [vmem:[%s1 + $0x378] sm:$0xf]
      %v696 = vld [vmem:[%s1 + $0x37c] sm:$0xf]
      %v697 = vld [vmem:[%s1 + $0x380] sm:$0xf]
      %v698 = vld [vmem:[%s1 + $0x384] sm:$0xf]
      %v699 = vld [vmem:[%s1 + $0x388] sm:$0xf]
      %v700 = vld [vmem:[%s1 + $0x38c] sm:$0xf]
      %v701 = vld [vmem:[%s1 + $0x390] sm:$0xf]
      %v702 = vld [vmem:[%s1 + $0x394] sm:$0xf]
      %v703 = vld [vmem:[%s1 + $0x398] sm:$0xf]
      %v704 = vld [vmem:[%s1 + $0x39c] sm:$0xf]
      %v705 = vld [vmem:[%s1 + $0x3a0] sm:$0xf]
      %v706 = vld [vmem:[%s1 + $0x3a4] sm:$0xf]
      %v707 = vld [vmem:[%s1 + $0x3a8] sm:$0xf]
      %v708 = vld [vmem:[%s1 + $0x3ac] sm:$0xf]
      %v709 = vld [vmem:[%s1 + $0x3b0] sm:$0xf]
      %v710 = vld [vmem:[%s1 + $0x3b4] sm:$0xf]
      %v711 = vld [vmem:[%s1 + $0x3b8] sm:$0xf]
      %v712 = vld [vmem:[%s1 + $0x3bc] sm:$0xf]
      %v713 = vld [vmem:[%s1 + $0x3c0] sm:$0xf]
      %v714 = vld [vmem:[%s1 + $0x3c4] sm:$0xf]
      %v715 = vld [vmem:[%s1 + $0x3c8] sm:$0xf]
      %v716 = vld [vmem:[%s1 + $0x3cc] sm:$0xf]
      %v717 = vld [vmem:[%s1 + $0x3d0] sm:$0xf]
      %v718 = vld [vmem:[%s1 + $0x3d4] sm:$0xf]
      %v719 = vld [vmem:[%s1 + $0x3d8] sm:$0xf]
      %v720 = vld [vmem:[%s1 + $0x3dc] sm:$0xf]
      %v721 = vld [vmem:[%s1 + $0x3e0] sm:$0xf]
      %v722 = vld [vmem:[%s1 + $0x3e4] sm:$0xf]
      %v723 = vld [vmem:[%s1 + $0x3e8] sm:$0xf]
      %v724 = vld [vmem:[%s1 + $0x3ec] sm:$0xf]
      %v725 = vld [vmem:[%s1 + $0x3f0] sm:$0xf]
      %v726 = vld [vmem:[%s1 + $0x3f4] sm:$0xf]
      %v727 = vld [vmem:[%s1 + $0x3f8] sm:$0xf]
      %v728 = vld [vmem:[%s1 + $0x3fc] sm:$0xf]
      %v729 = vld [vmem:[%s1 + $0x400] sm:$0xf]
      %v730 = vld [vmem:[%s1 + $0x404] sm:$0xf]
      %v731 = vld [vmem:[%s1 + $0x408] sm:$0xf]
      %v732 = vld [vmem:[%s1 + $0x40c] sm:$0xf]
      %v733 = vld [vmem:[%s1 + $0x410] sm:$0xf]
      %v734 = vld [vmem:[%s1 + $0x414] sm:$0xf]
      %v735 = vld [vmem:[%s1 + $0x418] sm:$0xf]
      %v736 = vld [vmem:[%s1 + $0x41c] sm:$0xf]
      %v737 = vld [vmem:[%s1 + $0x420] sm:$0xf]
      %v738 = vld [vmem:[%s1 + $0x424] sm:$0xf]
      %v739 = vld [vmem:[%s1 + $0x428] sm:$0xf]
      %v740 = vld [vmem:[%s1 + $0x42c] sm:$0xf]
      %v741 = vld [vmem:[%s1 + $0x430] sm:$0xf]
      %v742 = vld [vmem:[%s1 + $0x434] sm:$0xf]
      %v743 = vld [vmem:[%s1 + $0x438] sm:$0xf]
      %v744 = vld [vmem:[%s1 + $0x43c] sm:$0xf]
      %v745 = vld [vmem:[%s1 + $0x440] sm:$0xf]
      %v746 = vld [vmem:[%s1 + $0x444] sm:$0xf]
      %v747 = vld [vmem:[%s1 + $0x448] sm:$0xf]
      %v748 = vld [vmem:[%s1 + $0x44c] sm:$0xf]
      %v749 = vld [vmem:[%s1 + $0x450] sm:$0xf]
      %v750 = vld [vmem:[%s1 + $0x454] sm:$0xf]
      %v751 = vld [vmem:[%s1 + $0x458] sm:$0xf]
      %v752 = vld [vmem:[%s1 + $0x45c] sm:$0xf]
      %v753 = vld [vmem:[%s1 + $0x460] sm:$0xf]
      %v754 = vld [vmem:[%s1 + $0x464] sm:$0xf]
      %v755 = vld [vmem:[%s1 + $0x468] sm:$0xf]
      %v756 = vld [vmem:[%s1 + $0x46c] sm:$0xf]
      %v757 = vld [vmem:[%s1 + $0x470] sm:$0xf]
      %v758 = vld [vmem:[%s1 + $0x474] sm:$0xf]
      %v759 = vld [vmem:[%s1 + $0x478] sm:$0xf]
      %v760 = vld [vmem:[%s1 + $0x47c] sm:$0xf]
      %v761 = vld [vmem:[%s1 + $0x480] sm:$0xf]
      %v762 = vld [vmem:[%s1 + $0x484] sm:$0xf]
      %v763 = vld [vmem:[%s1 + $0x488] sm:$0xf]
      %v764 = vld [vmem:[%s1 + $0x48c] sm:$0xf]
      %v765 = vld [vmem:[%s1 + $0x490] sm:$0xf]
      %v766 = vld [vmem:[%s1 + $0x494] sm:$0xf]
      %v767 = vld [vmem:[%s1 + $0x498] sm:$0xf]
      %v768 = vld [vmem:[%s1 + $0x49c] sm:$0xf]
      %v769 = vld [vmem:[%s1 + $0x4a0] sm:$0xf]
      %v770 = vld [vmem:[%s1 + $0x4a4] sm:$0xf]
      %v771 = vld [vmem:[%s1 + $0x4a8] sm:$0xf]
      %v772 = vld [vmem:[%s1 + $0x4ac] sm:$0xf]
      %v773 = vld [vmem:[%s1 + $0x4b0] sm:$0xf]
      %v774 = vld [vmem:[%s1 + $0x4b4] sm:$0xf]
      %v775 = vld [vmem:[%s1 + $0x4b8] sm:$0xf]
      %v776 = vld [vmem:[%s1 + $0x4bc] sm:$0xf]
      %v777 = vld [vmem:[%s1 + $0x4c0] sm:$0xf]
      %v778 = vld [vmem:[%s1 + $0x4c4] sm:$0xf]
      %v779 = vld [vmem:[%s1 + $0x4c8] sm:$0xf]
      %v780 = vld [vmem:[%s1 + $0x4cc] sm:$0xf]
      %v781 = vld [vmem:[%s1 + $0x4d0] sm:$0xf]
      %v782 = vld [vmem:[%s1 + $0x4d4] sm:$0xf]
      %v783 = vld [vmem:[%s1 + $0x4d8] sm:$0xf]
      %v784 = vld [vmem:[%s1 + $0x4dc] sm:$0xf]
      %v785 = vld [vmem:[%s1 + $0x4e0] sm:$0xf]
      %v786 = vld [vmem:[%s1 + $0x4e4] sm:$0xf]
      %v787 = vld [vmem:[%s1 + $0x4e8] sm:$0xf]
      %v788 = vld [vmem:[%s1 + $0x4ec] sm:$0xf]
      %v789 = vld [vmem:[%s1 + $0x4f0] sm:$0xf]
      %v790 = vld [vmem:[%s1 + $0x4f4] sm:$0xf]
      %v791 = vld [vmem:[%s1 + $0x4f8] sm:$0xf]
      %v792 = vld [vmem:[%s1 + $0x4fc] sm:$0xf]
      %v793 = vld [vmem:[%s1 + $0x500] sm:$0xf]
      %v794 = vld [vmem:[%s1 + $0x504] sm:$0xf]
      %v795 = vld [vmem:[%s1 + $0x508] sm:$0xf]
      %v796 = vld [vmem:[%s1 + $0x50c] sm:$0xf]
      %v797 = vld [vmem:[%s1 + $0x510] sm:$0xf]
      %v798 = vld [vmem:[%s1 + $0x514] sm:$0xf]
      %v799 = vld [vmem:[%s1 + $0x518] sm:$0xf]
      %v800 = vld [vmem:[%s1 + $0x51c] sm:$0xf]
      %v801 = vld [vmem:[%s1 + $0x520] sm:$0xf]
      %v802 = vld [vmem:[%s1 + $0x524] sm:$0xf]
      %v803 = vld [vmem:[%s1 + $0x528] sm:$0xf]
      %v804 = vld [vmem:[%s1 + $0x52c] sm:$0xf]
      %v805 = vld [vmem:[%s1 + $0x530] sm:$0xf]
      %v806 = vld [vmem:[%s1 + $0x534] sm:$0xf]
      %v807 = vld [vmem:[%s1 + $0x538] sm:$0xf]
      %v808 = vld [vmem:[%s1 + $0x53c] sm:$0xf]
      %v809 = vld [vmem:[%s1 + $0x540] sm:$0xf]
      %v810 = vld [vmem:[%s1 + $0x544] sm:$0xf]
      %v811 = vld [vmem:[%s1 + $0x548] sm:$0xf]
      %v812 = vld [vmem:[%s1 + $0x54c] sm:$0xf]
      %v813 = vld [vmem:[%s1 + $0x550] sm:$0xf]
      %v814 = vld [vmem:[%s1 + $0x554] sm:$0xf]
      %v815 = vld [vmem:[%s1 + $0x558] sm:$0xf]
      %v816 = vld [vmem:[%s1 + $0x55c] sm:$0xf]
      %v817 = vld [vmem:[%s1 + $0x560] sm:$0xf]
      %v818 = vld [vmem:[%s1 + $0x564] sm:$0xf]
      %v819 = vld [vmem:[%s1 + $0x568] sm:$0xf]
      %v820 = vld [vmem:[%s1 + $0x56c] sm:$0xf]
      %v821 = vld [vmem:[%s1 + $0x570] sm:$0xf]
      %v822 = vld [vmem:[%s1 + $0x574] sm:$0xf]
      %v823 = vld [vmem:[%s1 + $0x578] sm:$0xf]
      %v824 = vld [vmem:[%s1 + $0x57c] sm:$0xf]
      %v825 = vld [vmem:[%s1 + $0x580] sm:$0xf]
      %v826 = vld [vmem:[%s1 + $0x584] sm:$0xf]
      %v827 = vld [vmem:[%s1 + $0x588] sm:$0xf]
      %v828 = vld [vmem:[%s1 + $0x58c] sm:$0xf]
      %v829 = vld [vmem:[%s1 + $0x590] sm:$0xf]
      %v830 = vld [vmem:[%s1 + $0x594] sm:$0xf]
      %v831 = vld [vmem:[%s1 + $0x598] sm:$0xf]
      %v832 = vld [vmem:[%s1 + $0x59c] sm:$0xf]
      %v833 = vld [vmem:[%s1 + $0x5a0] sm:$0xf]
      %v834 = vld [vmem:[%s1 + $0x5a4] sm:$0xf]
      %v835 = vld [vmem:[%s1 + $0x5a8] sm:$0xf]
      %v836 = vld [vmem:[%s1 + $0x5ac] sm:$0xf]
      %v837 = vld [vmem:[%s1 + $0x5b0] sm:$0xf]
      %v838 = vld [vmem:[%s1 + $0x5b4] sm:$0xf]
      %v839 = vld [vmem:[%s1 + $0x5b8] sm:$0xf]
      %v840 = vld [vmem:[%s1 + $0x5bc] sm:$0xf]
      %v841 = vld [vmem:[%s1 + $0x5c0] sm:$0xf]
      %v842 = vld [vmem:[%s1 + $0x5c4] sm:$0xf]
      %v843 = vld [vmem:[%s1 + $0x5c8] sm:$0xf]
      %v844 = vld [vmem:[%s1 + $0x5cc] sm:$0xf]
      %v845 = vld [vmem:[%s1 + $0x5d0] sm:$0xf]
      %v846 = vld [vmem:[%s1 + $0x5d4] sm:$0xf]
      %v847 = vld [vmem:[%s1 + $0x5d8] sm:$0xf]
      %v848 = vld [vmem:[%s1 + $0x5dc] sm:$0xf]
      %v849 = vld [vmem:[%s1 + $0x5e0] sm:$0xf]
      %v850 = vld [vmem:[%s1 + $0x5e4] sm:$0xf]
      %v851 = vld [vmem:[%s1 + $0x5e8] sm:$0xf]
      %v852 = vld [vmem:[%s1 + $0x5ec] sm:$0xf]
      %v853 = vld [vmem:[%s1 + $0x5f0] sm:$0xf]
      %v854 = vld [vmem:[%s1 + $0x5f4] sm:$0xf]
      %v855 = vld [vmem:[%s1 + $0x5f8] sm:$0xf]
      %v856 = vld [vmem:[%s1 + $0x5fc] sm:$0xf]
      %v857 = vld [vmem:[%s1 + $0x600] sm:$0xf]
      %v858 = vld [vmem:[%s1 + $0x604] sm:$0xf]
      %v859 = vld [vmem:[%s1 + $0x608] sm:$0xf]
      %v860 = vld [vmem:[%s1 + $0x60c] sm:$0xf]
      %v861 = vld [vmem:[%s1 + $0x610] sm:$0xf]
      %v862 = vld [vmem:[%s1 + $0x614] sm:$0xf]
      %v863 = vld [vmem:[%s1 + $0x618] sm:$0xf]
      %v864 = vld [vmem:[%s1 + $0x61c] sm:$0xf]
      %v865 = vld [vmem:[%s1 + $0x620] sm:$0xf]
      %v866 = vld [vmem:[%s1 + $0x624] sm:$0xf]
      %v867 = vld [vmem:[%s1 + $0x628] sm:$0xf]
      %v868 = vld [vmem:[%s1 + $0x62c] sm:$0xf]
      %v869 = vld [vmem:[%s1 + $0x630] sm:$0xf]
      %v870 = vld [vmem:[%s1 + $0x634] sm:$0xf]
      %v871 = vld [vmem:[%s1 + $0x638] sm:$0xf]
      %v872 = vld [vmem:[%s1 + $0x63c] sm:$0xf]
      %v873 = vld [vmem:[%s1 + $0x640] sm:$0xf]
      %v874 = vld [vmem:[%s1 + $0x644] sm:$0xf]
      %v875 = vld [vmem:[%s1 + $0x648] sm:$0xf]
      %v876 = vld [vmem:[%s1 + $0x64c] sm:$0xf]
      %v877 = vld [vmem:[%s1 + $0x650] sm:$0xf]
      %v878 = vld [vmem:[%s1 + $0x654] sm:$0xf]
      %v879 = vld [vmem:[%s1 + $0x658] sm:$0xf]
      %v880 = vld [vmem:[%s1 + $0x65c] sm:$0xf]
      %v881 = vld [vmem:[%s1 + $0x660] sm:$0xf]
      %v882 = vld [vmem:[%s1 + $0x664] sm:$0xf]
      %v883 = vld [vmem:[%s1 + $0x668] sm:$0xf]
      %v884 = vld [vmem:[%s1 + $0x66c] sm:$0xf]
      %v885 = vld [vmem:[%s1 + $0x670] sm:$0xf]
      %v886 = vld [vmem:[%s1 + $0x674] sm:$0xf]
      %v887 = vld [vmem:[%s1 + $0x678] sm:$0xf]
      %v888 = vld [vmem:[%s1 + $0x67c] sm:$0xf]
      %v889 = vld [vmem:[%s1 + $0x680] sm:$0xf]
      %v890 = vld [vmem:[%s1 + $0x684] sm:$0xf]
      %v891 = vld [vmem:[%s1 + $0x688] sm:$0xf]
      %v892 = vld [vmem:[%s1 + $0x68c] sm:$0xf]
      %v893 = vld [vmem:[%s1 + $0x690] sm:$0xf]
      %v894 = vld [vmem:[%s1 + $0x694] sm:$0xf]
      %v895 = vld [vmem:[%s1 + $0x698] sm:$0xf]
      %v896 = vld [vmem:[%s1 + $0x69c] sm:$0xf]
      %v897 = vld [vmem:[%s1 + $0x6a0] sm:$0xf]
      %v898 = vld [vmem:[%s1 + $0x6a4] sm:$0xf]
      %v899 = vld [vmem:[%s1 + $0x6a8] sm:$0xf]
      %v900 = vld [vmem:[%s1 + $0x6ac] sm:$0xf]
      %v901 = vld [vmem:[%s1 + $0x6b0] sm:$0xf]
      %v902 = vld [vmem:[%s1 + $0x6b4] sm:$0xf]
      %v903 = vld [vmem:[%s1 + $0x6b8] sm:$0xf]
      %v904 = vld [vmem:[%s1 + $0x6bc] sm:$0xf]
      %v905 = vld [vmem:[%s2] sm:$0x1]
      %v907 = vlaneseq
      %v908 = vshrl.u32 %v907, 7
      %v909 = vsub.s32 0, %v908
      %v910 = vrot.slane %v905, %v909
      %v1136 = vunpack.c.l.b16 %v249
      %v1137 = vunpack.c.h.b16 %v249
      %v1138 = vunpack.c.l.b16 %v250
      %v1139 = vunpack.c.h.b16 %v250
      %v1140 = vunpack.c.l.b16 %v251
      %v1141 = vunpack.c.h.b16 %v251
      %v1142 = vunpack.c.l.b16 %v252
      %v1143 = vunpack.c.h.b16 %v252
      %v1144 = vunpack.c.l.b16 %v253
      %v1145 = vunpack.c.h.b16 %v253
      %v1146 = vunpack.c.l.b16 %v254
      %v1147 = vunpack.c.h.b16 %v254
      %v1148 = vunpack.c.l.b16 %v255
      %v1149 = vunpack.c.h.b16 %v255
      %v1150 = vunpack.c.l.b16 %v256
      %v1151 = vunpack.c.h.b16 %v256
      %v1152 = vunpack.c.l.b16 %v257
      %v1153 = vunpack.c.h.b16 %v257
      %v1154 = vunpack.c.l.b16 %v258
      %v1155 = vunpack.c.h.b16 %v258
      %v1156 = vunpack.c.l.b16 %v259
      %v1157 = vunpack.c.h.b16 %v259
      %v1158 = vunpack.c.l.b16 %v260
      %v1159 = vunpack.c.h.b16 %v260
      %v1160 = vunpack.c.l.b16 %v261
      %v1161 = vunpack.c.h.b16 %v261
      %v1162 = vunpack.c.l.b16 %v262
      %v1163 = vunpack.c.l.b16 %v263
      %v1164 = vunpack.c.h.b16 %v263
      %v1165 = vunpack.c.l.b16 %v264
      %v1166 = vunpack.c.h.b16 %v264
      %v1167 = vunpack.c.l.b16 %v265
      %v1168 = vunpack.c.h.b16 %v265
      %v1169 = vunpack.c.l.b16 %v266
      %v1170 = vunpack.c.h.b16 %v266
      %v1171 = vunpack.c.l.b16 %v267
      %v1172 = vunpack.c.h.b16 %v267
      %v1173 = vunpack.c.l.b16 %v268
      %v1174 = vunpack.c.h.b16 %v268
      %v1175 = vunpack.c.l.b16 %v269
      %v1176 = vunpack.c.h.b16 %v269
      %v1177 = vunpack.c.l.b16 %v270
      %v1178 = vunpack.c.h.b16 %v270
      %v1179 = vunpack.c.l.b16 %v271
      %v1180 = vunpack.c.h.b16 %v271
      %v1181 = vunpack.c.l.b16 %v272
      %v1182 = vunpack.c.h.b16 %v272
      %v1183 = vunpack.c.l.b16 %v273
      %v1184 = vunpack.c.h.b16 %v273
      %v1185 = vunpack.c.l.b16 %v274
      %v1186 = vunpack.c.h.b16 %v274
      %v1187 = vunpack.c.l.b16 %v275
      %v1188 = vunpack.c.h.b16 %v275
      %v1189 = vunpack.c.l.b16 %v276
      %v1190 = vunpack.c.l.b16 %v277
      %v1191 = vunpack.c.h.b16 %v277
      %v1192 = vunpack.c.l.b16 %v278
      %v1193 = vunpack.c.h.b16 %v278
      %v1194 = vunpack.c.l.b16 %v279
      %v1195 = vunpack.c.h.b16 %v279
      %v1196 = vunpack.c.l.b16 %v280
      %v1197 = vunpack.c.h.b16 %v280
      %v1198 = vunpack.c.l.b16 %v281
      %v1199 = vunpack.c.h.b16 %v281
      %v1200 = vunpack.c.l.b16 %v282
      %v1201 = vunpack.c.h.b16 %v282
      %v1202 = vunpack.c.l.b16 %v283
      %v1203 = vunpack.c.h.b16 %v283
      %v1204 = vunpack.c.l.b16 %v284
      %v1205 = vunpack.c.h.b16 %v284
      %v1206 = vunpack.c.l.b16 %v285
      %v1207 = vunpack.c.h.b16 %v285
      %v1208 = vunpack.c.l.b16 %v286
      %v1209 = vunpack.c.h.b16 %v286
      %v1210 = vunpack.c.l.b16 %v287
      %v1211 = vunpack.c.h.b16 %v287
      %v1212 = vunpack.c.l.b16 %v288
      %v1213 = vunpack.c.h.b16 %v288
      %v1214 = vunpack.c.l.b16 %v289
      %v1215 = vunpack.c.h.b16 %v289
      %v1216 = vunpack.c.l.b16 %v290
      %v1217 = vunpack.c.l.b16 %v291
      %v1218 = vunpack.c.h.b16 %v291
      %v1219 = vunpack.c.l.b16 %v292
      %v1220 = vunpack.c.h.b16 %v292
      %v1221 = vunpack.c.l.b16 %v293
      %v1222 = vunpack.c.h.b16 %v293
      %v1223 = vunpack.c.l.b16 %v294
      %v1224 = vunpack.c.h.b16 %v294
      %v1225 = vunpack.c.l.b16 %v295
      %v1226 = vunpack.c.h.b16 %v295
      %v1227 = vunpack.c.l.b16 %v296
      %v1228 = vunpack.c.h.b16 %v296
      %v1229 = vunpack.c.l.b16 %v297
      %v1230 = vunpack.c.h.b16 %v297
      %v1231 = vunpack.c.l.b16 %v298
      %v1232 = vunpack.c.h.b16 %v298
      %v1233 = vunpack.c.l.b16 %v299
      %v1234 = vunpack.c.h.b16 %v299
      %v1235 = vunpack.c.l.b16 %v300
      %v1236 = vunpack.c.h.b16 %v300
      %v1237 = vunpack.c.l.b16 %v301
      %v1238 = vunpack.c.h.b16 %v301
      %v1239 = vunpack.c.l.b16 %v302
      %v1240 = vunpack.c.h.b16 %v302
      %v1241 = vunpack.c.l.b16 %v303
      %v1242 = vunpack.c.h.b16 %v303
      %v1243 = vunpack.c.l.b16 %v304
      %v1244 = vunpack.c.l.b16 %v305
      %v1245 = vunpack.c.h.b16 %v305
      %v1246 = vunpack.c.l.b16 %v306
      %v1247 = vunpack.c.h.b16 %v306
      %v1248 = vunpack.c.l.b16 %v307
      %v1249 = vunpack.c.h.b16 %v307
      %v1250 = vunpack.c.l.b16 %v308
      %v1251 = vunpack.c.h.b16 %v308
      %v1252 = vunpack.c.l.b16 %v309
      %v1253 = vunpack.c.h.b16 %v309
      %v1254 = vunpack.c.l.b16 %v310
      %v1255 = vunpack.c.h.b16 %v310
      %v1256 = vunpack.c.l.b16 %v311
      %v1257 = vunpack.c.h.b16 %v311
      %v1258 = vunpack.c.l.b16 %v312
      %v1259 = vunpack.c.h.b16 %v312
      %v1260 = vunpack.c.l.b16 %v313
      %v1261 = vunpack.c.h.b16 %v313
      %v1262 = vunpack.c.l.b16 %v314
      %v1263 = vunpack.c.h.b16 %v314
      %v1264 = vunpack.c.l.b16 %v315
      %v1265 = vunpack.c.h.b16 %v315
      %v1266 = vunpack.c.l.b16 %v316
      %v1267 = vunpack.c.h.b16 %v316
      %v1268 = vunpack.c.l.b16 %v317
      %v1269 = vunpack.c.h.b16 %v317
      %v1270 = vunpack.c.l.b16 %v318
      %v1271 = vunpack.c.l.b16 %v319
      %v1272 = vunpack.c.h.b16 %v319
      %v1273 = vunpack.c.l.b16 %v320
      %v1274 = vunpack.c.h.b16 %v320
      %v1275 = vunpack.c.l.b16 %v321
      %v1276 = vunpack.c.h.b16 %v321
      %v1277 = vunpack.c.l.b16 %v322
      %v1278 = vunpack.c.h.b16 %v322
      %v1279 = vunpack.c.l.b16 %v323
      %v1280 = vunpack.c.h.b16 %v323
      %v1281 = vunpack.c.l.b16 %v324
      %v1282 = vunpack.c.h.b16 %v324
      %v1283 = vunpack.c.l.b16 %v325
      %v1284 = vunpack.c.h.b16 %v325
      %v1285 = vunpack.c.l.b16 %v326
      %v1286 = vunpack.c.h.b16 %v326
      %v1287 = vunpack.c.l.b16 %v327
      %v1288 = vunpack.c.h.b16 %v327
      %v1289 = vunpack.c.l.b16 %v328
      %v1290 = vunpack.c.h.b16 %v328
      %v1291 = vunpack.c.l.b16 %v329
      %v1292 = vunpack.c.h.b16 %v329
      %v1293 = vunpack.c.l.b16 %v330
      %v1294 = vunpack.c.h.b16 %v330
      %v1295 = vunpack.c.l.b16 %v331
      %v1296 = vunpack.c.h.b16 %v331
      %v1297 = vunpack.c.l.b16 %v332
      %v1298 = vunpack.c.l.b16 %v333
      %v1299 = vunpack.c.h.b16 %v333
      %v1300 = vunpack.c.l.b16 %v334
      %v1301 = vunpack.c.h.b16 %v334
      %v1302 = vunpack.c.l.b16 %v335
      %v1303 = vunpack.c.h.b16 %v335
      %v1304 = vunpack.c.l.b16 %v336
      %v1305 = vunpack.c.h.b16 %v336
      %v1306 = vunpack.c.l.b16 %v337
      %v1307 = vunpack.c.h.b16 %v337
      %v1308 = vunpack.c.l.b16 %v338
      %v1309 = vunpack.c.h.b16 %v338
      %v1310 = vunpack.c.l.b16 %v339
      %v1311 = vunpack.c.h.b16 %v339
      %v1312 = vunpack.c.l.b16 %v340
      %v1313 = vunpack.c.h.b16 %v340
      %v1314 = vunpack.c.l.b16 %v341
      %v1315 = vunpack.c.h.b16 %v341
      %v1316 = vunpack.c.l.b16 %v342
      %v1317 = vunpack.c.h.b16 %v342
      %v1318 = vunpack.c.l.b16 %v343
      %v1319 = vunpack.c.h.b16 %v343
      %v1320 = vunpack.c.l.b16 %v344
      %v1321 = vunpack.c.h.b16 %v344
      %v1322 = vunpack.c.l.b16 %v345
      %v1323 = vunpack.c.h.b16 %v345
      %v1324 = vunpack.c.l.b16 %v346
      %v1325 = vunpack.c.l.b16 %v347
      %v1326 = vunpack.c.h.b16 %v347
      %v1327 = vunpack.c.l.b16 %v348
      %v1328 = vunpack.c.h.b16 %v348
      %v1329 = vunpack.c.l.b16 %v349
      %v1330 = vunpack.c.h.b16 %v349
      %v1331 = vunpack.c.l.b16 %v350
      %v1332 = vunpack.c.h.b16 %v350
      %v1333 = vunpack.c.l.b16 %v351
      %v1334 = vunpack.c.h.b16 %v351
      %v1335 = vunpack.c.l.b16 %v352
      %v1336 = vunpack.c.h.b16 %v352
      %v1337 = vunpack.c.l.b16 %v353
      %v1338 = vunpack.c.h.b16 %v353
      %v1339 = vunpack.c.l.b16 %v354
      %v1340 = vunpack.c.h.b16 %v354
      %v1341 = vunpack.c.l.b16 %v355
      %v1342 = vunpack.c.h.b16 %v355
      %v1343 = vunpack.c.l.b16 %v356
      %v1344 = vunpack.c.h.b16 %v356
      %v1345 = vunpack.c.l.b16 %v357
      %v1346 = vunpack.c.h.b16 %v357
      %v1347 = vunpack.c.l.b16 %v358
      %v1348 = vunpack.c.h.b16 %v358
      %v1349 = vunpack.c.l.b16 %v359
      %v1350 = vunpack.c.h.b16 %v359
      %v1351 = vunpack.c.l.b16 %v360
      %v1352 = vunpack.c.l.b16 %v361
      %v1353 = vunpack.c.h.b16 %v361
      %v1354 = vunpack.c.l.b16 %v362
      %v1355 = vunpack.c.h.b16 %v362
      %v1356 = vunpack.c.l.b16 %v363
      %v1357 = vunpack.c.h.b16 %v363
      %v1358 = vunpack.c.l.b16 %v364
      %v1359 = vunpack.c.h.b16 %v364
      %v1360 = vunpack.c.l.b16 %v365
      %v1361 = vunpack.c.h.b16 %v365
      %v1362 = vunpack.c.l.b16 %v366
      %v1363 = vunpack.c.h.b16 %v366
      %v1364 = vunpack.c.l.b16 %v367
      %v1365 = vunpack.c.h.b16 %v367
      %v1366 = vunpack.c.l.b16 %v368
      %v1367 = vunpack.c.h.b16 %v368
      %v1368 = vunpack.c.l.b16 %v369
      %v1369 = vunpack.c.h.b16 %v369
      %v1370 = vunpack.c.l.b16 %v370
      %v1371 = vunpack.c.h.b16 %v370
      %v1372 = vunpack.c.l.b16 %v371
      %v1373 = vunpack.c.h.b16 %v371
      %v1374 = vunpack.c.l.b16 %v372
      %v1375 = vunpack.c.h.b16 %v372
      %v1376 = vunpack.c.l.b16 %v373
      %v1377 = vunpack.c.h.b16 %v373
      %v1378 = vunpack.c.l.b16 %v374
      %v1379 = vunpack.c.l.b16 %v375
      %v1380 = vunpack.c.h.b16 %v375
      %v1381 = vunpack.c.l.b16 %v376
      %v1382 = vunpack.c.h.b16 %v376
      %v1383 = vunpack.c.l.b16 %v377
      %v1384 = vunpack.c.h.b16 %v377
      %v1385 = vunpack.c.l.b16 %v378
      %v1386 = vunpack.c.h.b16 %v378
      %v1387 = vunpack.c.l.b16 %v379
      %v1388 = vunpack.c.h.b16 %v379
      %v1389 = vunpack.c.l.b16 %v380
      %v1390 = vunpack.c.h.b16 %v380
      %v1391 = vunpack.c.l.b16 %v381
      %v1392 = vunpack.c.h.b16 %v381
      %v1393 = vunpack.c.l.b16 %v382
      %v1394 = vunpack.c.h.b16 %v382
      %v1395 = vunpack.c.l.b16 %v383
      %v1396 = vunpack.c.h.b16 %v383
      %v1397 = vunpack.c.l.b16 %v384
      %v1398 = vunpack.c.h.b16 %v384
      %v1399 = vunpack.c.l.b16 %v385
      %v1400 = vunpack.c.h.b16 %v385
      %v1401 = vunpack.c.l.b16 %v386
      %v1402 = vunpack.c.h.b16 %v386
      %v1403 = vunpack.c.l.b16 %v387
      %v1404 = vunpack.c.h.b16 %v387
      %v1405 = vunpack.c.l.b16 %v388
      %v1406 = vunpack.c.l.b16 %v389
      %v1407 = vunpack.c.h.b16 %v389
      %v1408 = vunpack.c.l.b16 %v390
      %v1409 = vunpack.c.h.b16 %v390
      %v1410 = vunpack.c.l.b16 %v391
      %v1411 = vunpack.c.h.b16 %v391
      %v1412 = vunpack.c.l.b16 %v392
      %v1413 = vunpack.c.h.b16 %v392
      %v1414 = vunpack.c.l.b16 %v393
      %v1415 = vunpack.c.h.b16 %v393
      %v1416 = vunpack.c.l.b16 %v394
      %v1417 = vunpack.c.h.b16 %v394
      %v1418 = vunpack.c.l.b16 %v395
      %v1419 = vunpack.c.h.b16 %v395
      %v1420 = vunpack.c.l.b16 %v396
      %v1421 = vunpack.c.h.b16 %v396
      %v1422 = vunpack.c.l.b16 %v397
      %v1423 = vunpack.c.h.b16 %v397
      %v1424 = vunpack.c.l.b16 %v398
      %v1425 = vunpack.c.h.b16 %v398
      %v1426 = vunpack.c.l.b16 %v399
      %v1427 = vunpack.c.h.b16 %v399
      %v1428 = vunpack.c.l.b16 %v400
      %v1429 = vunpack.c.h.b16 %v400
      %v1430 = vunpack.c.l.b16 %v401
      %v1431 = vunpack.c.h.b16 %v401
      %v1432 = vunpack.c.l.b16 %v402
      %v1433 = vunpack.c.l.b16 %v403
      %v1434 = vunpack.c.h.b16 %v403
      %v1435 = vunpack.c.l.b16 %v404
      %v1436 = vunpack.c.h.b16 %v404
      %v1437 = vunpack.c.l.b16 %v405
      %v1438 = vunpack.c.h.b16 %v405
      %v1439 = vunpack.c.l.b16 %v406
      %v1440 = vunpack.c.h.b16 %v406
      %v1441 = vunpack.c.l.b16 %v407
      %v1442 = vunpack.c.h.b16 %v407
      %v1443 = vunpack.c.l.b16 %v408
      %v1444 = vunpack.c.h.b16 %v408
      %v1445 = vunpack.c.l.b16 %v409
      %v1446 = vunpack.c.h.b16 %v409
      %v1447 = vunpack.c.l.b16 %v410
      %v1448 = vunpack.c.h.b16 %v410
      %v1449 = vunpack.c.l.b16 %v411
      %v1450 = vunpack.c.h.b16 %v411
      %v1451 = vunpack.c.l.b16 %v412
      %v1452 = vunpack.c.h.b16 %v412
      %v1453 = vunpack.c.l.b16 %v413
      %v1454 = vunpack.c.h.b16 %v413
      %v1455 = vunpack.c.l.b16 %v414
      %v1456 = vunpack.c.h.b16 %v414
      %v1457 = vunpack.c.l.b16 %v415
      %v1458 = vunpack.c.h.b16 %v415
      %v1459 = vunpack.c.l.b16 %v416
      %v1460 = vunpack.c.l.b16 %v417
      %v1461 = vunpack.c.h.b16 %v417
      %v1462 = vunpack.c.l.b16 %v418
      %v1463 = vunpack.c.h.b16 %v418
      %v1464 = vunpack.c.l.b16 %v419
      %v1465 = vunpack.c.h.b16 %v419
      %v1466 = vunpack.c.l.b16 %v420
      %v1467 = vunpack.c.h.b16 %v420
      %v1468 = vunpack.c.l.b16 %v421
      %v1469 = vunpack.c.h.b16 %v421
      %v1470 = vunpack.c.l.b16 %v422
      %v1471 = vunpack.c.h.b16 %v422
      %v1472 = vunpack.c.l.b16 %v423
      %v1473 = vunpack.c.h.b16 %v423
      %v1474 = vunpack.c.l.b16 %v424
      %v1475 = vunpack.c.h.b16 %v424
      %v1476 = vunpack.c.l.b16 %v425
      %v1477 = vunpack.c.h.b16 %v425
      %v1478 = vunpack.c.l.b16 %v426
      %v1479 = vunpack.c.h.b16 %v426
      %v1480 = vunpack.c.l.b16 %v427
      %v1481 = vunpack.c.h.b16 %v427
      %v1482 = vunpack.c.l.b16 %v428
      %v1483 = vunpack.c.h.b16 %v428
      %v1484 = vunpack.c.l.b16 %v429
      %v1485 = vunpack.c.h.b16 %v429
      %v1486 = vunpack.c.l.b16 %v430
      %v1487 = vunpack.c.l.b16 %v431
      %v1488 = vunpack.c.h.b16 %v431
      %v1489 = vunpack.c.l.b16 %v432
      %v1490 = vunpack.c.h.b16 %v432
      %v1491 = vunpack.c.l.b16 %v433
      %v1492 = vunpack.c.h.b16 %v433
      %v1493 = vunpack.c.l.b16 %v434
      %v1494 = vunpack.c.h.b16 %v434
      %v1495 = vunpack.c.l.b16 %v435
      %v1496 = vunpack.c.h.b16 %v435
      %v1497 = vunpack.c.l.b16 %v436
      %v1498 = vunpack.c.h.b16 %v436
      %v1499 = vunpack.c.l.b16 %v437
      %v1500 = vunpack.c.h.b16 %v437
      %v1501 = vunpack.c.l.b16 %v438
      %v1502 = vunpack.c.h.b16 %v438
      %v1503 = vunpack.c.l.b16 %v439
      %v1504 = vunpack.c.h.b16 %v439
      %v1505 = vunpack.c.l.b16 %v440
      %v1506 = vunpack.c.h.b16 %v440
      %v1507 = vunpack.c.l.b16 %v441
      %v1508 = vunpack.c.h.b16 %v441
      %v1509 = vunpack.c.l.b16 %v442
      %v1510 = vunpack.c.h.b16 %v442
      %v1511 = vunpack.c.l.b16 %v443
      %v1512 = vunpack.c.h.b16 %v443
      %v1513 = vunpack.c.l.b16 %v444
      %v1514 = vunpack.c.l.b16 %v445
      %v1515 = vunpack.c.h.b16 %v445
      %v1516 = vunpack.c.l.b16 %v446
      %v1517 = vunpack.c.h.b16 %v446
      %v1518 = vunpack.c.l.b16 %v447
      %v1519 = vunpack.c.h.b16 %v447
      %v1520 = vunpack.c.l.b16 %v448
      %v1521 = vunpack.c.h.b16 %v448
      %v1522 = vunpack.c.l.b16 %v449
      %v1523 = vunpack.c.h.b16 %v449
      %v1524 = vunpack.c.l.b16 %v450
      %v1525 = vunpack.c.h.b16 %v450
      %v1526 = vunpack.c.l.b16 %v451
      %v1527 = vunpack.c.h.b16 %v451
      %v1528 = vunpack.c.l.b16 %v452
      %v1529 = vunpack.c.h.b16 %v452
      %v1530 = vunpack.c.l.b16 %v453
      %v1531 = vunpack.c.h.b16 %v453
      %v1532 = vunpack.c.l.b16 %v454
      %v1533 = vunpack.c.h.b16 %v454
      %v1534 = vunpack.c.l.b16 %v455
      %v1535 = vunpack.c.h.b16 %v455
      %v1536 = vunpack.c.l.b16 %v456
      %v1537 = vunpack.c.h.b16 %v456
      %v1538 = vunpack.c.l.b16 %v457
      %v1539 = vunpack.c.h.b16 %v457
      %v1540 = vunpack.c.l.b16 %v458
      %v1541 = vunpack.c.l.b16 %v459
      %v1542 = vunpack.c.h.b16 %v459
      %v1543 = vunpack.c.l.b16 %v460
      %v1544 = vunpack.c.h.b16 %v460
      %v1545 = vunpack.c.l.b16 %v461
      %v1546 = vunpack.c.h.b16 %v461
      %v1547 = vunpack.c.l.b16 %v462
      %v1548 = vunpack.c.h.b16 %v462
      %v1549 = vunpack.c.l.b16 %v463
      %v1550 = vunpack.c.h.b16 %v463
      %v1551 = vunpack.c.l.b16 %v464
      %v1552 = vunpack.c.h.b16 %v464
      %v1553 = vunpack.c.l.b16 %v465
      %v1554 = vunpack.c.h.b16 %v465
      %v1555 = vunpack.c.l.b16 %v466
      %v1556 = vunpack.c.h.b16 %v466
      %v1557 = vunpack.c.l.b16 %v467
      %v1558 = vunpack.c.h.b16 %v467
      %v1559 = vunpack.c.l.b16 %v468
      %v1560 = vunpack.c.h.b16 %v468
      %v1561 = vunpack.c.l.b16 %v469
      %v1562 = vunpack.c.h.b16 %v469
      %v1563 = vunpack.c.l.b16 %v470
      %v1564 = vunpack.c.h.b16 %v470
      %v1565 = vunpack.c.l.b16 %v471
      %v1566 = vunpack.c.h.b16 %v471
      %v1567 = vunpack.c.l.b16 %v472
      %v1568 = vpack.c.b16 %v1163, %v1136
      %v1569 = vpack.c.b16 %v1164, %v1137
      %v1570 = vpack.c.b16 %v1165, %v1138
      %v1571 = vpack.c.b16 %v1166, %v1139
      %v1572 = vpack.c.b16 %v1167, %v1140
      %v1573 = vpack.c.b16 %v1168, %v1141
      %v1574 = vpack.c.b16 %v1169, %v1142
      %v1575 = vpack.c.b16 %v1170, %v1143
      %v1576 = vpack.c.b16 %v1171, %v1144
      %v1577 = vpack.c.b16 %v1172, %v1145
      %v1578 = vpack.c.b16 %v1173, %v1146
      %v1579 = vpack.c.b16 %v1174, %v1147
      %v1580 = vpack.c.b16 %v1175, %v1148
      %v1581 = vpack.c.b16 %v1176, %v1149
      %v1582 = vpack.c.b16 %v1177, %v1150
      %v1583 = vpack.c.b16 %v1178, %v1151
      %v1584 = vpack.c.b16 %v1179, %v1152
      %v1585 = vpack.c.b16 %v1180, %v1153
      %v1586 = vpack.c.b16 %v1181, %v1154
      %v1587 = vpack.c.b16 %v1182, %v1155
      %v1588 = vpack.c.b16 %v1183, %v1156
      %v1589 = vpack.c.b16 %v1184, %v1157
      %v1590 = vpack.c.b16 %v1185, %v1158
      %v1591 = vpack.c.b16 %v1186, %v1159
      %v1592 = vpack.c.b16 %v1187, %v1160
      %v1593 = vpack.c.b16 %v1188, %v1161
      %v1594 = vpack.c.b16 %v1189, %v1162
      %v1595 = vpack.c.b16 %v1217, %v1190
      %v1596 = vpack.c.b16 %v1218, %v1191
      %v1597 = vpack.c.b16 %v1219, %v1192
      %v1598 = vpack.c.b16 %v1220, %v1193
      %v1599 = vpack.c.b16 %v1221, %v1194
      %v1600 = vpack.c.b16 %v1222, %v1195
      %v1601 = vpack.c.b16 %v1223, %v1196
      %v1602 = vpack.c.b16 %v1224, %v1197
      %v1603 = vpack.c.b16 %v1225, %v1198
      %v1604 = vpack.c.b16 %v1226, %v1199
      %v1605 = vpack.c.b16 %v1227, %v1200
      %v1606 = vpack.c.b16 %v1228, %v1201
      %v1607 = vpack.c.b16 %v1229, %v1202
      %v1608 = vpack.c.b16 %v1230, %v1203
      %v1609 = vpack.c.b16 %v1231, %v1204
      %v1610 = vpack.c.b16 %v1232, %v1205
      %v1611 = vpack.c.b16 %v1233, %v1206
      %v1612 = vpack.c.b16 %v1234, %v1207
      %v1613 = vpack.c.b16 %v1235, %v1208
      %v1614 = vpack.c.b16 %v1236, %v1209
      %v1615 = vpack.c.b16 %v1237, %v1210
      %v1616 = vpack.c.b16 %v1238, %v1211
      %v1617 = vpack.c.b16 %v1239, %v1212
      %v1618 = vpack.c.b16 %v1240, %v1213
      %v1619 = vpack.c.b16 %v1241, %v1214
      %v1620 = vpack.c.b16 %v1242, %v1215
      %v1621 = vpack.c.b16 %v1243, %v1216
      %v1622 = vpack.c.b16 %v1271, %v1244
      %v1623 = vpack.c.b16 %v1272, %v1245
      %v1624 = vpack.c.b16 %v1273, %v1246
      %v1625 = vpack.c.b16 %v1274, %v1247
      %v1626 = vpack.c.b16 %v1275, %v1248
      %v1627 = vpack.c.b16 %v1276, %v1249
      %v1628 = vpack.c.b16 %v1277, %v1250
      %v1629 = vpack.c.b16 %v1278, %v1251
      %v1630 = vpack.c.b16 %v1279, %v1252
      %v1631 = vpack.c.b16 %v1280, %v1253
      %v1632 = vpack.c.b16 %v1281, %v1254
      %v1633 = vpack.c.b16 %v1282, %v1255
      %v1634 = vpack.c.b16 %v1283, %v1256
      %v1635 = vpack.c.b16 %v1284, %v1257
      %v1636 = vpack.c.b16 %v1285, %v1258
      %v1637 = vpack.c.b16 %v1286, %v1259
      %v1638 = vpack.c.b16 %v1287, %v1260
      %v1639 = vpack.c.b16 %v1288, %v1261
      %v1640 = vpack.c.b16 %v1289, %v1262
      %v1641 = vpack.c.b16 %v1290, %v1263
      %v1642 = vpack.c.b16 %v1291, %v1264
      %v1643 = vpack.c.b16 %v1292, %v1265
      %v1644 = vpack.c.b16 %v1293, %v1266
      %v1645 = vpack.c.b16 %v1294, %v1267
      %v1646 = vpack.c.b16 %v1295, %v1268
      %v1647 = vpack.c.b16 %v1296, %v1269
      %v1648 = vpack.c.b16 %v1297, %v1270
      %v1649 = vpack.c.b16 %v1325, %v1298
      %v1650 = vpack.c.b16 %v1326, %v1299
      %v1651 = vpack.c.b16 %v1327, %v1300
      %v1652 = vpack.c.b16 %v1328, %v1301
      %v1653 = vpack.c.b16 %v1329, %v1302
      %v1654 = vpack.c.b16 %v1330, %v1303
      %v1655 = vpack.c.b16 %v1331, %v1304
      %v1656 = vpack.c.b16 %v1332, %v1305
      %v1657 = vpack.c.b16 %v1333, %v1306
      %v1658 = vpack.c.b16 %v1334, %v1307
      %v1659 = vpack.c.b16 %v1335, %v1308
      %v1660 = vpack.c.b16 %v1336, %v1309
      %v1661 = vpack.c.b16 %v1337, %v1310
      %v1662 = vpack.c.b16 %v1338, %v1311
      %v1663 = vpack.c.b16 %v1339, %v1312
      %v1664 = vpack.c.b16 %v1340, %v1313
      %v1665 = vpack.c.b16 %v1341, %v1314
      %v1666 = vpack.c.b16 %v1342, %v1315
      %v1667 = vpack.c.b16 %v1343, %v1316
      %v1668 = vpack.c.b16 %v1344, %v1317
      %v1669 = vpack.c.b16 %v1345, %v1318
      %v1670 = vpack.c.b16 %v1346, %v1319
      %v1671 = vpack.c.b16 %v1347, %v1320
      %v1672 = vpack.c.b16 %v1348, %v1321
      %v1673 = vpack.c.b16 %v1349, %v1322
      %v1674 = vpack.c.b16 %v1350, %v1323
      %v1675 = vpack.c.b16 %v1351, %v1324
      %v1676 = vpack.c.b16 %v1379, %v1352
      %v1677 = vpack.c.b16 %v1380, %v1353
      %v1678 = vpack.c.b16 %v1381, %v1354
      %v1679 = vpack.c.b16 %v1382, %v1355
      %v1680 = vpack.c.b16 %v1383, %v1356
      %v1681 = vpack.c.b16 %v1384, %v1357
      %v1682 = vpack.c.b16 %v1385, %v1358
      %v1683 = vpack.c.b16 %v1386, %v1359
      %v1684 = vpack.c.b16 %v1387, %v1360
      %v1685 = vpack.c.b16 %v1388, %v1361
      %v1686 = vpack.c.b16 %v1389, %v1362
      %v1687 = vpack.c.b16 %v1390, %v1363
      %v1688 = vpack.c.b16 %v1391, %v1364
      %v1689 = vpack.c.b16 %v1392, %v1365
      %v1690 = vpack.c.b16 %v1393, %v1366
      %v1691 = vpack.c.b16 %v1394, %v1367
      %v1692 = vpack.c.b16 %v1395, %v1368
      %v1693 = vpack.c.b16 %v1396, %v1369
      %v1694 = vpack.c.b16 %v1397, %v1370
      %v1695 = vpack.c.b16 %v1398, %v1371
      %v1696 = vpack.c.b16 %v1399, %v1372
      %v1697 = vpack.c.b16 %v1400, %v1373
      %v1698 = vpack.c.b16 %v1401, %v1374
      %v1699 = vpack.c.b16 %v1402, %v1375
      %v1700 = vpack.c.b16 %v1403, %v1376
      %v1701 = vpack.c.b16 %v1404, %v1377
      %v1702 = vpack.c.b16 %v1405, %v1378
      %v1703 = vpack.c.b16 %v1433, %v1406
      %v1704 = vpack.c.b16 %v1434, %v1407
      %v1705 = vpack.c.b16 %v1435, %v1408
      %v1706 = vpack.c.b16 %v1436, %v1409
      %v1707 = vpack.c.b16 %v1437, %v1410
      %v1708 = vpack.c.b16 %v1438, %v1411
      %v1709 = vpack.c.b16 %v1439, %v1412
      %v1710 = vpack.c.b16 %v1440, %v1413
      %v1711 = vpack.c.b16 %v1441, %v1414
      %v1712 = vpack.c.b16 %v1442, %v1415
      %v1713 = vpack.c.b16 %v1443, %v1416
      %v1714 = vpack.c.b16 %v1444, %v1417
      %v1715 = vpack.c.b16 %v1445, %v1418
      %v1716 = vpack.c.b16 %v1446, %v1419
      %v1717 = vpack.c.b16 %v1447, %v1420
      %v1718 = vpack.c.b16 %v1448, %v1421
      %v1719 = vpack.c.b16 %v1449, %v1422
      %v1720 = vpack.c.b16 %v1450, %v1423
      %v1721 = vpack.c.b16 %v1451, %v1424
      %v1722 = vpack.c.b16 %v1452, %v1425
      %v1723 = vpack.c.b16 %v1453, %v1426
      %v1724 = vpack.c.b16 %v1454, %v1427
      %v1725 = vpack.c.b16 %v1455, %v1428
      %v1726 = vpack.c.b16 %v1456, %v1429
      %v1727 = vpack.c.b16 %v1457, %v1430
      %v1728 = vpack.c.b16 %v1458, %v1431
      %v1729 = vpack.c.b16 %v1459, %v1432
      %v1730 = vpack.c.b16 %v1487, %v1460
      %v1731 = vpack.c.b16 %v1488, %v1461
      %v1732 = vpack.c.b16 %v1489, %v1462
      %v1733 = vpack.c.b16 %v1490, %v1463
      %v1734 = vpack.c.b16 %v1491, %v1464
      %v1735 = vpack.c.b16 %v1492, %v1465
      %v1736 = vpack.c.b16 %v1493, %v1466
      %v1737 = vpack.c.b16 %v1494, %v1467
      %v1738 = vpack.c.b16 %v1495, %v1468
      %v1739 = vpack.c.b16 %v1496, %v1469
      %v1740 = vpack.c.b16 %v1497, %v1470
      %v1741 = vpack.c.b16 %v1498, %v1471
      %v1742 = vpack.c.b16 %v1499, %v1472
      %v1743 = vpack.c.b16 %v1500, %v1473
      %v1744 = vpack.c.b16 %v1501, %v1474
      %v1745 = vpack.c.b16 %v1502, %v1475
      %v1746 = vpack.c.b16 %v1503, %v1476
      %v1747 = vpack.c.b16 %v1504, %v1477
      %v1748 = vpack.c.b16 %v1505, %v1478
      %v1749 = vpack.c.b16 %v1506, %v1479
      %v1750 = vpack.c.b16 %v1507, %v1480
      %v1751 = vpack.c.b16 %v1508, %v1481
      %v1752 = vpack.c.b16 %v1509, %v1482
      %v1753 = vpack.c.b16 %v1510, %v1483
      %v1754 = vpack.c.b16 %v1511, %v1484
      %v1755 = vpack.c.b16 %v1512, %v1485
      %v1756 = vpack.c.b16 %v1513, %v1486
      %v1757 = vpack.c.b16 %v1541, %v1514
      %v1758 = vpack.c.b16 %v1542, %v1515
      %v1759 = vpack.c.b16 %v1543, %v1516
      %v1760 = vpack.c.b16 %v1544, %v1517
      %v1761 = vpack.c.b16 %v1545, %v1518
      %v1762 = vpack.c.b16 %v1546, %v1519
      %v1763 = vpack.c.b16 %v1547, %v1520
      %v1764 = vpack.c.b16 %v1548, %v1521
      %v1765 = vpack.c.b16 %v1549, %v1522
      %v1766 = vpack.c.b16 %v1550, %v1523
      %v1767 = vpack.c.b16 %v1551, %v1524
      %v1768 = vpack.c.b16 %v1552, %v1525
      %v1769 = vpack.c.b16 %v1553, %v1526
      %v1770 = vpack.c.b16 %v1554, %v1527
      %v1771 = vpack.c.b16 %v1555, %v1528
      %v1772 = vpack.c.b16 %v1556, %v1529
      %v1773 = vpack.c.b16 %v1557, %v1530
      %v1774 = vpack.c.b16 %v1558, %v1531
      %v1775 = vpack.c.b16 %v1559, %v1532
      %v1776 = vpack.c.b16 %v1560, %v1533
      %v1777 = vpack.c.b16 %v1561, %v1534
      %v1778 = vpack.c.b16 %v1562, %v1535
      %v1779 = vpack.c.b16 %v1563, %v1536
      %v1780 = vpack.c.b16 %v1564, %v1537
      %v1781 = vpack.c.b16 %v1565, %v1538
      %v1782 = vpack.c.b16 %v1566, %v1539
      %v1783 = vpack.c.b16 %v1567, %v1540
      %v2432 = vunpack.c.l.b16 %v473
      %v2433 = vunpack.c.l.b16 %v474
      %v2434 = vunpack.c.l.b16 %v475
      %v2435 = vunpack.c.l.b16 %v476
      %v2436 = vunpack.c.l.b16 %v477
      %v2437 = vunpack.c.l.b16 %v478
      %v2438 = vunpack.c.l.b16 %v479
      %v2439 = vunpack.c.l.b16 %v480
      %v2440 = vunpack.c.l.b16 %v481
      %v2441 = vunpack.c.l.b16 %v482
      %v2442 = vunpack.c.l.b16 %v483
      %v2443 = vunpack.c.l.b16 %v484
      %v2444 = vunpack.c.l.b16 %v485
      %v2445 = vunpack.c.l.b16 %v486
      %v2446 = vunpack.c.l.b16 %v487
      %v2447 = vunpack.c.l.b16 %v488
      %v2448 = vunpack.c.l.b16 %v489
      %v2449 = vunpack.c.l.b16 %v490
      %v2450 = vunpack.c.l.b16 %v491
      %v2451 = vunpack.c.l.b16 %v492
      %v2452 = vunpack.c.l.b16 %v493
      %v2453 = vunpack.c.l.b16 %v494
      %v2454 = vunpack.c.l.b16 %v495
      %v2455 = vunpack.c.l.b16 %v496
      %v2456 = vunpack.c.l.b16 %v497
      %v2457 = vunpack.c.l.b16 %v498
      %v2458 = vunpack.c.l.b16 %v499
      %v2459 = vunpack.c.l.b16 %v500
      %v2460 = vunpack.c.l.b16 %v501
      %v2461 = vunpack.c.l.b16 %v502
      %v2462 = vunpack.c.l.b16 %v503
      %v2463 = vunpack.c.l.b16 %v504
      %v2464 = vunpack.c.l.b16 %v505
      %v2465 = vunpack.c.l.b16 %v506
      %v2466 = vunpack.c.l.b16 %v507
      %v2467 = vunpack.c.l.b16 %v508
      %v2468 = vunpack.c.l.b16 %v509
      %v2469 = vunpack.c.l.b16 %v510
      %v2470 = vunpack.c.l.b16 %v511
      %v2471 = vunpack.c.l.b16 %v512
      %v2472 = vunpack.c.l.b16 %v513
      %v2473 = vunpack.c.l.b16 %v514
      %v2474 = vunpack.c.l.b16 %v515
      %v2475 = vunpack.c.l.b16 %v516
      %v2476 = vunpack.c.l.b16 %v517
      %v2477 = vunpack.c.l.b16 %v518
      %v2478 = vunpack.c.l.b16 %v519
      %v2479 = vunpack.c.l.b16 %v520
      %v2480 = vunpack.c.l.b16 %v521
      %v2481 = vunpack.c.l.b16 %v522
      %v2482 = vunpack.c.l.b16 %v523
      %v2483 = vunpack.c.l.b16 %v524
      %v2484 = vunpack.c.l.b16 %v525
      %v2485 = vunpack.c.l.b16 %v526
      %v2486 = vunpack.c.l.b16 %v527
      %v2487 = vunpack.c.l.b16 %v528
      %v2488 = vunpack.c.l.b16 %v529
      %v2489 = vunpack.c.l.b16 %v530
      %v2490 = vunpack.c.l.b16 %v531
      %v2491 = vunpack.c.l.b16 %v532
      %v2492 = vunpack.c.l.b16 %v533
      %v2493 = vunpack.c.l.b16 %v534
      %v2494 = vunpack.c.l.b16 %v535
      %v2495 = vunpack.c.l.b16 %v536
      %v2496 = vunpack.c.l.b16 %v537
      %v2497 = vunpack.c.l.b16 %v538
      %v2498 = vunpack.c.l.b16 %v539
      %v2499 = vunpack.c.l.b16 %v540
      %v2500 = vunpack.c.l.b16 %v541
      %v2501 = vunpack.c.l.b16 %v542
      %v2502 = vunpack.c.l.b16 %v543
      %v2503 = vunpack.c.l.b16 %v544
      %v2504 = vunpack.c.l.b16 %v545
      %v2505 = vunpack.c.l.b16 %v546
      %v2506 = vunpack.c.l.b16 %v547
      %v2507 = vunpack.c.l.b16 %v548
      %v2508 = vunpack.c.l.b16 %v549
      %v2509 = vunpack.c.l.b16 %v550
      %v2510 = vunpack.c.l.b16 %v551
      %v2511 = vunpack.c.l.b16 %v552
      %v2512 = vunpack.c.l.b16 %v553
      %v2513 = vunpack.c.l.b16 %v554
      %v2514 = vunpack.c.l.b16 %v555
      %v2515 = vunpack.c.l.b16 %v556
      %v2516 = vunpack.c.l.b16 %v557
      %v2517 = vunpack.c.l.b16 %v558
      %v2518 = vunpack.c.l.b16 %v559
      %v2519 = vunpack.c.l.b16 %v560
      %v2520 = vunpack.c.l.b16 %v561
      %v2521 = vunpack.c.l.b16 %v562
      %v2522 = vunpack.c.l.b16 %v563
      %v2523 = vunpack.c.l.b16 %v564
      %v2524 = vunpack.c.l.b16 %v565
      %v2525 = vunpack.c.l.b16 %v566
      %v2526 = vunpack.c.l.b16 %v567
      %v2527 = vunpack.c.l.b16 %v568
      %v2528 = vunpack.c.l.b16 %v569
      %v2529 = vunpack.c.l.b16 %v570
      %v2530 = vunpack.c.l.b16 %v571
      %v2531 = vunpack.c.l.b16 %v572
      %v2532 = vunpack.c.l.b16 %v573
      %v2533 = vunpack.c.l.b16 %v574
      %v2534 = vunpack.c.l.b16 %v575
      %v2535 = vunpack.c.l.b16 %v576
      %v2536 = vunpack.c.l.b16 %v577
      %v2537 = vunpack.c.l.b16 %v578
      %v2538 = vunpack.c.l.b16 %v579
      %v2539 = vunpack.c.l.b16 %v580
      %v2540 = vunpack.c.l.b16 %v581
      %v2541 = vunpack.c.l.b16 %v582
      %v2542 = vunpack.c.l.b16 %v583
      %v2543 = vunpack.c.l.b16 %v584
      %v2544 = vunpack.c.l.b16 %v585
      %v2545 = vunpack.c.l.b16 %v586
      %v2546 = vunpack.c.l.b16 %v587
      %v2547 = vunpack.c.l.b16 %v588
      %v2548 = vunpack.c.l.b16 %v589
      %v2549 = vunpack.c.l.b16 %v590
      %v2550 = vunpack.c.l.b16 %v591
      %v2551 = vunpack.c.l.b16 %v592
      %v2552 = vunpack.c.l.b16 %v593
      %v2553 = vunpack.c.l.b16 %v594
      %v2554 = vunpack.c.l.b16 %v595
      %v2555 = vunpack.c.l.b16 %v596
      %v2556 = vunpack.c.l.b16 %v597
      %v2557 = vunpack.c.l.b16 %v598
      %v2558 = vunpack.c.l.b16 %v599
      %v2559 = vunpack.c.l.b16 %v600
      %v2560 = vunpack.c.l.b16 %v601
      %v2561 = vunpack.c.l.b16 %v602
      %v2562 = vunpack.c.l.b16 %v603
      %v2563 = vunpack.c.l.b16 %v604
      %v2564 = vunpack.c.l.b16 %v605
      %v2565 = vunpack.c.l.b16 %v606
      %v2566 = vunpack.c.l.b16 %v607
      %v2567 = vunpack.c.l.b16 %v608
      %v2568 = vunpack.c.l.b16 %v609
      %v2569 = vunpack.c.l.b16 %v610
      %v2570 = vunpack.c.l.b16 %v611
      %v2571 = vunpack.c.l.b16 %v612
      %v2572 = vunpack.c.l.b16 %v613
      %v2573 = vunpack.c.l.b16 %v614
      %v2574 = vunpack.c.l.b16 %v615
      %v2575 = vunpack.c.l.b16 %v616
      %v2576 = vunpack.c.l.b16 %v617
      %v2577 = vunpack.c.l.b16 %v618
      %v2578 = vunpack.c.l.b16 %v619
      %v2579 = vunpack.c.l.b16 %v620
      %v2580 = vunpack.c.l.b16 %v621
      %v2581 = vunpack.c.l.b16 %v622
      %v2582 = vunpack.c.l.b16 %v623
      %v2583 = vunpack.c.l.b16 %v624
      %v2584 = vunpack.c.l.b16 %v625
      %v2585 = vunpack.c.l.b16 %v626
      %v2586 = vunpack.c.l.b16 %v627
      %v2587 = vunpack.c.l.b16 %v628
      %v2588 = vunpack.c.l.b16 %v629
      %v2589 = vunpack.c.l.b16 %v630
      %v2590 = vunpack.c.l.b16 %v631
      %v2591 = vunpack.c.l.b16 %v632
      %v2592 = vunpack.c.l.b16 %v633
      %v2593 = vunpack.c.l.b16 %v634
      %v2594 = vunpack.c.l.b16 %v635
      %v2595 = vunpack.c.l.b16 %v636
      %v2596 = vunpack.c.l.b16 %v637
      %v2597 = vunpack.c.l.b16 %v638
      %v2598 = vunpack.c.l.b16 %v639
      %v2599 = vunpack.c.l.b16 %v640
      %v2600 = vunpack.c.l.b16 %v641
      %v2601 = vunpack.c.l.b16 %v642
      %v2602 = vunpack.c.l.b16 %v643
      %v2603 = vunpack.c.l.b16 %v644
      %v2604 = vunpack.c.l.b16 %v645
      %v2605 = vunpack.c.l.b16 %v646
      %v2606 = vunpack.c.l.b16 %v647
      %v2607 = vunpack.c.l.b16 %v648
      %v2608 = vunpack.c.l.b16 %v649
      %v2609 = vunpack.c.l.b16 %v650
      %v2610 = vunpack.c.l.b16 %v651
      %v2611 = vunpack.c.l.b16 %v652
      %v2612 = vunpack.c.l.b16 %v653
      %v2613 = vunpack.c.l.b16 %v654
      %v2614 = vunpack.c.l.b16 %v655
      %v2615 = vunpack.c.l.b16 %v656
      %v2616 = vunpack.c.l.b16 %v657
      %v2617 = vunpack.c.l.b16 %v658
      %v2618 = vunpack.c.l.b16 %v659
      %v2619 = vunpack.c.l.b16 %v660
      %v2620 = vunpack.c.l.b16 %v661
      %v2621 = vunpack.c.l.b16 %v662
      %v2622 = vunpack.c.l.b16 %v663
      %v2623 = vunpack.c.l.b16 %v664
      %v2624 = vunpack.c.l.b16 %v665
      %v2625 = vunpack.c.l.b16 %v666
      %v2626 = vunpack.c.l.b16 %v667
      %v2627 = vunpack.c.l.b16 %v668
      %v2628 = vunpack.c.l.b16 %v669
      %v2629 = vunpack.c.l.b16 %v670
      %v2630 = vunpack.c.l.b16 %v671
      %v2631 = vunpack.c.l.b16 %v672
      %v2632 = vunpack.c.l.b16 %v673
      %v2633 = vunpack.c.l.b16 %v674
      %v2634 = vunpack.c.l.b16 %v675
      %v2635 = vunpack.c.l.b16 %v676
      %v2636 = vunpack.c.l.b16 %v677
      %v2637 = vunpack.c.l.b16 %v678
      %v2638 = vunpack.c.l.b16 %v679
      %v2639 = vunpack.c.l.b16 %v680
      %v2640 = vunpack.c.l.b16 %v681
      %v2641 = vunpack.c.l.b16 %v682
      %v2642 = vunpack.c.l.b16 %v683
      %v2643 = vunpack.c.l.b16 %v684
      %v2644 = vunpack.c.l.b16 %v685
      %v2645 = vunpack.c.l.b16 %v686
      %v2646 = vunpack.c.l.b16 %v687
      %v2647 = vunpack.c.l.b16 %v688
      %v2648 = vunpack.c.l.b16 %v689
      %v2649 = vunpack.c.l.b16 %v690
      %v2650 = vunpack.c.l.b16 %v691
      %v2651 = vunpack.c.l.b16 %v692
      %v2652 = vunpack.c.l.b16 %v693
      %v2653 = vunpack.c.l.b16 %v694
      %v2654 = vunpack.c.l.b16 %v695
      %v2655 = vunpack.c.l.b16 %v696
      %v2656 = vunpack.c.l.b16 %v697
      %v2657 = vunpack.c.l.b16 %v698
      %v2658 = vunpack.c.l.b16 %v699
      %v2659 = vunpack.c.l.b16 %v700
      %v2660 = vunpack.c.l.b16 %v701
      %v2661 = vunpack.c.l.b16 %v702
      %v2662 = vunpack.c.l.b16 %v703
      %v2663 = vunpack.c.l.b16 %v704
      %v2664 = vunpack.c.l.b16 %v705
      %v2665 = vunpack.c.l.b16 %v706
      %v2666 = vunpack.c.l.b16 %v707
      %v2667 = vunpack.c.l.b16 %v708
      %v2668 = vunpack.c.l.b16 %v709
      %v2669 = vunpack.c.l.b16 %v710
      %v2670 = vunpack.c.l.b16 %v711
      %v2671 = vunpack.c.l.b16 %v712
      %v2672 = vunpack.c.l.b16 %v713
      %v2673 = vunpack.c.l.b16 %v714
      %v2674 = vunpack.c.l.b16 %v715
      %v2675 = vunpack.c.l.b16 %v716
      %v2676 = vunpack.c.l.b16 %v717
      %v2677 = vunpack.c.l.b16 %v718
      %v2678 = vunpack.c.l.b16 %v719
      %v2679 = vunpack.c.l.b16 %v720
      %v2680 = vunpack.c.l.b16 %v721
      %v2681 = vunpack.c.l.b16 %v722
      %v2682 = vunpack.c.l.b16 %v723
      %v2683 = vunpack.c.l.b16 %v724
      %v2684 = vunpack.c.l.b16 %v725
      %v2685 = vunpack.c.l.b16 %v726
      %v2686 = vunpack.c.l.b16 %v727
      %v2687 = vunpack.c.l.b16 %v728
      %v2688 = vunpack.c.l.b16 %v729
      %v2689 = vunpack.c.l.b16 %v730
      %v2690 = vunpack.c.l.b16 %v731
      %v2691 = vunpack.c.l.b16 %v732
      %v2692 = vunpack.c.l.b16 %v733
      %v2693 = vunpack.c.l.b16 %v734
      %v2694 = vunpack.c.l.b16 %v735
      %v2695 = vunpack.c.l.b16 %v736
      %v2696 = vunpack.c.l.b16 %v737
      %v2697 = vunpack.c.l.b16 %v738
      %v2698 = vunpack.c.l.b16 %v739
      %v2699 = vunpack.c.l.b16 %v740
      %v2700 = vunpack.c.l.b16 %v741
      %v2701 = vunpack.c.l.b16 %v742
      %v2702 = vunpack.c.l.b16 %v743
      %v2703 = vunpack.c.l.b16 %v744
      %v2704 = vunpack.c.l.b16 %v745
      %v2705 = vunpack.c.l.b16 %v746
      %v2706 = vunpack.c.l.b16 %v747
      %v2707 = vunpack.c.l.b16 %v748
      %v2708 = vunpack.c.l.b16 %v749
      %v2709 = vunpack.c.l.b16 %v750
      %v2710 = vunpack.c.l.b16 %v751
      %v2711 = vunpack.c.l.b16 %v752
      %v2712 = vunpack.c.l.b16 %v753
      %v2713 = vunpack.c.l.b16 %v754
      %v2714 = vunpack.c.l.b16 %v755
      %v2715 = vunpack.c.l.b16 %v756
      %v2716 = vunpack.c.l.b16 %v757
      %v2717 = vunpack.c.l.b16 %v758
      %v2718 = vunpack.c.l.b16 %v759
      %v2719 = vunpack.c.l.b16 %v760
      %v2720 = vunpack.c.l.b16 %v761
      %v2721 = vunpack.c.l.b16 %v762
      %v2722 = vunpack.c.l.b16 %v763
      %v2723 = vunpack.c.l.b16 %v764
      %v2724 = vunpack.c.l.b16 %v765
      %v2725 = vunpack.c.l.b16 %v766
      %v2726 = vunpack.c.l.b16 %v767
      %v2727 = vunpack.c.l.b16 %v768
      %v2728 = vunpack.c.l.b16 %v769
      %v2729 = vunpack.c.l.b16 %v770
      %v2730 = vunpack.c.l.b16 %v771
      %v2731 = vunpack.c.l.b16 %v772
      %v2732 = vunpack.c.l.b16 %v773
      %v2733 = vunpack.c.l.b16 %v774
      %v2734 = vunpack.c.l.b16 %v775
      %v2735 = vunpack.c.l.b16 %v776
      %v2736 = vunpack.c.l.b16 %v777
      %v2737 = vunpack.c.l.b16 %v778
      %v2738 = vunpack.c.l.b16 %v779
      %v2739 = vunpack.c.l.b16 %v780
      %v2740 = vunpack.c.l.b16 %v781
      %v2741 = vunpack.c.l.b16 %v782
      %v2742 = vunpack.c.l.b16 %v783
      %v2743 = vunpack.c.l.b16 %v784
      %v2744 = vunpack.c.l.b16 %v785
      %v2745 = vunpack.c.l.b16 %v786
      %v2746 = vunpack.c.l.b16 %v787
      %v2747 = vunpack.c.l.b16 %v788
      %v2748 = vunpack.c.l.b16 %v789
      %v2749 = vunpack.c.l.b16 %v790
      %v2750 = vunpack.c.l.b16 %v791
      %v2751 = vunpack.c.l.b16 %v792
      %v2752 = vunpack.c.l.b16 %v793
      %v2753 = vunpack.c.l.b16 %v794
      %v2754 = vunpack.c.l.b16 %v795
      %v2755 = vunpack.c.l.b16 %v796
      %v2756 = vunpack.c.l.b16 %v797
      %v2757 = vunpack.c.l.b16 %v798
      %v2758 = vunpack.c.l.b16 %v799
      %v2759 = vunpack.c.l.b16 %v800
      %v2760 = vunpack.c.l.b16 %v801
      %v2761 = vunpack.c.l.b16 %v802
      %v2762 = vunpack.c.l.b16 %v803
      %v2763 = vunpack.c.l.b16 %v804
      %v2764 = vunpack.c.l.b16 %v805
      %v2765 = vunpack.c.l.b16 %v806
      %v2766 = vunpack.c.l.b16 %v807
      %v2767 = vunpack.c.l.b16 %v808
      %v2768 = vunpack.c.l.b16 %v809
      %v2769 = vunpack.c.l.b16 %v810
      %v2770 = vunpack.c.l.b16 %v811
      %v2771 = vunpack.c.l.b16 %v812
      %v2772 = vunpack.c.l.b16 %v813
      %v2773 = vunpack.c.l.b16 %v814
      %v2774 = vunpack.c.l.b16 %v815
      %v2775 = vunpack.c.l.b16 %v816
      %v2776 = vunpack.c.l.b16 %v817
      %v2777 = vunpack.c.l.b16 %v818
      %v2778 = vunpack.c.l.b16 %v819
      %v2779 = vunpack.c.l.b16 %v820
      %v2780 = vunpack.c.l.b16 %v821
      %v2781 = vunpack.c.l.b16 %v822
      %v2782 = vunpack.c.l.b16 %v823
      %v2783 = vunpack.c.l.b16 %v824
      %v2784 = vunpack.c.l.b16 %v825
      %v2785 = vunpack.c.l.b16 %v826
      %v2786 = vunpack.c.l.b16 %v827
      %v2787 = vunpack.c.l.b16 %v828
      %v2788 = vunpack.c.l.b16 %v829
      %v2789 = vunpack.c.l.b16 %v830
      %v2790 = vunpack.c.l.b16 %v831
      %v2791 = vunpack.c.l.b16 %v832
      %v2792 = vunpack.c.l.b16 %v833
      %v2793 = vunpack.c.l.b16 %v834
      %v2794 = vunpack.c.l.b16 %v835
      %v2795 = vunpack.c.l.b16 %v836
      %v2796 = vunpack.c.l.b16 %v837
      %v2797 = vunpack.c.l.b16 %v838
      %v2798 = vunpack.c.l.b16 %v839
      %v2799 = vunpack.c.l.b16 %v840
      %v2800 = vunpack.c.l.b16 %v841
      %v2801 = vunpack.c.l.b16 %v842
      %v2802 = vunpack.c.l.b16 %v843
      %v2803 = vunpack.c.l.b16 %v844
      %v2804 = vunpack.c.l.b16 %v845
      %v2805 = vunpack.c.l.b16 %v846
      %v2806 = vunpack.c.l.b16 %v847
      %v2807 = vunpack.c.l.b16 %v848
      %v2808 = vunpack.c.l.b16 %v849
      %v2809 = vunpack.c.l.b16 %v850
      %v2810 = vunpack.c.l.b16 %v851
      %v2811 = vunpack.c.l.b16 %v852
      %v2812 = vunpack.c.l.b16 %v853
      %v2813 = vunpack.c.l.b16 %v854
      %v2814 = vunpack.c.l.b16 %v855
      %v2815 = vunpack.c.l.b16 %v856
      %v2816 = vunpack.c.l.b16 %v857
      %v2817 = vunpack.c.l.b16 %v858
      %v2818 = vunpack.c.l.b16 %v859
      %v2819 = vunpack.c.l.b16 %v860
      %v2820 = vunpack.c.l.b16 %v861
      %v2821 = vunpack.c.l.b16 %v862
      %v2822 = vunpack.c.l.b16 %v863
      %v2823 = vunpack.c.l.b16 %v864
      %v2824 = vunpack.c.l.b16 %v865
      %v2825 = vunpack.c.l.b16 %v866
      %v2826 = vunpack.c.l.b16 %v867
      %v2827 = vunpack.c.l.b16 %v868
      %v2828 = vunpack.c.l.b16 %v869
      %v2829 = vunpack.c.l.b16 %v870
      %v2830 = vunpack.c.l.b16 %v871
      %v2831 = vunpack.c.l.b16 %v872
      %v2832 = vunpack.c.l.b16 %v873
      %v2833 = vunpack.c.l.b16 %v874
      %v2834 = vunpack.c.l.b16 %v875
      %v2835 = vunpack.c.l.b16 %v876
      %v2836 = vunpack.c.l.b16 %v877
      %v2837 = vunpack.c.l.b16 %v878
      %v2838 = vunpack.c.l.b16 %v879
      %v2839 = vunpack.c.l.b16 %v880
      %v2840 = vunpack.c.l.b16 %v881
      %v2841 = vunpack.c.l.b16 %v882
      %v2842 = vunpack.c.l.b16 %v883
      %v2843 = vunpack.c.l.b16 %v884
      %v2844 = vunpack.c.l.b16 %v885
      %v2845 = vunpack.c.l.b16 %v886
      %v2846 = vunpack.c.l.b16 %v887
      %v2847 = vunpack.c.l.b16 %v888
      %v2848 = vunpack.c.l.b16 %v889
      %v2849 = vunpack.c.l.b16 %v890
      %v2850 = vunpack.c.l.b16 %v891
      %v2851 = vunpack.c.l.b16 %v892
      %v2852 = vunpack.c.l.b16 %v893
      %v2853 = vunpack.c.l.b16 %v894
      %v2854 = vunpack.c.l.b16 %v895
      %v2855 = vunpack.c.l.b16 %v896
      %v2856 = vunpack.c.l.b16 %v897
      %v2857 = vunpack.c.l.b16 %v898
      %v2858 = vunpack.c.l.b16 %v899
      %v2859 = vunpack.c.l.b16 %v900
      %v2860 = vunpack.c.l.b16 %v901
      %v2861 = vunpack.c.l.b16 %v902
      %v2862 = vunpack.c.l.b16 %v903
      %v2863 = vunpack.c.l.b16 %v904
      %v2864 = vpack.c.b16 %v2433, %v2432
      %v2865 = vpack.c.b16 %v2435, %v2434
      %v2866 = vpack.c.b16 %v2437, %v2436
      %v2867 = vpack.c.b16 %v2439, %v2438
      %v2868 = vpack.c.b16 %v2441, %v2440
      %v2869 = vpack.c.b16 %v2443, %v2442
      %v2870 = vpack.c.b16 %v2445, %v2444
      %v2871 = vpack.c.b16 %v2447, %v2446
      %v2872 = vpack.c.b16 %v2449, %v2448
      %v2873 = vpack.c.b16 %v2451, %v2450
      %v2874 = vpack.c.b16 %v2453, %v2452
      %v2875 = vpack.c.b16 %v2455, %v2454
      %v2876 = vpack.c.b16 %v2457, %v2456
      %v2877 = vpack.c.b16 %v2459, %v2458
      %v2878 = vpack.c.b16 %v2461, %v2460
      %v2879 = vpack.c.b16 %v2463, %v2462
      %v2880 = vpack.c.b16 %v2465, %v2464
      %v2881 = vpack.c.b16 %v2467, %v2466
      %v2882 = vpack.c.b16 %v2469, %v2468
      %v2883 = vpack.c.b16 %v2471, %v2470
      %v2884 = vpack.c.b16 %v2473, %v2472
      %v2885 = vpack.c.b16 %v2475, %v2474
      %v2886 = vpack.c.b16 %v2477, %v2476
      %v2887 = vpack.c.b16 %v2479, %v2478
      %v2888 = vpack.c.b16 %v2481, %v2480
      %v2889 = vpack.c.b16 %v2483, %v2482
      %v2890 = vpack.c.b16 %v2485, %v2484
      %v2891 = vpack.c.b16 %v2487, %v2486
      %v2892 = vpack.c.b16 %v2489, %v2488
      %v2893 = vpack.c.b16 %v2491, %v2490
      %v2894 = vpack.c.b16 %v2493, %v2492
      %v2895 = vpack.c.b16 %v2495, %v2494
      %v2896 = vpack.c.b16 %v2497, %v2496
      %v2897 = vpack.c.b16 %v2499, %v2498
      %v2898 = vpack.c.b16 %v2501, %v2500
      %v2899 = vpack.c.b16 %v2503, %v2502
      %v2900 = vpack.c.b16 %v2505, %v2504
      %v2901 = vpack.c.b16 %v2507, %v2506
      %v2902 = vpack.c.b16 %v2509, %v2508
      %v2903 = vpack.c.b16 %v2511, %v2510
      %v2904 = vpack.c.b16 %v2513, %v2512
      %v2905 = vpack.c.b16 %v2515, %v2514
      %v2906 = vpack.c.b16 %v2517, %v2516
      %v2907 = vpack.c.b16 %v2519, %v2518
      %v2908 = vpack.c.b16 %v2521, %v2520
      %v2909 = vpack.c.b16 %v2523, %v2522
      %v2910 = vpack.c.b16 %v2525, %v2524
      %v2911 = vpack.c.b16 %v2527, %v2526
      %v2912 = vpack.c.b16 %v2529, %v2528
      %v2913 = vpack.c.b16 %v2531, %v2530
      %v2914 = vpack.c.b16 %v2533, %v2532
      %v2915 = vpack.c.b16 %v2535, %v2534
      %v2916 = vpack.c.b16 %v2537, %v2536
      %v2917 = vpack.c.b16 %v2539, %v2538
      %v2918 = vpack.c.b16 %v2541, %v2540
      %v2919 = vpack.c.b16 %v2543, %v2542
      %v2920 = vpack.c.b16 %v2545, %v2544
      %v2921 = vpack.c.b16 %v2547, %v2546
      %v2922 = vpack.c.b16 %v2549, %v2548
      %v2923 = vpack.c.b16 %v2551, %v2550
      %v2924 = vpack.c.b16 %v2553, %v2552
      %v2925 = vpack.c.b16 %v2555, %v2554
      %v2926 = vpack.c.b16 %v2557, %v2556
      %v2927 = vpack.c.b16 %v2559, %v2558
      %v2928 = vpack.c.b16 %v2561, %v2560
      %v2929 = vpack.c.b16 %v2563, %v2562
      %v2930 = vpack.c.b16 %v2565, %v2564
      %v2931 = vpack.c.b16 %v2567, %v2566
      %v2932 = vpack.c.b16 %v2569, %v2568
      %v2933 = vpack.c.b16 %v2571, %v2570
      %v2934 = vpack.c.b16 %v2573, %v2572
      %v2935 = vpack.c.b16 %v2575, %v2574
      %v2936 = vpack.c.b16 %v2577, %v2576
      %v2937 = vpack.c.b16 %v2579, %v2578
      %v2938 = vpack.c.b16 %v2581, %v2580
      %v2939 = vpack.c.b16 %v2583, %v2582
      %v2940 = vpack.c.b16 %v2585, %v2584
      %v2941 = vpack.c.b16 %v2587, %v2586
      %v2942 = vpack.c.b16 %v2589, %v2588
      %v2943 = vpack.c.b16 %v2591, %v2590
      %v2944 = vpack.c.b16 %v2593, %v2592
      %v2945 = vpack.c.b16 %v2595, %v2594
      %v2946 = vpack.c.b16 %v2597, %v2596
      %v2947 = vpack.c.b16 %v2599, %v2598
      %v2948 = vpack.c.b16 %v2601, %v2600
      %v2949 = vpack.c.b16 %v2603, %v2602
      %v2950 = vpack.c.b16 %v2605, %v2604
      %v2951 = vpack.c.b16 %v2607, %v2606
      %v2952 = vpack.c.b16 %v2609, %v2608
      %v2953 = vpack.c.b16 %v2611, %v2610
      %v2954 = vpack.c.b16 %v2613, %v2612
      %v2955 = vpack.c.b16 %v2615, %v2614
      %v2956 = vpack.c.b16 %v2617, %v2616
      %v2957 = vpack.c.b16 %v2619, %v2618
      %v2958 = vpack.c.b16 %v2621, %v2620
      %v2959 = vpack.c.b16 %v2623, %v2622
      %v2960 = vpack.c.b16 %v2625, %v2624
      %v2961 = vpack.c.b16 %v2627, %v2626
      %v2962 = vpack.c.b16 %v2629, %v2628
      %v2963 = vpack.c.b16 %v2631, %v2630
      %v2964 = vpack.c.b16 %v2633, %v2632
      %v2965 = vpack.c.b16 %v2635, %v2634
      %v2966 = vpack.c.b16 %v2637, %v2636
      %v2967 = vpack.c.b16 %v2639, %v2638
      %v2968 = vpack.c.b16 %v2641, %v2640
      %v2969 = vpack.c.b16 %v2643, %v2642
      %v2970 = vpack.c.b16 %v2645, %v2644
      %v2971 = vpack.c.b16 %v2647, %v2646
      %v2972 = vpack.c.b16 %v2649, %v2648
      %v2973 = vpack.c.b16 %v2651, %v2650
      %v2974 = vpack.c.b16 %v2653, %v2652
      %v2975 = vpack.c.b16 %v2655, %v2654
      %v2976 = vpack.c.b16 %v2657, %v2656
      %v2977 = vpack.c.b16 %v2659, %v2658
      %v2978 = vpack.c.b16 %v2661, %v2660
      %v2979 = vpack.c.b16 %v2663, %v2662
      %v2980 = vpack.c.b16 %v2665, %v2664
      %v2981 = vpack.c.b16 %v2667, %v2666
      %v2982 = vpack.c.b16 %v2669, %v2668
      %v2983 = vpack.c.b16 %v2671, %v2670
      %v2984 = vpack.c.b16 %v2673, %v2672
      %v2985 = vpack.c.b16 %v2675, %v2674
      %v2986 = vpack.c.b16 %v2677, %v2676
      %v2987 = vpack.c.b16 %v2679, %v2678
      %v2988 = vpack.c.b16 %v2681, %v2680
      %v2989 = vpack.c.b16 %v2683, %v2682
      %v2990 = vpack.c.b16 %v2685, %v2684
      %v2991 = vpack.c.b16 %v2687, %v2686
      %v2992 = vpack.c.b16 %v2689, %v2688
      %v2993 = vpack.c.b16 %v2691, %v2690
      %v2994 = vpack.c.b16 %v2693, %v2692
      %v2995 = vpack.c.b16 %v2695, %v2694
      %v2996 = vpack.c.b16 %v2697, %v2696
      %v2997 = vpack.c.b16 %v2699, %v2698
      %v2998 = vpack.c.b16 %v2701, %v2700
      %v2999 = vpack.c.b16 %v2703, %v2702
      %v3000 = vpack.c.b16 %v2705, %v2704
      %v3001 = vpack.c.b16 %v2707, %v2706
      %v3002 = vpack.c.b16 %v2709, %v2708
      %v3003 = vpack.c.b16 %v2711, %v2710
      %v3004 = vpack.c.b16 %v2713, %v2712
      %v3005 = vpack.c.b16 %v2715, %v2714
      %v3006 = vpack.c.b16 %v2717, %v2716
      %v3007 = vpack.c.b16 %v2719, %v2718
      %v3008 = vpack.c.b16 %v2721, %v2720
      %v3009 = vpack.c.b16 %v2723, %v2722
      %v3010 = vpack.c.b16 %v2725, %v2724
      %v3011 = vpack.c.b16 %v2727, %v2726
      %v3012 = vpack.c.b16 %v2729, %v2728
      %v3013 = vpack.c.b16 %v2731, %v2730
      %v3014 = vpack.c.b16 %v2733, %v2732
      %v3015 = vpack.c.b16 %v2735, %v2734
      %v3016 = vpack.c.b16 %v2737, %v2736
      %v3017 = vpack.c.b16 %v2739, %v2738
      %v3018 = vpack.c.b16 %v2741, %v2740
      %v3019 = vpack.c.b16 %v2743, %v2742
      %v3020 = vpack.c.b16 %v2745, %v2744
      %v3021 = vpack.c.b16 %v2747, %v2746
      %v3022 = vpack.c.b16 %v2749, %v2748
      %v3023 = vpack.c.b16 %v2751, %v2750
      %v3024 = vpack.c.b16 %v2753, %v2752
      %v3025 = vpack.c.b16 %v2755, %v2754
      %v3026 = vpack.c.b16 %v2757, %v2756
      %v3027 = vpack.c.b16 %v2759, %v2758
      %v3028 = vpack.c.b16 %v2761, %v2760
      %v3029 = vpack.c.b16 %v2763, %v2762
      %v3030 = vpack.c.b16 %v2765, %v2764
      %v3031 = vpack.c.b16 %v2767, %v2766
      %v3032 = vpack.c.b16 %v2769, %v2768
      %v3033 = vpack.c.b16 %v2771, %v2770
      %v3034 = vpack.c.b16 %v2773, %v2772
      %v3035 = vpack.c.b16 %v2775, %v2774
      %v3036 = vpack.c.b16 %v2777, %v2776
      %v3037 = vpack.c.b16 %v2779, %v2778
      %v3038 = vpack.c.b16 %v2781, %v2780
      %v3039 = vpack.c.b16 %v2783, %v2782
      %v3040 = vpack.c.b16 %v2785, %v2784
      %v3041 = vpack.c.b16 %v2787, %v2786
      %v3042 = vpack.c.b16 %v2789, %v2788
      %v3043 = vpack.c.b16 %v2791, %v2790
      %v3044 = vpack.c.b16 %v2793, %v2792
      %v3045 = vpack.c.b16 %v2795, %v2794
      %v3046 = vpack.c.b16 %v2797, %v2796
      %v3047 = vpack.c.b16 %v2799, %v2798
      %v3048 = vpack.c.b16 %v2801, %v2800
      %v3049 = vpack.c.b16 %v2803, %v2802
      %v3050 = vpack.c.b16 %v2805, %v2804
      %v3051 = vpack.c.b16 %v2807, %v2806
      %v3052 = vpack.c.b16 %v2809, %v2808
      %v3053 = vpack.c.b16 %v2811, %v2810
      %v3054 = vpack.c.b16 %v2813, %v2812
      %v3055 = vpack.c.b16 %v2815, %v2814
      %v3056 = vpack.c.b16 %v2817, %v2816
      %v3057 = vpack.c.b16 %v2819, %v2818
      %v3058 = vpack.c.b16 %v2821, %v2820
      %v3059 = vpack.c.b16 %v2823, %v2822
      %v3060 = vpack.c.b16 %v2825, %v2824
      %v3061 = vpack.c.b16 %v2827, %v2826
      %v3062 = vpack.c.b16 %v2829, %v2828
      %v3063 = vpack.c.b16 %v2831, %v2830
      %v3064 = vpack.c.b16 %v2833, %v2832
      %v3065 = vpack.c.b16 %v2835, %v2834
      %v3066 = vpack.c.b16 %v2837, %v2836
      %v3067 = vpack.c.b16 %v2839, %v2838
      %v3068 = vpack.c.b16 %v2841, %v2840
      %v3069 = vpack.c.b16 %v2843, %v2842
      %v3070 = vpack.c.b16 %v2845, %v2844
      %v3071 = vpack.c.b16 %v2847, %v2846
      %v3072 = vpack.c.b16 %v2849, %v2848
      %v3073 = vpack.c.b16 %v2851, %v2850
      %v3074 = vpack.c.b16 %v2853, %v2852
      %v3075 = vpack.c.b16 %v2855, %v2854
      %v3076 = vpack.c.b16 %v2857, %v2856
      %v3077 = vpack.c.b16 %v2859, %v2858
      %v3078 = vpack.c.b16 %v2861, %v2860
      %v3079 = vpack.c.b16 %v2863, %v2862
      %3296 = vmatprep.subr.bf16.mxu0 0
      %3297 = vmatpush1.bf16.msra.mxu0 %v2864
      %3298 = vmatprep.subr.bf16.mxu0 0
      %3299 = vmatpush1.bf16.msra.mxu0 %v2865
      %3300 = vmatprep.subr.bf16.mxu0 0
      %3301 = vmatpush1.bf16.msra.mxu0 %v2866
      %3302 = vmatprep.subr.bf16.mxu0 0
      %3303 = vmatpush1.bf16.msra.mxu0 %v2867
      %3304 = vmatprep.subr.bf16.mxu0 0
      %3305 = vmatpush1.bf16.msra.mxu0 %v2868
      %3306 = vmatprep.subr.bf16.mxu0 0
      %3307 = vmatpush1.bf16.msra.mxu0 %v2869
      %3308 = vmatprep.subr.bf16.mxu0 0
      %3309 = vmatpush1.bf16.msra.mxu0 %v2870
      %3310 = vmatprep.subr.bf16.mxu0 0
      %3311 = vmatpush1.bf16.msra.mxu0 %v2871
      %3312 = vmatprep.subr.bf16.mxu0 0
      %3313 = vmatpush1.bf16.msra.mxu0 %v2872
      %3314 = vmatprep.subr.bf16.mxu0 0
      %3315 = vmatpush1.bf16.msra.mxu0 %v2873
      %3316 = vmatprep.subr.bf16.mxu0 0
      %3317 = vmatpush1.bf16.msra.mxu0 %v2874
      %3318 = vmatprep.subr.bf16.mxu0 0
      %3319 = vmatpush1.bf16.msra.mxu0 %v2875
      %3320 = vmatprep.subr.bf16.mxu0 0
      %3321 = vmatpush1.bf16.msra.mxu0 %v2876
      %3322 = vmatprep.subr.bf16.mxu0 0
      %3323 = vmatpush1.bf16.msra.mxu0 %v2877
      %3324 = vmatprep.subr.bf16.mxu0 0
      %3325 = vmatpush1.bf16.msra.mxu0 %v2878
      %3326 = vmatprep.subr.bf16.mxu0 0
      %3327 = vmatpush1.bf16.msra.mxu0 %v2879
      %3328 = vmatprep.mubr.bf16.mxu0 %v1569
      %3329 = vmatmul.mubr.bf16.gmra.mrb[0].mxu0 %v1568
      %v3330 = vpop.f32.mrb[0].mxu0
      %v3331 = vadd.f32 %v910, %v3330
      %v3332 = vpop.f32.mrb[0].mxu0
      %v3333 = vpop.f32.mrb[0].mxu0
      %v3334 = vadd.f32 %v910, %v3333
      %v3335 = vpop.f32.mrb[0].mxu0
      %3336 = vmatprep.mubr.bf16.mxu0 %v1596
      %3337 = vmatmul.mubr.bf16.gmra.mrb[0].mxu0 %v1595
      %v3338 = vpop.f32.mrb[0].mxu0
      %v3339 = vadd.f32 %v910, %v3338
      %v3340 = vpop.f32.mrb[0].mxu0
      %v3341 = vpop.f32.mrb[0].mxu0
      %v3342 = vadd.f32 %v910, %v3341
      %v3343 = vpop.f32.mrb[0].mxu0
      %3344 = vmatprep.mubr.bf16.mxu0 %v1623
      %3345 = vmatmul.mubr.bf16.gmra.mrb[0].mxu0 %v1622
      %v3346 = vpop.f32.mrb[0].mxu0
      %v3347 = vadd.f32 %v910, %v3346
      %v3348 = vpop.f32.mrb[0].mxu0
      %v3349 = vpop.f32.mrb[0].mxu0
      %v3350 = vadd.f32 %v910, %v3349
      %v3351 = vpop.f32.mrb[0].mxu0
      %3352 = vmatprep.mubr.bf16.mxu0 %v1650
      %3353 = vmatmul.mubr.bf16.gmra.mrb[0].mxu0 %v1649
      %v3354 = vpop.f32.mrb[0].mxu0
      %v3355 = vadd.f32 %v910, %v3354
      %v3356 = vpop.f32.mrb[0].mxu0
      %v3357 = vpop.f32.mrb[0].mxu0
      %v3358 = vadd.f32 %v910, %v3357
      %v3359 = vpop.f32.mrb[0].mxu0
      %3360 = vmatprep.mubr.bf16.mxu0 %v1677
      %3361 = vmatmul.mubr.bf16.gmra.mrb[0].mxu0 %v1676
      %v3362 = vpop.f32.mrb[0].mxu0
      %v3363 = vadd.f32 %v910, %v3362
      %v3364 = vpop.f32.mrb[0].mxu0
      %v3365 = vpop.f32.mrb[0].mxu0
      %v3366 = vadd.f32 %v910, %v3365
      %v3367 = vpop.f32.mrb[0].mxu0
      %3368 = vmatprep.mubr.bf16.mxu0 %v1704
      %3369 = vmatmul.mubr.bf16.gmra.mrb[0].mxu0 %v1703
      %v3370 = vpop.f32.mrb[0].mxu0
      %v3371 = vadd.f32 %v910, %v3370
      %v3372 = vpop.f32.mrb[0].mxu0
      %v3373 = vpop.f32.mrb[0].mxu0
      %v3374 = vadd.f32 %v910, %v3373
      %v3375 = vpop.f32.mrb[0].mxu0
      %3376 = vmatprep.mubr.bf16.mxu0 %v1731
      %3377 = vmatmul.mubr.bf16.gmra.mrb[0].mxu0 %v1730
      %v3378 = vpop.f32.mrb[0].mxu0
      %v3379 = vadd.f32 %v910, %v3378
      %v3380 = vpop.f32.mrb[0].mxu0
      %v3381 = vpop.f32.mrb[0].mxu0
      %v3382 = vadd.f32 %v910, %v3381
      %v3383 = vpop.f32.mrb[0].mxu0
      %3384 = vmatprep.mubr.bf16.mxu0 %v1758
      %3385 = vmatmul.mubr.bf16.gmra.mrb[0].mxu0 %v1757
      %v3386 = vpop.f32.mrb[0].mxu0
      %v3387 = vadd.f32 %v910, %v3386
      %v3388 = vpop.f32.mrb[0].mxu0
      %v3389 = vpop.f32.mrb[0].mxu0
      %v3390 = vadd.f32 %v910, %v3389
      %v3391 = vpop.f32.mrb[0].mxu0
      %3392 = vdwg.mxu0
      %3393 = vmatprep.subr.bf16.mxu0 0
      %3394 = vmatpush1.bf16.msra.mxu0 %v2880
      %3395 = vmatprep.subr.bf16.mxu0 0
      %3396 = vmatpush1.bf16.msra.mxu0 %v2881
      %3397 = vmatprep.subr.bf16.mxu0 0
      %3398 = vmatpush1.bf16.msra.mxu0 %v2882
      %3399 = vmatprep.subr.bf16.mxu0 0
      %3400 = vmatpush1.bf16.msra.mxu0 %v2883
      %3401 = vmatprep.subr.bf16.mxu0 0
      %3402 = vmatpush1.bf16.msra.mxu0 %v2884
      %3403 = vmatprep.subr.bf16.mxu0 0
      %3404 = vmatpush1.bf16.msra.mxu0 %v2885
      %3405 = vmatprep.subr.bf16.mxu0 0
      %3406 = vmatpush1.bf16.msra.mxu0 %v2886
      %3407 = vmatprep.subr.bf16.mxu0 0
      %3408 = vmatpush1.bf16.msra.mxu0 %v2887
      %3409 = vmatprep.subr.bf16.mxu0 0
      %3410 = vmatpush1.bf16.msra.mxu0 %v2888
      %3411 = vmatprep.subr.bf16.mxu0 0
      %3412 = vmatpush1.bf16.msra.mxu0 %v2889
      %3413 = vmatprep.subr.bf16.mxu0 0
      %3414 = vmatpush1.bf16.msra.mxu0 %v2890
      %3415 = vmatprep.subr.bf16.mxu0 0
      %3416 = vmatpush1.bf16.msra.mxu0 %v2891
      %3417 = vmatprep.subr.bf16.mxu0 0
      %3418 = vmatpush1.bf16.msra.mxu0 %v2892
      %3419 = vmatprep.subr.bf16.mxu0 0
      %3420 = vmatpush1.bf16.msra.mxu0 %v2893
      %3421 = vmatprep.subr.bf16.mxu0 0
      %3422 = vmatpush1.bf16.msra.mxu0 %v2894
      %3423 = vmatprep.subr.bf16.mxu0 0
      %3424 = vmatpush1.bf16.msra.mxu0 %v2895
      %3425 = vmatprep.mubr.bf16.mxu0 %v1571
      %3426 = vmatmul.mubr.bf16.gmra.mrb[0].mxu0 %v1570
      %v3427 = vpop.f32.mrb[0].mxu0
      %v3428 = vadd.f32 %v3331, %v3427
      %v3429 = vpop.f32.mrb[0].mxu0
      %v3430 = vpop.f32.mrb[0].mxu0
      %v3431 = vadd.f32 %v3334, %v3430
      %v3432 = vpop.f32.mrb[0].mxu0
      %3433 = vmatprep.mubr.bf16.mxu0 %v1598
      %3434 = vmatmul.mubr.bf16.gmra.mrb[0].mxu0 %v1597
      %v3435 = vpop.f32.mrb[0].mxu0
      %v3436 = vadd.f32 %v3339, %v3435
      %v3437 = vpop.f32.mrb[0].mxu0
      %v3438 = vpop.f32.mrb[0].mxu0
      %v3439 = vadd.f32 %v3342, %v3438
      %v3440 = vpop.f32.mrb[0].mxu0
      %3441 = vmatprep.mubr.bf16.mxu0 %v1625
      %3442 = vmatmul.mubr.bf16.gmra.mrb[0].mxu0 %v1624
      %v3443 = vpop.f32.mrb[0].mxu0
      %v3444 = vadd.f32 %v3347, %v3443
      %v3445 = vpop.f32.mrb[0].mxu0
      %v3446 = vpop.f32.mrb[0].mxu0
      %v3447 = vadd.f32 %v3350, %v3446
      %v3448 = vpop.f32.mrb[0].mxu0
      %3449 = vmatprep.mubr.bf16.mxu0 %v1652
      %3450 = vmatmul.mubr.bf16.gmra.mrb[0].mxu0 %v1651
      %v3451 = vpop.f32.mrb[0].mxu0
      %v3452 = vadd.f32 %v3355, %v3451
      %v3453 = vpop.f32.mrb[0].mxu0
      %v3454 = vpop.f32.mrb[0].mxu0
      %v3455 = vadd.f32 %v3358, %v3454
      %v3456 = vpop.f32.mrb[0].mxu0
      %3457 = vmatprep.mubr.bf16.mxu0 %v1679
      %3458 = vmatmul.mubr.bf16.gmra.mrb[0].mxu0 %v1678
      %v3459 = vpop.f32.mrb[0].mxu0
      %v3460 = vadd.f32 %v3363, %v3459
      %v3461 = vpop.f32.mrb[0].mxu0
      %v3462 = vpop.f32.mrb[0].mxu0
      %v3463 = vadd.f32 %v3366, %v3462
      %v3464 = vpop.f32.mrb[0].mxu0
      %3465 = vmatprep.mubr.bf16.mxu0 %v1706
      %3466 = vmatmul.mubr.bf16.gmra.mrb[0].mxu0 %v1705
      %v3467 = vpop.f32.mrb[0].mxu0
      %v3468 = vadd.f32 %v3371, %v3467
      %v3469 = vpop.f32.mrb[0].mxu0
      %v3470 = vpop.f32.mrb[0].mxu0
      %v3471 = vadd.f32 %v3374, %v3470
      %v3472 = vpop.f32.mrb[0].mxu0
      %3473 = vmatprep.mubr.bf16.mxu0 %v1733
      %3474 = vmatmul.mubr.bf16.gmra.mrb[0].mxu0 %v1732
      %v3475 = vpop.f32.mrb[0].mxu0
      %v3476 = vadd.f32 %v3379, %v3475
      %v3477 = vpop.f32.mrb[0].mxu0
      %v3478 = vpop.f32.mrb[0].mxu0
      %v3479 = vadd.f32 %v3382, %v3478
      %v3480 = vpop.f32.mrb[0].mxu0
      %3481 = vmatprep.mubr.bf16.mxu0 %v1760
      %3482 = vmatmul.mubr.bf16.gmra.mrb[0].mxu0 %v1759
      %v3483 = vpop.f32.mrb[0].mxu0
      %v3484 = vadd.f32 %v3387, %v3483
      %v3485 = vpop.f32.mrb[0].mxu0
      %v3486 = vpop.f32.mrb[0].mxu0
      %v3487 = vadd.f32 %v3390, %v3486
      %v3488 = vpop.f32.mrb[0].mxu0
      %3489 = vdwg.mxu0
      %3490 = vmatprep.subr.bf16.mxu0 0
      %3491 = vmatpush1.bf16.msra.mxu0 %v2896
      %3492 = vmatprep.subr.bf16.mxu0 0
      %3493 = vmatpush1.bf16.msra.mxu0 %v2897
      %3494 = vmatprep.subr.bf16.mxu0 0
      %3495 = vmatpush1.bf16.msra.mxu0 %v2898
      %3496 = vmatprep.subr.bf16.mxu0 0
      %3497 = vmatpush1.bf16.msra.mxu0 %v2899
      %3498 = vmatprep.subr.bf16.mxu0 0
      %3499 = vmatpush1.bf16.msra.mxu0 %v2900
      %3500 = vmatprep.subr.bf16.mxu0 0
      %3501 = vmatpush1.bf16.msra.mxu0 %v2901
      %3502 = vmatprep.subr.bf16.mxu0 0
      %3503 = vmatpush1.bf16.msra.mxu0 %v2902
      %3504 = vmatprep.subr.bf16.mxu0 0
      %3505 = vmatpush1.bf16.msra.mxu0 %v2903
      %3506 = vmatprep.subr.bf16.mxu0 0
      %3507 = vmatpush1.bf16.msra.mxu0 %v2904
      %3508 = vmatprep.subr.bf16.mxu0 0
      %3509 = vmatpush1.bf16.msra.mxu0 %v2905
      %3510 = vmatprep.subr.bf16.mxu0 0
      %3511 = vmatpush1.bf16.msra.mxu0 %v2906
      %3512 = vmatprep.subr.bf16.mxu0 0
      %3513 = vmatpush1.bf16.msra.mxu0 %v2907
      %3514 = vmatprep.subr.bf16.mxu0 0
      %3515 = vmatpush1.bf16.msra.mxu0 %v2908
      %3516 = vmatprep.subr.bf16.mxu0 0
      %3517 = vmatpush1.bf16.msra.mxu0 %v2909
      %3518 = vmatprep.subr.bf16.mxu0 0
      %3519 = vmatpush1.bf16.msra.mxu0 %v2910
      %3520 = vmatprep.subr.bf16.mxu0 0
      %3521 = vmatpush1.bf16.msra.mxu0 %v2911
      %3522 = vmatprep.mubr.bf16.mxu0 %v1573
      %3523 = vmatmul.mubr.bf16.gmra.mrb[0].mxu0 %v1572
      %v3524 = vpop.f32.mrb[0].mxu0
      %v3525 = vadd.f32 %v3428, %v3524
      %v3526 = vpop.f32.mrb[0].mxu0
      %v3527 = vpop.f32.mrb[0].mxu0
      %v3528 = vadd.f32 %v3431, %v3527
      %v3529 = vpop.f32.mrb[0].mxu0
      %3530 = vmatprep.mubr.bf16.mxu0 %v1600
      %3531 = vmatmul.mubr.bf16.gmra.mrb[0].mxu0 %v1599
      %v3532 = vpop.f32.mrb[0].mxu0
      %v3533 = vadd.f32 %v3436, %v3532
      %v3534 = vpop.f32.mrb[0].mxu0
      %v3535 = vpop.f32.mrb[0].mxu0
      %v3536 = vadd.f32 %v3439, %v3535
      %v3537 = vpop.f32.mrb[0].mxu0
      %3538 = vmatprep.mubr.bf16.mxu0 %v1627
      %3539 = vmatmul.mubr.bf16.gmra.mrb[0].mxu0 %v1626
      %v3540 = vpop.f32.mrb[0].mxu0
      %v3541 = vadd.f32 %v3444, %v3540
      %v3542 = vpop.f32.mrb[0].mxu0
      %v3543 = vpop.f32.mrb[0].mxu0
      %v3544 = vadd.f32 %v3447, %v3543
      %v3545 = vpop.f32.mrb[0].mxu0
      %3546 = vmatprep.mubr.bf16.mxu0 %v1654
      %3547 = vmatmul.mubr.bf16.gmra.mrb[0].mxu0 %v1653
      %v3548 = vpop.f32.mrb[0].mxu0
      %v3549 = vadd.f32 %v3452, %v3548
      %v3550 = vpop.f32.mrb[0].mxu0
      %v3551 = vpop.f32.mrb[0].mxu0
      %v3552 = vadd.f32 %v3455, %v3551
      %v3553 = vpop.f32.mrb[0].mxu0
      %3554 = vmatprep.mubr.bf16.mxu0 %v1681
      %3555 = vmatmul.mubr.bf16.gmra.mrb[0].mxu0 %v1680
      %v3556 = vpop.f32.mrb[0].mxu0
      %v3557 = vadd.f32 %v3460, %v3556
      %v3558 = vpop.f32.mrb[0].mxu0
      %v3559 = vpop.f32.mrb[0].mxu0
      %v3560 = vadd.f32 %v3463, %v3559
      %v3561 = vpop.f32.mrb[0].mxu0
      %3562 = vmatprep.mubr.bf16.mxu0 %v1708
      %3563 = vmatmul.mubr.bf16.gmra.mrb[0].mxu0 %v1707
      %v3564 = vpop.f32.mrb[0].mxu0
      %v3565 = vadd.f32 %v3468, %v3564
      %v3566 = vpop.f32.mrb[0].mxu0
      %v3567 = vpop.f32.mrb[0].mxu0
      %v3568 = vadd.f32 %v3471, %v3567
      %v3569 = vpop.f32.mrb[0].mxu0
      %3570 = vmatprep.mubr.bf16.mxu0 %v1735
      %3571 = vmatmul.mubr.bf16.gmra.mrb[0].mxu0 %v1734
      %v3572 = vpop.f32.mrb[0].mxu0
      %v3573 = vadd.f32 %v3476, %v3572
      %v3574 = vpop.f32.mrb[0].mxu0
      %v3575 = vpop.f32.mrb[0].mxu0
      %v3576 = vadd.f32 %v3479, %v3575
      %v3577 = vpop.f32.mrb[0].mxu0
      %3578 = vmatprep.mubr.bf16.mxu0 %v1762
      %3579 = vmatmul.mubr.bf16.gmra.mrb[0].mxu0 %v1761
      %v3580 = vpop.f32.mrb[0].mxu0
      %v3581 = vadd.f32 %v3484, %v3580
      %v3582 = vpop.f32.mrb[0].mxu0
      %v3583 = vpop.f32.mrb[0].mxu0
      %v3584 = vadd.f32 %v3487, %v3583
      %v3585 = vpop.f32.mrb[0].mxu0
      %3586 = vdwg.mxu0
      %3587 = vmatprep.subr.bf16.mxu0 0
      %3588 = vmatpush1.bf16.msra.mxu0 %v2912
      %3589 = vmatprep.subr.bf16.mxu0 0
      %3590 = vmatpush1.bf16.msra.mxu0 %v2913
      %3591 = vmatprep.subr.bf16.mxu0 0
      %3592 = vmatpush1.bf16.msra.mxu0 %v2914
      %3593 = vmatprep.subr.bf16.mxu0 0
      %3594 = vmatpush1.bf16.msra.mxu0 %v2915
      %3595 = vmatprep.subr.bf16.mxu0 0
      %3596 = vmatpush1.bf16.msra.mxu0 %v2916
      %3597 = vmatprep.subr.bf16.mxu0 0
      %3598 = vmatpush1.bf16.msra.mxu0 %v2917
      %3599 = vmatprep.subr.bf16.mxu0 0
      %3600 = vmatpush1.bf16.msra.mxu0 %v2918
      %3601 = vmatprep.subr.bf16.mxu0 0
      %3602 = vmatpush1.bf16.msra.mxu0 %v2919
      %3603 = vmatprep.subr.bf16.mxu0 0
      %3604 = vmatpush1.bf16.msra.mxu0 %v2920
      %3605 = vmatprep.subr.bf16.mxu0 0
      %3606 = vmatpush1.bf16.msra.mxu0 %v2921
      %3607 = vmatprep.subr.bf16.mxu0 0
      %3608 = vmatpush1.bf16.msra.mxu0 %v2922
      %3609 = vmatprep.subr.bf16.mxu0 0
      %3610 = vmatpush1.bf16.msra.mxu0 %v2923
      %3611 = vmatprep.subr.bf16.mxu0 0
      %3612 = vmatpush1.bf16.msra.mxu0 %v2924
      %3613 = vmatprep.subr.bf16.mxu0 0
      %3614 = vmatpush1.bf16.msra.mxu0 %v2925
      %3615 = vmatprep.subr.bf16.mxu0 0
      %3616 = vmatpush1.bf16.msra.mxu0 %v2926
      %3617 = vmatprep.subr.bf16.mxu0 0
      %3618 = vmatpush1.bf16.msra.mxu0 %v2927
      %3619 = vmatprep.mubr.bf16.mxu0 %v1575
      %3620 = vmatmul.mubr.bf16.gmra.mrb[0].mxu0 %v1574
      %v3621 = vpop.f32.mrb[0].mxu0
      %v3622 = vadd.f32 %v3525, %v3621
      %v3623 = vpop.f32.mrb[0].mxu0
      %v3624 = vpop.f32.mrb[0].mxu0
      %v3625 = vadd.f32 %v3528, %v3624
      %v3626 = vpop.f32.mrb[0].mxu0
      %3627 = vmatprep.mubr.bf16.mxu0 %v1602
      %3628 = vmatmul.mubr.bf16.gmra.mrb[0].mxu0 %v1601
      %v3629 = vpop.f32.mrb[0].mxu0
      %v3630 = vadd.f32 %v3533, %v3629
      %v3631 = vpop.f32.mrb[0].mxu0
      %v3632 = vpop.f32.mrb[0].mxu0
      %v3633 = vadd.f32 %v3536, %v3632
      %v3634 = vpop.f32.mrb[0].mxu0
      %3635 = vmatprep.mubr.bf16.mxu0 %v1629
      %3636 = vmatmul.mubr.bf16.gmra.mrb[0].mxu0 %v1628
      %v3637 = vpop.f32.mrb[0].mxu0
      %v3638 = vadd.f32 %v3541, %v3637
      %v3639 = vpop.f32.mrb[0].mxu0
      %v3640 = vpop.f32.mrb[0].mxu0
      %v3641 = vadd.f32 %v3544, %v3640
      %v3642 = vpop.f32.mrb[0].mxu0
      %3643 = vmatprep.mubr.bf16.mxu0 %v1656
      %3644 = vmatmul.mubr.bf16.gmra.mrb[0].mxu0 %v1655
      %v3645 = vpop.f32.mrb[0].mxu0
      %v3646 = vadd.f32 %v3549, %v3645
      %v3647 = vpop.f32.mrb[0].mxu0
      %v3648 = vpop.f32.mrb[0].mxu0
      %v3649 = vadd.f32 %v3552, %v3648
      %v3650 = vpop.f32.mrb[0].mxu0
      %3651 = vmatprep.mubr.bf16.mxu0 %v1683
      %3652 = vmatmul.mubr.bf16.gmra.mrb[0].mxu0 %v1682
      %v3653 = vpop.f32.mrb[0].mxu0
      %v3654 = vadd.f32 %v3557, %v3653
      %v3655 = vpop.f32.mrb[0].mxu0
      %v3656 = vpop.f32.mrb[0].mxu0
      %v3657 = vadd.f32 %v3560, %v3656
      %v3658 = vpop.f32.mrb[0].mxu0
      %3659 = vmatprep.mubr.bf16.mxu0 %v1710
      %3660 = vmatmul.mubr.bf16.gmra.mrb[0].mxu0 %v1709
      %v3661 = vpop.f32.mrb[0].mxu0
      %v3662 = vadd.f32 %v3565, %v3661
      %v3663 = vpop.f32.mrb[0].mxu0
      %v3664 = vpop.f32.mrb[0].mxu0
      %v3665 = vadd.f32 %v3568, %v3664
      %v3666 = vpop.f32.mrb[0].mxu0
      %3667 = vmatprep.mubr.bf16.mxu0 %v1737
      %3668 = vmatmul.mubr.bf16.gmra.mrb[0].mxu0 %v1736
      %v3669 = vpop.f32.mrb[0].mxu0
      %v3670 = vadd.f32 %v3573, %v3669
      %v3671 = vpop.f32.mrb[0].mxu0
      %v3672 = vpop.f32.mrb[0].mxu0
      %v3673 = vadd.f32 %v3576, %v3672
      %v3674 = vpop.f32.mrb[0].mxu0
      %3675 = vmatprep.mubr.bf16.mxu0 %v1764
      %3676 = vmatmul.mubr.bf16.gmra.mrb[0].mxu0 %v1763
      %v3677 = vpop.f32.mrb[0].mxu0
      %v3678 = vadd.f32 %v3581, %v3677
      %v3679 = vpop.f32.mrb[0].mxu0
      %v3680 = vpop.f32.mrb[0].mxu0
      %v3681 = vadd.f32 %v3584, %v3680
      %v3682 = vpop.f32.mrb[0].mxu0
      %3683 = vdwg.mxu0
      %3684 = vmatprep.subr.bf16.mxu0 0
      %3685 = vmatpush1.bf16.msra.mxu0 %v2928
      %3686 = vmatprep.subr.bf16.mxu0 0
      %3687 = vmatpush1.bf16.msra.mxu0 %v2929
      %3688 = vmatprep.subr.bf16.mxu0 0
      %3689 = vmatpush1.bf16.msra.mxu0 %v2930
      %3690 = vmatprep.subr.bf16.mxu0 0
      %3691 = vmatpush1.bf16.msra.mxu0 %v2931
      %3692 = vmatprep.subr.bf16.mxu0 0
      %3693 = vmatpush1.bf16.msra.mxu0 %v2932
      %3694 = vmatprep.subr.bf16.mxu0 0
      %3695 = vmatpush1.bf16.msra.mxu0 %v2933
      %3696 = vmatprep.subr.bf16.mxu0 0
      %3697 = vmatpush1.bf16.msra.mxu0 %v2934
      %3698 = vmatprep.subr.bf16.mxu0 0
      %3699 = vmatpush1.bf16.msra.mxu0 %v2935
      %3700 = vmatprep.subr.bf16.mxu0 0
      %3701 = vmatpush1.bf16.msra.mxu0 %v2936
      %3702 = vmatprep.subr.bf16.mxu0 0
      %3703 = vmatpush1.bf16.msra.mxu0 %v2937
      %3704 = vmatprep.subr.bf16.mxu0 0
      %3705 = vmatpush1.bf16.msra.mxu0 %v2938
      %3706 = vmatprep.subr.bf16.mxu0 0
      %3707 = vmatpush1.bf16.msra.mxu0 %v2939
      %3708 = vmatprep.subr.bf16.mxu0 0
      %3709 = vmatpush1.bf16.msra.mxu0 %v2940
      %3710 = vmatprep.subr.bf16.mxu0 0
      %3711 = vmatpush1.bf16.msra.mxu0 %v2941
      %3712 = vmatprep.subr.bf16.mxu0 0
      %3713 = vmatpush1.bf16.msra.mxu0 %v2942
      %3714 = vmatprep.subr.bf16.mxu0 0
      %3715 = vmatpush1.bf16.msra.mxu0 %v2943
      %3716 = vmatprep.mubr.bf16.mxu0 %v1577
      %3717 = vmatmul.mubr.bf16.gmra.mrb[0].mxu0 %v1576
      %v3718 = vpop.f32.mrb[0].mxu0
      %v3719 = vadd.f32 %v3622, %v3718
      %v3720 = vpop.f32.mrb[0].mxu0
      %v3721 = vpop.f32.mrb[0].mxu0
      %v3722 = vadd.f32 %v3625, %v3721
      %v3723 = vpop.f32.mrb[0].mxu0
      %3724 = vmatprep.mubr.bf16.mxu0 %v1604
      %3725 = vmatmul.mubr.bf16.gmra.mrb[0].mxu0 %v1603
      %v3726 = vpop.f32.mrb[0].mxu0
      %v3727 = vadd.f32 %v3630, %v3726
      %v3728 = vpop.f32.mrb[0].mxu0
      %v3729 = vpop.f32.mrb[0].mxu0
      %v3730 = vadd.f32 %v3633, %v3729
      %v3731 = vpop.f32.mrb[0].mxu0
      %3732 = vmatprep.mubr.bf16.mxu0 %v1631
      %3733 = vmatmul.mubr.bf16.gmra.mrb[0].mxu0 %v1630
      %v3734 = vpop.f32.mrb[0].mxu0
      %v3735 = vadd.f32 %v3638, %v3734
      %v3736 = vpop.f32.mrb[0].mxu0
      %v3737 = vpop.f32.mrb[0].mxu0
      %v3738 = vadd.f32 %v3641, %v3737
      %v3739 = vpop.f32.mrb[0].mxu0
      %3740 = vmatprep.mubr.bf16.mxu0 %v1658
      %3741 = vmatmul.mubr.bf16.gmra.mrb[0].mxu0 %v1657
      %v3742 = vpop.f32.mrb[0].mxu0
      %v3743 = vadd.f32 %v3646, %v3742
      %v3744 = vpop.f32.mrb[0].mxu0
      %v3745 = vpop.f32.mrb[0].mxu0
      %v3746 = vadd.f32 %v3649, %v3745
      %v3747 = vpop.f32.mrb[0].mxu0
      %3748 = vmatprep.mubr.bf16.mxu0 %v1685
      %3749 = vmatmul.mubr.bf16.gmra.mrb[0].mxu0 %v1684
      %v3750 = vpop.f32.mrb[0].mxu0
      %v3751 = vadd.f32 %v3654, %v3750
      %v3752 = vpop.f32.mrb[0].mxu0
      %v3753 = vpop.f32.mrb[0].mxu0
      %v3754 = vadd.f32 %v3657, %v3753
      %v3755 = vpop.f32.mrb[0].mxu0
      %3756 = vmatprep.mubr.bf16.mxu0 %v1712
      %3757 = vmatmul.mubr.bf16.gmra.mrb[0].mxu0 %v1711
      %v3758 = vpop.f32.mrb[0].mxu0
      %v3759 = vadd.f32 %v3662, %v3758
      %v3760 = vpop.f32.mrb[0].mxu0
      %v3761 = vpop.f32.mrb[0].mxu0
      %v3762 = vadd.f32 %v3665, %v3761
      %v3763 = vpop.f32.mrb[0].mxu0
      %3764 = vmatprep.mubr.bf16.mxu0 %v1739
      %3765 = vmatmul.mubr.bf16.gmra.mrb[0].mxu0 %v1738
      %v3766 = vpop.f32.mrb[0].mxu0
      %v3767 = vadd.f32 %v3670, %v3766
      %v3768 = vpop.f32.mrb[0].mxu0
      %v3769 = vpop.f32.mrb[0].mxu0
      %v3770 = vadd.f32 %v3673, %v3769
      %v3771 = vpop.f32.mrb[0].mxu0
      %3772 = vmatprep.mubr.bf16.mxu0 %v1766
      %3773 = vmatmul.mubr.bf16.gmra.mrb[0].mxu0 %v1765
      %v3774 = vpop.f32.mrb[0].mxu0
      %v3775 = vadd.f32 %v3678, %v3774
      %v3776 = vpop.f32.mrb[0].mxu0
      %v3777 = vpop.f32.mrb[0].mxu0
      %v3778 = vadd.f32 %v3681, %v3777
      %v3779 = vpop.f32.mrb[0].mxu0
      %3780 = vdwg.mxu0
      %3781 = vmatprep.subr.bf16.mxu0 0
      %3782 = vmatpush1.bf16.msra.mxu0 %v2944
      %3783 = vmatprep.subr.bf16.mxu0 0
      %3784 = vmatpush1.bf16.msra.mxu0 %v2945
      %3785 = vmatprep.subr.bf16.mxu0 0
      %3786 = vmatpush1.bf16.msra.mxu0 %v2946
      %3787 = vmatprep.subr.bf16.mxu0 0
      %3788 = vmatpush1.bf16.msra.mxu0 %v2947
      %3789 = vmatprep.subr.bf16.mxu0 0
      %3790 = vmatpush1.bf16.msra.mxu0 %v2948
      %3791 = vmatprep.subr.bf16.mxu0 0
      %3792 = vmatpush1.bf16.msra.mxu0 %v2949
      %3793 = vmatprep.subr.bf16.mxu0 0
      %3794 = vmatpush1.bf16.msra.mxu0 %v2950
      %3795 = vmatprep.subr.bf16.mxu0 0
      %3796 = vmatpush1.bf16.msra.mxu0 %v2951
      %3797 = vmatprep.subr.bf16.mxu0 0
      %3798 = vmatpush1.bf16.msra.mxu0 %v2952
      %3799 = vmatprep.subr.bf16.mxu0 0
      %3800 = vmatpush1.bf16.msra.mxu0 %v2953
      %3801 = vmatprep.subr.bf16.mxu0 0
      %3802 = vmatpush1.bf16.msra.mxu0 %v2954
      %3803 = vmatprep.subr.bf16.mxu0 0
      %3804 = vmatpush1.bf16.msra.mxu0 %v2955
      %3805 = vmatprep.subr.bf16.mxu0 0
      %3806 = vmatpush1.bf16.msra.mxu0 %v2956
      %3807 = vmatprep.subr.bf16.mxu0 0
      %3808 = vmatpush1.bf16.msra.mxu0 %v2957
      %3809 = vmatprep.subr.bf16.mxu0 0
      %3810 = vmatpush1.bf16.msra.mxu0 %v2958
      %3811 = vmatprep.subr.bf16.mxu0 0
      %3812 = vmatpush1.bf16.msra.mxu0 %v2959
      %3813 = vmatprep.mubr.bf16.mxu0 %v1579
      %3814 = vmatmul.mubr.bf16.gmra.mrb[0].mxu0 %v1578
      %v3815 = vpop.f32.mrb[0].mxu0
      %v3816 = vadd.f32 %v3719, %v3815
      %v3817 = vpop.f32.mrb[0].mxu0
      %v3818 = vpop.f32.mrb[0].mxu0
      %v3819 = vadd.f32 %v3722, %v3818
      %v3820 = vpop.f32.mrb[0].mxu0
      %3821 = vmatprep.mubr.bf16.mxu0 %v1606
      %3822 = vmatmul.mubr.bf16.gmra.mrb[0].mxu0 %v1605
      %v3823 = vpop.f32.mrb[0].mxu0
      %v3824 = vadd.f32 %v3727, %v3823
      %v3825 = vpop.f32.mrb[0].mxu0
      %v3826 = vpop.f32.mrb[0].mxu0
      %v3827 = vadd.f32 %v3730, %v3826
      %v3828 = vpop.f32.mrb[0].mxu0
      %3829 = vmatprep.mubr.bf16.mxu0 %v1633
      %3830 = vmatmul.mubr.bf16.gmra.mrb[0].mxu0 %v1632
      %v3831 = vpop.f32.mrb[0].mxu0
      %v3832 = vadd.f32 %v3735, %v3831
      %v3833 = vpop.f32.mrb[0].mxu0
      %v3834 = vpop.f32.mrb[0].mxu0
      %v3835 = vadd.f32 %v3738, %v3834
      %v3836 = vpop.f32.mrb[0].mxu0
      %3837 = vmatprep.mubr.bf16.mxu0 %v1660
      %3838 = vmatmul.mubr.bf16.gmra.mrb[0].mxu0 %v1659
      %v3839 = vpop.f32.mrb[0].mxu0
      %v3840 = vadd.f32 %v3743, %v3839
      %v3841 = vpop.f32.mrb[0].mxu0
      %v3842 = vpop.f32.mrb[0].mxu0
      %v3843 = vadd.f32 %v3746, %v3842
      %v3844 = vpop.f32.mrb[0].mxu0
      %3845 = vmatprep.mubr.bf16.mxu0 %v1687
      %3846 = vmatmul.mubr.bf16.gmra.mrb[0].mxu0 %v1686
      %v3847 = vpop.f32.mrb[0].mxu0
      %v3848 = vadd.f32 %v3751, %v3847
      %v3849 = vpop.f32.mrb[0].mxu0
      %v3850 = vpop.f32.mrb[0].mxu0
      %v3851 = vadd.f32 %v3754, %v3850
      %v3852 = vpop.f32.mrb[0].mxu0
      %3853 = vmatprep.mubr.bf16.mxu0 %v1714
      %3854 = vmatmul.mubr.bf16.gmra.mrb[0].mxu0 %v1713
      %v3855 = vpop.f32.mrb[0].mxu0
      %v3856 = vadd.f32 %v3759, %v3855
      %v3857 = vpop.f32.mrb[0].mxu0
      %v3858 = vpop.f32.mrb[0].mxu0
      %v3859 = vadd.f32 %v3762, %v3858
      %v3860 = vpop.f32.mrb[0].mxu0
      %3861 = vmatprep.mubr.bf16.mxu0 %v1741
      %3862 = vmatmul.mubr.bf16.gmra.mrb[0].mxu0 %v1740
      %v3863 = vpop.f32.mrb[0].mxu0
      %v3864 = vadd.f32 %v3767, %v3863
      %v3865 = vpop.f32.mrb[0].mxu0
      %v3866 = vpop.f32.mrb[0].mxu0
      %v3867 = vadd.f32 %v3770, %v3866
      %v3868 = vpop.f32.mrb[0].mxu0
      %3869 = vmatprep.mubr.bf16.mxu0 %v1768
      %3870 = vmatmul.mubr.bf16.gmra.mrb[0].mxu0 %v1767
      %v3871 = vpop.f32.mrb[0].mxu0
      %v3872 = vadd.f32 %v3775, %v3871
      %v3873 = vpop.f32.mrb[0].mxu0
      %v3874 = vpop.f32.mrb[0].mxu0
      %v3875 = vadd.f32 %v3778, %v3874
      %v3876 = vpop.f32.mrb[0].mxu0
      %3877 = vdwg.mxu0
      %3878 = vmatprep.subr.bf16.mxu0 0
      %3879 = vmatpush1.bf16.msra.mxu0 %v2960
      %3880 = vmatprep.subr.bf16.mxu0 0
      %3881 = vmatpush1.bf16.msra.mxu0 %v2961
      %3882 = vmatprep.subr.bf16.mxu0 0
      %3883 = vmatpush1.bf16.msra.mxu0 %v2962
      %3884 = vmatprep.subr.bf16.mxu0 0
      %3885 = vmatpush1.bf16.msra.mxu0 %v2963
      %3886 = vmatprep.subr.bf16.mxu0 0
      %3887 = vmatpush1.bf16.msra.mxu0 %v2964
      %3888 = vmatprep.subr.bf16.mxu0 0
      %3889 = vmatpush1.bf16.msra.mxu0 %v2965
      %3890 = vmatprep.subr.bf16.mxu0 0
      %3891 = vmatpush1.bf16.msra.mxu0 %v2966
      %3892 = vmatprep.subr.bf16.mxu0 0
      %3893 = vmatpush1.bf16.msra.mxu0 %v2967
      %3894 = vmatprep.subr.bf16.mxu0 0
      %3895 = vmatpush1.bf16.msra.mxu0 %v2968
      %3896 = vmatprep.subr.bf16.mxu0 0
      %3897 = vmatpush1.bf16.msra.mxu0 %v2969
      %3898 = vmatprep.subr.bf16.mxu0 0
      %3899 = vmatpush1.bf16.msra.mxu0 %v2970
      %3900 = vmatprep.subr.bf16.mxu0 0
      %3901 = vmatpush1.bf16.msra.mxu0 %v2971
      %3902 = vmatprep.subr.bf16.mxu0 0
      %3903 = vmatpush1.bf16.msra.mxu0 %v2972
      %3904 = vmatprep.subr.bf16.mxu0 0
      %3905 = vmatpush1.bf16.msra.mxu0 %v2973
      %3906 = vmatprep.subr.bf16.mxu0 0
      %3907 = vmatpush1.bf16.msra.mxu0 %v2974
      %3908 = vmatprep.subr.bf16.mxu0 0
      %3909 = vmatpush1.bf16.msra.mxu0 %v2975
      %3910 = vmatprep.mubr.bf16.mxu0 %v1581
      %3911 = vmatmul.mubr.bf16.gmra.mrb[0].mxu0 %v1580
      %v3912 = vpop.f32.mrb[0].mxu0
      %v3913 = vadd.f32 %v3816, %v3912
      %v3914 = vpop.f32.mrb[0].mxu0
      %v3915 = vpop.f32.mrb[0].mxu0
      %v3916 = vadd.f32 %v3819, %v3915
      %v3917 = vpop.f32.mrb[0].mxu0
      %3918 = vmatprep.mubr.bf16.mxu0 %v1608
      %3919 = vmatmul.mubr.bf16.gmra.mrb[0].mxu0 %v1607
      %v3920 = vpop.f32.mrb[0].mxu0
      %v3921 = vadd.f32 %v3824, %v3920
      %v3922 = vpop.f32.mrb[0].mxu0
      %v3923 = vpop.f32.mrb[0].mxu0
      %v3924 = vadd.f32 %v3827, %v3923
      %v3925 = vpop.f32.mrb[0].mxu0
      %3926 = vmatprep.mubr.bf16.mxu0 %v1635
      %3927 = vmatmul.mubr.bf16.gmra.mrb[0].mxu0 %v1634
      %v3928 = vpop.f32.mrb[0].mxu0
      %v3929 = vadd.f32 %v3832, %v3928
      %v3930 = vpop.f32.mrb[0].mxu0
      %v3931 = vpop.f32.mrb[0].mxu0
      %v3932 = vadd.f32 %v3835, %v3931
      %v3933 = vpop.f32.mrb[0].mxu0
      %3934 = vmatprep.mubr.bf16.mxu0 %v1662
      %3935 = vmatmul.mubr.bf16.gmra.mrb[0].mxu0 %v1661
      %v3936 = vpop.f32.mrb[0].mxu0
      %v3937 = vadd.f32 %v3840, %v3936
      %v3938 = vpop.f32.mrb[0].mxu0
      %v3939 = vpop.f32.mrb[0].mxu0
      %v3940 = vadd.f32 %v3843, %v3939
      %v3941 = vpop.f32.mrb[0].mxu0
      %3942 = vmatprep.mubr.bf16.mxu0 %v1689
      %3943 = vmatmul.mubr.bf16.gmra.mrb[0].mxu0 %v1688
      %v3944 = vpop.f32.mrb[0].mxu0
      %v3945 = vadd.f32 %v3848, %v3944
      %v3946 = vpop.f32.mrb[0].mxu0
      %v3947 = vpop.f32.mrb[0].mxu0
      %v3948 = vadd.f32 %v3851, %v3947
      %v3949 = vpop.f32.mrb[0].mxu0
      %3950 = vmatprep.mubr.bf16.mxu0 %v1716
      %3951 = vmatmul.mubr.bf16.gmra.mrb[0].mxu0 %v1715
      %v3952 = vpop.f32.mrb[0].mxu0
      %v3953 = vadd.f32 %v3856, %v3952
      %v3954 = vpop.f32.mrb[0].mxu0
      %v3955 = vpop.f32.mrb[0].mxu0
      %v3956 = vadd.f32 %v3859, %v3955
      %v3957 = vpop.f32.mrb[0].mxu0
      %3958 = vmatprep.mubr.bf16.mxu0 %v1743
      %3959 = vmatmul.mubr.bf16.gmra.mrb[0].mxu0 %v1742
      %v3960 = vpop.f32.mrb[0].mxu0
      %v3961 = vadd.f32 %v3864, %v3960
      %v3962 = vpop.f32.mrb[0].mxu0
      %v3963 = vpop.f32.mrb[0].mxu0
      %v3964 = vadd.f32 %v3867, %v3963
      %v3965 = vpop.f32.mrb[0].mxu0
      %3966 = vmatprep.mubr.bf16.mxu0 %v1770
      %3967 = vmatmul.mubr.bf16.gmra.mrb[0].mxu0 %v1769
      %v3968 = vpop.f32.mrb[0].mxu0
      %v3969 = vadd.f32 %v3872, %v3968
      %v3970 = vpop.f32.mrb[0].mxu0
      %v3971 = vpop.f32.mrb[0].mxu0
      %v3972 = vadd.f32 %v3875, %v3971
      %v3973 = vpop.f32.mrb[0].mxu0
      %3974 = vdwg.mxu0
      %3975 = vmatprep.subr.bf16.mxu0 0
      %3976 = vmatpush1.bf16.msra.mxu0 %v2976
      %3977 = vmatprep.subr.bf16.mxu0 0
      %3978 = vmatpush1.bf16.msra.mxu0 %v2977
      %3979 = vmatprep.subr.bf16.mxu0 0
      %3980 = vmatpush1.bf16.msra.mxu0 %v2978
      %3981 = vmatprep.subr.bf16.mxu0 0
      %3982 = vmatpush1.bf16.msra.mxu0 %v2979
      %3983 = vmatprep.subr.bf16.mxu0 0
      %3984 = vmatpush1.bf16.msra.mxu0 %v2980
      %3985 = vmatprep.subr.bf16.mxu0 0
      %3986 = vmatpush1.bf16.msra.mxu0 %v2981
      %3987 = vmatprep.subr.bf16.mxu0 0
      %3988 = vmatpush1.bf16.msra.mxu0 %v2982
      %3989 = vmatprep.subr.bf16.mxu0 0
      %3990 = vmatpush1.bf16.msra.mxu0 %v2983
      %3991 = vmatprep.subr.bf16.mxu0 0
      %3992 = vmatpush1.bf16.msra.mxu0 %v2984
      %3993 = vmatprep.subr.bf16.mxu0 0
      %3994 = vmatpush1.bf16.msra.mxu0 %v2985
      %3995 = vmatprep.subr.bf16.mxu0 0
      %3996 = vmatpush1.bf16.msra.mxu0 %v2986
      %3997 = vmatprep.subr.bf16.mxu0 0
      %3998 = vmatpush1.bf16.msra.mxu0 %v2987
      %3999 = vmatprep.subr.bf16.mxu0 0
      %4000 = vmatpush1.bf16.msra.mxu0 %v2988
      %4001 = vmatprep.subr.bf16.mxu0 0
      %4002 = vmatpush1.bf16.msra.mxu0 %v2989
      %4003 = vmatprep.subr.bf16.mxu0 0
      %4004 = vmatpush1.bf16.msra.mxu0 %v2990
      %4005 = vmatprep.subr.bf16.mxu0 0
      %4006 = vmatpush1.bf16.msra.mxu0 %v2991
      %4007 = vmatprep.mubr.bf16.mxu0 %v1583
      %4008 = vmatmul.mubr.bf16.gmra.mrb[0].mxu0 %v1582
      %v4009 = vpop.f32.mrb[0].mxu0
      %v4010 = vadd.f32 %v3913, %v4009
      %v4011 = vpop.f32.mrb[0].mxu0
      %v4012 = vpop.f32.mrb[0].mxu0
      %v4013 = vadd.f32 %v3916, %v4012
      %v4014 = vpop.f32.mrb[0].mxu0
      %4015 = vmatprep.mubr.bf16.mxu0 %v1610
      %4016 = vmatmul.mubr.bf16.gmra.mrb[0].mxu0 %v1609
      %v4017 = vpop.f32.mrb[0].mxu0
      %v4018 = vadd.f32 %v3921, %v4017
      %v4019 = vpop.f32.mrb[0].mxu0
      %v4020 = vpop.f32.mrb[0].mxu0
      %v4021 = vadd.f32 %v3924, %v4020
      %v4022 = vpop.f32.mrb[0].mxu0
      %4023 = vmatprep.mubr.bf16.mxu0 %v1637
      %4024 = vmatmul.mubr.bf16.gmra.mrb[0].mxu0 %v1636
      %v4025 = vpop.f32.mrb[0].mxu0
      %v4026 = vadd.f32 %v3929, %v4025
      %v4027 = vpop.f32.mrb[0].mxu0
      %v4028 = vpop.f32.mrb[0].mxu0
      %v4029 = vadd.f32 %v3932, %v4028
      %v4030 = vpop.f32.mrb[0].mxu0
      %4031 = vmatprep.mubr.bf16.mxu0 %v1664
      %4032 = vmatmul.mubr.bf16.gmra.mrb[0].mxu0 %v1663
      %v4033 = vpop.f32.mrb[0].mxu0
      %v4034 = vadd.f32 %v3937, %v4033
      %v4035 = vpop.f32.mrb[0].mxu0
      %v4036 = vpop.f32.mrb[0].mxu0
      %v4037 = vadd.f32 %v3940, %v4036
      %v4038 = vpop.f32.mrb[0].mxu0
      %4039 = vmatprep.mubr.bf16.mxu0 %v1691
      %4040 = vmatmul.mubr.bf16.gmra.mrb[0].mxu0 %v1690
      %v4041 = vpop.f32.mrb[0].mxu0
      %v4042 = vadd.f32 %v3945, %v4041
      %v4043 = vpop.f32.mrb[0].mxu0
      %v4044 = vpop.f32.mrb[0].mxu0
      %v4045 = vadd.f32 %v3948, %v4044
      %v4046 = vpop.f32.mrb[0].mxu0
      %4047 = vmatprep.mubr.bf16.mxu0 %v1718
      %4048 = vmatmul.mubr.bf16.gmra.mrb[0].mxu0 %v1717
      %v4049 = vpop.f32.mrb[0].mxu0
      %v4050 = vadd.f32 %v3953, %v4049
      %v4051 = vpop.f32.mrb[0].mxu0
      %v4052 = vpop.f32.mrb[0].mxu0
      %v4053 = vadd.f32 %v3956, %v4052
      %v4054 = vpop.f32.mrb[0].mxu0
      %4055 = vmatprep.mubr.bf16.mxu0 %v1745
      %4056 = vmatmul.mubr.bf16.gmra.mrb[0].mxu0 %v1744
      %v4057 = vpop.f32.mrb[0].mxu0
      %v4058 = vadd.f32 %v3961, %v4057
      %v4059 = vpop.f32.mrb[0].mxu0
      %v4060 = vpop.f32.mrb[0].mxu0
      %v4061 = vadd.f32 %v3964, %v4060
      %v4062 = vpop.f32.mrb[0].mxu0
      %4063 = vmatprep.mubr.bf16.mxu0 %v1772
      %4064 = vmatmul.mubr.bf16.gmra.mrb[0].mxu0 %v1771
      %v4065 = vpop.f32.mrb[0].mxu0
      %v4066 = vadd.f32 %v3969, %v4065
      %v4067 = vpop.f32.mrb[0].mxu0
      %v4068 = vpop.f32.mrb[0].mxu0
      %v4069 = vadd.f32 %v3972, %v4068
      %v4070 = vpop.f32.mrb[0].mxu0
      %4071 = vdwg.mxu0
      %4072 = vmatprep.subr.bf16.mxu0 0
      %4073 = vmatpush1.bf16.msra.mxu0 %v2992
      %4074 = vmatprep.subr.bf16.mxu0 0
      %4075 = vmatpush1.bf16.msra.mxu0 %v2993
      %4076 = vmatprep.subr.bf16.mxu0 0
      %4077 = vmatpush1.bf16.msra.mxu0 %v2994
      %4078 = vmatprep.subr.bf16.mxu0 0
      %4079 = vmatpush1.bf16.msra.mxu0 %v2995
      %4080 = vmatprep.subr.bf16.mxu0 0
      %4081 = vmatpush1.bf16.msra.mxu0 %v2996
      %4082 = vmatprep.subr.bf16.mxu0 0
      %4083 = vmatpush1.bf16.msra.mxu0 %v2997
      %4084 = vmatprep.subr.bf16.mxu0 0
      %4085 = vmatpush1.bf16.msra.mxu0 %v2998
      %4086 = vmatprep.subr.bf16.mxu0 0
      %4087 = vmatpush1.bf16.msra.mxu0 %v2999
      %4088 = vmatprep.subr.bf16.mxu0 0
      %4089 = vmatpush1.bf16.msra.mxu0 %v3000
      %4090 = vmatprep.subr.bf16.mxu0 0
      %4091 = vmatpush1.bf16.msra.mxu0 %v3001
      %4092 = vmatprep.subr.bf16.mxu0 0
      %4093 = vmatpush1.bf16.msra.mxu0 %v3002
      %4094 = vmatprep.subr.bf16.mxu0 0
      %4095 = vmatpush1.bf16.msra.mxu0 %v3003
      %4096 = vmatprep.subr.bf16.mxu0 0
      %4097 = vmatpush1.bf16.msra.mxu0 %v3004
      %4098 = vmatprep.subr.bf16.mxu0 0
      %4099 = vmatpush1.bf16.msra.mxu0 %v3005
      %4100 = vmatprep.subr.bf16.mxu0 0
      %4101 = vmatpush1.bf16.msra.mxu0 %v3006
      %4102 = vmatprep.subr.bf16.mxu0 0
      %4103 = vmatpush1.bf16.msra.mxu0 %v3007
      %4104 = vmatprep.mubr.bf16.mxu0 %v1585
      %4105 = vmatmul.mubr.bf16.gmra.mrb[0].mxu0 %v1584
      %v4106 = vpop.f32.mrb[0].mxu0
      %v4107 = vadd.f32 %v4010, %v4106
      %v4108 = vpop.f32.mrb[0].mxu0
      %v4109 = vpop.f32.mrb[0].mxu0
      %v4110 = vadd.f32 %v4013, %v4109
      %v4111 = vpop.f32.mrb[0].mxu0
      %4112 = vmatprep.mubr.bf16.mxu0 %v1612
      %4113 = vmatmul.mubr.bf16.gmra.mrb[0].mxu0 %v1611
      %v4114 = vpop.f32.mrb[0].mxu0
      %v4115 = vadd.f32 %v4018, %v4114
      %v4116 = vpop.f32.mrb[0].mxu0
      %v4117 = vpop.f32.mrb[0].mxu0
      %v4118 = vadd.f32 %v4021, %v4117
      %v4119 = vpop.f32.mrb[0].mxu0
      %4120 = vmatprep.mubr.bf16.mxu0 %v1639
      %4121 = vmatmul.mubr.bf16.gmra.mrb[0].mxu0 %v1638
      %v4122 = vpop.f32.mrb[0].mxu0
      %v4123 = vadd.f32 %v4026, %v4122
      %v4124 = vpop.f32.mrb[0].mxu0
      %v4125 = vpop.f32.mrb[0].mxu0
      %v4126 = vadd.f32 %v4029, %v4125
      %v4127 = vpop.f32.mrb[0].mxu0
      %4128 = vmatprep.mubr.bf16.mxu0 %v1666
      %4129 = vmatmul.mubr.bf16.gmra.mrb[0].mxu0 %v1665
      %v4130 = vpop.f32.mrb[0].mxu0
      %v4131 = vadd.f32 %v4034, %v4130
      %v4132 = vpop.f32.mrb[0].mxu0
      %v4133 = vpop.f32.mrb[0].mxu0
      %v4134 = vadd.f32 %v4037, %v4133
      %v4135 = vpop.f32.mrb[0].mxu0
      %4136 = vmatprep.mubr.bf16.mxu0 %v1693
      %4137 = vmatmul.mubr.bf16.gmra.mrb[0].mxu0 %v1692
      %v4138 = vpop.f32.mrb[0].mxu0
      %v4139 = vadd.f32 %v4042, %v4138
      %v4140 = vpop.f32.mrb[0].mxu0
      %v4141 = vpop.f32.mrb[0].mxu0
      %v4142 = vadd.f32 %v4045, %v4141
      %v4143 = vpop.f32.mrb[0].mxu0
      %4144 = vmatprep.mubr.bf16.mxu0 %v1720
      %4145 = vmatmul.mubr.bf16.gmra.mrb[0].mxu0 %v1719
      %v4146 = vpop.f32.mrb[0].mxu0
      %v4147 = vadd.f32 %v4050, %v4146
      %v4148 = vpop.f32.mrb[0].mxu0
      %v4149 = vpop.f32.mrb[0].mxu0
      %v4150 = vadd.f32 %v4053, %v4149
      %v4151 = vpop.f32.mrb[0].mxu0
      %4152 = vmatprep.mubr.bf16.mxu0 %v1747
      %4153 = vmatmul.mubr.bf16.gmra.mrb[0].mxu0 %v1746
      %v4154 = vpop.f32.mrb[0].mxu0
      %v4155 = vadd.f32 %v4058, %v4154
      %v4156 = vpop.f32.mrb[0].mxu0
      %v4157 = vpop.f32.mrb[0].mxu0
      %v4158 = vadd.f32 %v4061, %v4157
      %v4159 = vpop.f32.mrb[0].mxu0
      %4160 = vmatprep.mubr.bf16.mxu0 %v1774
      %4161 = vmatmul.mubr.bf16.gmra.mrb[0].mxu0 %v1773
      %v4162 = vpop.f32.mrb[0].mxu0
      %v4163 = vadd.f32 %v4066, %v4162
      %v4164 = vpop.f32.mrb[0].mxu0
      %v4165 = vpop.f32.mrb[0].mxu0
      %v4166 = vadd.f32 %v4069, %v4165
      %v4167 = vpop.f32.mrb[0].mxu0
      %4168 = vdwg.mxu0
      %4169 = vmatprep.subr.bf16.mxu0 0
      %4170 = vmatpush1.bf16.msra.mxu0 %v3008
      %4171 = vmatprep.subr.bf16.mxu0 0
      %4172 = vmatpush1.bf16.msra.mxu0 %v3009
      %4173 = vmatprep.subr.bf16.mxu0 0
      %4174 = vmatpush1.bf16.msra.mxu0 %v3010
      %4175 = vmatprep.subr.bf16.mxu0 0
      %4176 = vmatpush1.bf16.msra.mxu0 %v3011
      %4177 = vmatprep.subr.bf16.mxu0 0
      %4178 = vmatpush1.bf16.msra.mxu0 %v3012
      %4179 = vmatprep.subr.bf16.mxu0 0
      %4180 = vmatpush1.bf16.msra.mxu0 %v3013
      %4181 = vmatprep.subr.bf16.mxu0 0
      %4182 = vmatpush1.bf16.msra.mxu0 %v3014
      %4183 = vmatprep.subr.bf16.mxu0 0
      %4184 = vmatpush1.bf16.msra.mxu0 %v3015
      %4185 = vmatprep.subr.bf16.mxu0 0
      %4186 = vmatpush1.bf16.msra.mxu0 %v3016
      %4187 = vmatprep.subr.bf16.mxu0 0
      %4188 = vmatpush1.bf16.msra.mxu0 %v3017
      %4189 = vmatprep.subr.bf16.mxu0 0
      %4190 = vmatpush1.bf16.msra.mxu0 %v3018
      %4191 = vmatprep.subr.bf16.mxu0 0
      %4192 = vmatpush1.bf16.msra.mxu0 %v3019
      %4193 = vmatprep.subr.bf16.mxu0 0
      %4194 = vmatpush1.bf16.msra.mxu0 %v3020
      %4195 = vmatprep.subr.bf16.mxu0 0
      %4196 = vmatpush1.bf16.msra.mxu0 %v3021
      %4197 = vmatprep.subr.bf16.mxu0 0
      %4198 = vmatpush1.bf16.msra.mxu0 %v3022
      %4199 = vmatprep.subr.bf16.mxu0 0
      %4200 = vmatpush1.bf16.msra.mxu0 %v3023
      %4201 = vmatprep.mubr.bf16.mxu0 %v1587
      %4202 = vmatmul.mubr.bf16.gmra.mrb[0].mxu0 %v1586
      %v4203 = vpop.f32.mrb[0].mxu0
      %v4204 = vadd.f32 %v4107, %v4203
      %v4205 = vpop.f32.mrb[0].mxu0
      %v4206 = vpop.f32.mrb[0].mxu0
      %v4207 = vadd.f32 %v4110, %v4206
      %v4208 = vpop.f32.mrb[0].mxu0
      %4209 = vmatprep.mubr.bf16.mxu0 %v1614
      %4210 = vmatmul.mubr.bf16.gmra.mrb[0].mxu0 %v1613
      %v4211 = vpop.f32.mrb[0].mxu0
      %v4212 = vadd.f32 %v4115, %v4211
      %v4213 = vpop.f32.mrb[0].mxu0
      %v4214 = vpop.f32.mrb[0].mxu0
      %v4215 = vadd.f32 %v4118, %v4214
      %v4216 = vpop.f32.mrb[0].mxu0
      %4217 = vmatprep.mubr.bf16.mxu0 %v1641
      %4218 = vmatmul.mubr.bf16.gmra.mrb[0].mxu0 %v1640
      %v4219 = vpop.f32.mrb[0].mxu0
      %v4220 = vadd.f32 %v4123, %v4219
      %v4221 = vpop.f32.mrb[0].mxu0
      %v4222 = vpop.f32.mrb[0].mxu0
      %v4223 = vadd.f32 %v4126, %v4222
      %v4224 = vpop.f32.mrb[0].mxu0
      %4225 = vmatprep.mubr.bf16.mxu0 %v1668
      %4226 = vmatmul.mubr.bf16.gmra.mrb[0].mxu0 %v1667
      %v4227 = vpop.f32.mrb[0].mxu0
      %v4228 = vadd.f32 %v4131, %v4227
      %v4229 = vpop.f32.mrb[0].mxu0
      %v4230 = vpop.f32.mrb[0].mxu0
      %v4231 = vadd.f32 %v4134, %v4230
      %v4232 = vpop.f32.mrb[0].mxu0
      %4233 = vmatprep.mubr.bf16.mxu0 %v1695
      %4234 = vmatmul.mubr.bf16.gmra.mrb[0].mxu0 %v1694
      %v4235 = vpop.f32.mrb[0].mxu0
      %v4236 = vadd.f32 %v4139, %v4235
      %v4237 = vpop.f32.mrb[0].mxu0
      %v4238 = vpop.f32.mrb[0].mxu0
      %v4239 = vadd.f32 %v4142, %v4238
      %v4240 = vpop.f32.mrb[0].mxu0
      %4241 = vmatprep.mubr.bf16.mxu0 %v1722
      %4242 = vmatmul.mubr.bf16.gmra.mrb[0].mxu0 %v1721
      %v4243 = vpop.f32.mrb[0].mxu0
      %v4244 = vadd.f32 %v4147, %v4243
      %v4245 = vpop.f32.mrb[0].mxu0
      %v4246 = vpop.f32.mrb[0].mxu0
      %v4247 = vadd.f32 %v4150, %v4246
      %v4248 = vpop.f32.mrb[0].mxu0
      %4249 = vmatprep.mubr.bf16.mxu0 %v1749
      %4250 = vmatmul.mubr.bf16.gmra.mrb[0].mxu0 %v1748
      %v4251 = vpop.f32.mrb[0].mxu0
      %v4252 = vadd.f32 %v4155, %v4251
      %v4253 = vpop.f32.mrb[0].mxu0
      %v4254 = vpop.f32.mrb[0].mxu0
      %v4255 = vadd.f32 %v4158, %v4254
      %v4256 = vpop.f32.mrb[0].mxu0
      %4257 = vmatprep.mubr.bf16.mxu0 %v1776
      %4258 = vmatmul.mubr.bf16.gmra.mrb[0].mxu0 %v1775
      %v4259 = vpop.f32.mrb[0].mxu0
      %v4260 = vadd.f32 %v4163, %v4259
      %v4261 = vpop.f32.mrb[0].mxu0
      %v4262 = vpop.f32.mrb[0].mxu0
      %v4263 = vadd.f32 %v4166, %v4262
      %v4264 = vpop.f32.mrb[0].mxu0
      %4265 = vdwg.mxu0
      %4266 = vmatprep.subr.bf16.mxu0 0
      %4267 = vmatpush1.bf16.msra.mxu0 %v3024
      %4268 = vmatprep.subr.bf16.mxu0 0
      %4269 = vmatpush1.bf16.msra.mxu0 %v3025
      %4270 = vmatprep.subr.bf16.mxu0 0
      %4271 = vmatpush1.bf16.msra.mxu0 %v3026
      %4272 = vmatprep.subr.bf16.mxu0 0
      %4273 = vmatpush1.bf16.msra.mxu0 %v3027
      %4274 = vmatprep.subr.bf16.mxu0 0
      %4275 = vmatpush1.bf16.msra.mxu0 %v3028
      %4276 = vmatprep.subr.bf16.mxu0 0
      %4277 = vmatpush1.bf16.msra.mxu0 %v3029
      %4278 = vmatprep.subr.bf16.mxu0 0
      %4279 = vmatpush1.bf16.msra.mxu0 %v3030
      %4280 = vmatprep.subr.bf16.mxu0 0
      %4281 = vmatpush1.bf16.msra.mxu0 %v3031
      %4282 = vmatprep.subr.bf16.mxu0 0
      %4283 = vmatpush1.bf16.msra.mxu0 %v3032
      %4284 = vmatprep.subr.bf16.mxu0 0
      %4285 = vmatpush1.bf16.msra.mxu0 %v3033
      %4286 = vmatprep.subr.bf16.mxu0 0
      %4287 = vmatpush1.bf16.msra.mxu0 %v3034
      %4288 = vmatprep.subr.bf16.mxu0 0
      %4289 = vmatpush1.bf16.msra.mxu0 %v3035
      %4290 = vmatprep.subr.bf16.mxu0 0
      %4291 = vmatpush1.bf16.msra.mxu0 %v3036
      %4292 = vmatprep.subr.bf16.mxu0 0
      %4293 = vmatpush1.bf16.msra.mxu0 %v3037
      %4294 = vmatprep.subr.bf16.mxu0 0
      %4295 = vmatpush1.bf16.msra.mxu0 %v3038
      %4296 = vmatprep.subr.bf16.mxu0 0
      %4297 = vmatpush1.bf16.msra.mxu0 %v3039
      %4298 = vmatprep.mubr.bf16.mxu0 %v1589
      %4299 = vmatmul.mubr.bf16.gmra.mrb[0].mxu0 %v1588
      %v4300 = vpop.f32.mrb[0].mxu0
      %v4301 = vadd.f32 %v4204, %v4300
      %v4302 = vpop.f32.mrb[0].mxu0
      %v4303 = vpop.f32.mrb[0].mxu0
      %v4304 = vadd.f32 %v4207, %v4303
      %v4305 = vpop.f32.mrb[0].mxu0
      %4306 = vmatprep.mubr.bf16.mxu0 %v1616
      %4307 = vmatmul.mubr.bf16.gmra.mrb[0].mxu0 %v1615
      %v4308 = vpop.f32.mrb[0].mxu0
      %v4309 = vadd.f32 %v4212, %v4308
      %v4310 = vpop.f32.mrb[0].mxu0
      %v4311 = vpop.f32.mrb[0].mxu0
      %v4312 = vadd.f32 %v4215, %v4311
      %v4313 = vpop.f32.mrb[0].mxu0
      %4314 = vmatprep.mubr.bf16.mxu0 %v1643
      %4315 = vmatmul.mubr.bf16.gmra.mrb[0].mxu0 %v1642
      %v4316 = vpop.f32.mrb[0].mxu0
      %v4317 = vadd.f32 %v4220, %v4316
      %v4318 = vpop.f32.mrb[0].mxu0
      %v4319 = vpop.f32.mrb[0].mxu0
      %v4320 = vadd.f32 %v4223, %v4319
      %v4321 = vpop.f32.mrb[0].mxu0
      %4322 = vmatprep.mubr.bf16.mxu0 %v1670
      %4323 = vmatmul.mubr.bf16.gmra.mrb[0].mxu0 %v1669
      %v4324 = vpop.f32.mrb[0].mxu0
      %v4325 = vadd.f32 %v4228, %v4324
      %v4326 = vpop.f32.mrb[0].mxu0
      %v4327 = vpop.f32.mrb[0].mxu0
      %v4328 = vadd.f32 %v4231, %v4327
      %v4329 = vpop.f32.mrb[0].mxu0
      %4330 = vmatprep.mubr.bf16.mxu0 %v1697
      %4331 = vmatmul.mubr.bf16.gmra.mrb[0].mxu0 %v1696
      %v4332 = vpop.f32.mrb[0].mxu0
      %v4333 = vadd.f32 %v4236, %v4332
      %v4334 = vpop.f32.mrb[0].mxu0
      %v4335 = vpop.f32.mrb[0].mxu0
      %v4336 = vadd.f32 %v4239, %v4335
      %v4337 = vpop.f32.mrb[0].mxu0
      %4338 = vmatprep.mubr.bf16.mxu0 %v1724
      %4339 = vmatmul.mubr.bf16.gmra.mrb[0].mxu0 %v1723
      %v4340 = vpop.f32.mrb[0].mxu0
      %v4341 = vadd.f32 %v4244, %v4340
      %v4342 = vpop.f32.mrb[0].mxu0
      %v4343 = vpop.f32.mrb[0].mxu0
      %v4344 = vadd.f32 %v4247, %v4343
      %v4345 = vpop.f32.mrb[0].mxu0
      %4346 = vmatprep.mubr.bf16.mxu0 %v1751
      %4347 = vmatmul.mubr.bf16.gmra.mrb[0].mxu0 %v1750
      %v4348 = vpop.f32.mrb[0].mxu0
      %v4349 = vadd.f32 %v4252, %v4348
      %v4350 = vpop.f32.mrb[0].mxu0
      %v4351 = vpop.f32.mrb[0].mxu0
      %v4352 = vadd.f32 %v4255, %v4351
      %v4353 = vpop.f32.mrb[0].mxu0
      %4354 = vmatprep.mubr.bf16.mxu0 %v1778
      %4355 = vmatmul.mubr.bf16.gmra.mrb[0].mxu0 %v1777
      %v4356 = vpop.f32.mrb[0].mxu0
      %v4357 = vadd.f32 %v4260, %v4356
      %v4358 = vpop.f32.mrb[0].mxu0
      %v4359 = vpop.f32.mrb[0].mxu0
      %v4360 = vadd.f32 %v4263, %v4359
      %v4361 = vpop.f32.mrb[0].mxu0
      %4362 = vdwg.mxu0
      %4363 = vmatprep.subr.bf16.mxu0 0
      %4364 = vmatpush1.bf16.msra.mxu0 %v3040
      %4365 = vmatprep.subr.bf16.mxu0 0
      %4366 = vmatpush1.bf16.msra.mxu0 %v3041
      %4367 = vmatprep.subr.bf16.mxu0 0
      %4368 = vmatpush1.bf16.msra.mxu0 %v3042
      %4369 = vmatprep.subr.bf16.mxu0 0
      %4370 = vmatpush1.bf16.msra.mxu0 %v3043
      %4371 = vmatprep.subr.bf16.mxu0 0
      %4372 = vmatpush1.bf16.msra.mxu0 %v3044
      %4373 = vmatprep.subr.bf16.mxu0 0
      %4374 = vmatpush1.bf16.msra.mxu0 %v3045
      %4375 = vmatprep.subr.bf16.mxu0 0
      %4376 = vmatpush1.bf16.msra.mxu0 %v3046
      %4377 = vmatprep.subr.bf16.mxu0 0
      %4378 = vmatpush1.bf16.msra.mxu0 %v3047
      %4379 = vmatprep.subr.bf16.mxu0 0
      %4380 = vmatpush1.bf16.msra.mxu0 %v3048
      %4381 = vmatprep.subr.bf16.mxu0 0
      %4382 = vmatpush1.bf16.msra.mxu0 %v3049
      %4383 = vmatprep.subr.bf16.mxu0 0
      %4384 = vmatpush1.bf16.msra.mxu0 %v3050
      %4385 = vmatprep.subr.bf16.mxu0 0
      %4386 = vmatpush1.bf16.msra.mxu0 %v3051
      %4387 = vmatprep.subr.bf16.mxu0 0
      %4388 = vmatpush1.bf16.msra.mxu0 %v3052
      %4389 = vmatprep.subr.bf16.mxu0 0
      %4390 = vmatpush1.bf16.msra.mxu0 %v3053
      %4391 = vmatprep.subr.bf16.mxu0 0
      %4392 = vmatpush1.bf16.msra.mxu0 %v3054
      %4393 = vmatprep.subr.bf16.mxu0 0
      %4394 = vmatpush1.bf16.msra.mxu0 %v3055
      %4395 = vmatprep.mubr.bf16.mxu0 %v1591
      %4396 = vmatmul.mubr.bf16.gmra.mrb[0].mxu0 %v1590
      %v4397 = vpop.f32.mrb[0].mxu0
      %v4398 = vadd.f32 %v4301, %v4397
      %v4399 = vpop.f32.mrb[0].mxu0
      %v4400 = vpop.f32.mrb[0].mxu0
      %v4401 = vadd.f32 %v4304, %v4400
      %v4402 = vpop.f32.mrb[0].mxu0
      %4403 = vmatprep.mubr.bf16.mxu0 %v1618
      %4404 = vmatmul.mubr.bf16.gmra.mrb[0].mxu0 %v1617
      %v4405 = vpop.f32.mrb[0].mxu0
      %v4406 = vadd.f32 %v4309, %v4405
      %v4407 = vpop.f32.mrb[0].mxu0
      %v4408 = vpop.f32.mrb[0].mxu0
      %v4409 = vadd.f32 %v4312, %v4408
      %v4410 = vpop.f32.mrb[0].mxu0
      %4411 = vmatprep.mubr.bf16.mxu0 %v1645
      %4412 = vmatmul.mubr.bf16.gmra.mrb[0].mxu0 %v1644
      %v4413 = vpop.f32.mrb[0].mxu0
      %v4414 = vadd.f32 %v4317, %v4413
      %v4415 = vpop.f32.mrb[0].mxu0
      %v4416 = vpop.f32.mrb[0].mxu0
      %v4417 = vadd.f32 %v4320, %v4416
      %v4418 = vpop.f32.mrb[0].mxu0
      %4419 = vmatprep.mubr.bf16.mxu0 %v1672
      %4420 = vmatmul.mubr.bf16.gmra.mrb[0].mxu0 %v1671
      %v4421 = vpop.f32.mrb[0].mxu0
      %v4422 = vadd.f32 %v4325, %v4421
      %v4423 = vpop.f32.mrb[0].mxu0
      %v4424 = vpop.f32.mrb[0].mxu0
      %v4425 = vadd.f32 %v4328, %v4424
      %v4426 = vpop.f32.mrb[0].mxu0
      %4427 = vmatprep.mubr.bf16.mxu0 %v1699
      %4428 = vmatmul.mubr.bf16.gmra.mrb[0].mxu0 %v1698
      %v4429 = vpop.f32.mrb[0].mxu0
      %v4430 = vadd.f32 %v4333, %v4429
      %v4431 = vpop.f32.mrb[0].mxu0
      %v4432 = vpop.f32.mrb[0].mxu0
      %v4433 = vadd.f32 %v4336, %v4432
      %v4434 = vpop.f32.mrb[0].mxu0
      %4435 = vmatprep.mubr.bf16.mxu0 %v1726
      %4436 = vmatmul.mubr.bf16.gmra.mrb[0].mxu0 %v1725
      %v4437 = vpop.f32.mrb[0].mxu0
      %v4438 = vadd.f32 %v4341, %v4437
      %v4439 = vpop.f32.mrb[0].mxu0
      %v4440 = vpop.f32.mrb[0].mxu0
      %v4441 = vadd.f32 %v4344, %v4440
      %v4442 = vpop.f32.mrb[0].mxu0
      %4443 = vmatprep.mubr.bf16.mxu0 %v1753
      %4444 = vmatmul.mubr.bf16.gmra.mrb[0].mxu0 %v1752
      %v4445 = vpop.f32.mrb[0].mxu0
      %v4446 = vadd.f32 %v4349, %v4445
      %v4447 = vpop.f32.mrb[0].mxu0
      %v4448 = vpop.f32.mrb[0].mxu0
      %v4449 = vadd.f32 %v4352, %v4448
      %v4450 = vpop.f32.mrb[0].mxu0
      %4451 = vmatprep.mubr.bf16.mxu0 %v1780
      %4452 = vmatmul.mubr.bf16.gmra.mrb[0].mxu0 %v1779
      %v4453 = vpop.f32.mrb[0].mxu0
      %v4454 = vadd.f32 %v4357, %v4453
      %v4455 = vpop.f32.mrb[0].mxu0
      %v4456 = vpop.f32.mrb[0].mxu0
      %v4457 = vadd.f32 %v4360, %v4456
      %v4458 = vpop.f32.mrb[0].mxu0
      %4459 = vdwg.mxu0
      %4460 = vmatprep.subr.bf16.mxu0 0
      %4461 = vmatpush1.bf16.msra.mxu0 %v3056
      %4462 = vmatprep.subr.bf16.mxu0 0
      %4463 = vmatpush1.bf16.msra.mxu0 %v3057
      %4464 = vmatprep.subr.bf16.mxu0 0
      %4465 = vmatpush1.bf16.msra.mxu0 %v3058
      %4466 = vmatprep.subr.bf16.mxu0 0
      %4467 = vmatpush1.bf16.msra.mxu0 %v3059
      %4468 = vmatprep.subr.bf16.mxu0 0
      %4469 = vmatpush1.bf16.msra.mxu0 %v3060
      %4470 = vmatprep.subr.bf16.mxu0 0
      %4471 = vmatpush1.bf16.msra.mxu0 %v3061
      %4472 = vmatprep.subr.bf16.mxu0 0
      %4473 = vmatpush1.bf16.msra.mxu0 %v3062
      %4474 = vmatprep.subr.bf16.mxu0 0
      %4475 = vmatpush1.bf16.msra.mxu0 %v3063
      %4476 = vmatprep.subr.bf16.mxu0 0
      %4477 = vmatpush1.bf16.msra.mxu0 %v3064
      %4478 = vmatprep.subr.bf16.mxu0 0
      %4479 = vmatpush1.bf16.msra.mxu0 %v3065
      %4480 = vmatprep.subr.bf16.mxu0 0
      %4481 = vmatpush1.bf16.msra.mxu0 %v3066
      %4482 = vmatprep.subr.bf16.mxu0 0
      %4483 = vmatpush1.bf16.msra.mxu0 %v3067
      %4484 = vmatprep.subr.bf16.mxu0 0
      %4485 = vmatpush1.bf16.msra.mxu0 %v3068
      %4486 = vmatprep.subr.bf16.mxu0 0
      %4487 = vmatpush1.bf16.msra.mxu0 %v3069
      %4488 = vmatprep.subr.bf16.mxu0 0
      %4489 = vmatpush1.bf16.msra.mxu0 %v3070
      %4490 = vmatprep.subr.bf16.mxu0 0
      %4491 = vmatpush1.bf16.msra.mxu0 %v3071
      %4492 = vmatprep.mubr.bf16.mxu0 %v1593
      %4493 = vmatmul.mubr.bf16.gmra.mrb[0].mxu0 %v1592
      %v4494 = vpop.f32.mrb[0].mxu0
      %v4495 = vadd.f32 %v4398, %v4494
      %v4496 = vpop.f32.mrb[0].mxu0
      %v4497 = vpop.f32.mrb[0].mxu0
      %v4498 = vadd.f32 %v4401, %v4497
      %v4499 = vpop.f32.mrb[0].mxu0
      %4500 = vmatprep.mubr.bf16.mxu0 %v1620
      %4501 = vmatmul.mubr.bf16.gmra.mrb[0].mxu0 %v1619
      %v4502 = vpop.f32.mrb[0].mxu0
      %v4503 = vadd.f32 %v4406, %v4502
      %v4504 = vpop.f32.mrb[0].mxu0
      %v4505 = vpop.f32.mrb[0].mxu0
      %v4506 = vadd.f32 %v4409, %v4505
      %v4507 = vpop.f32.mrb[0].mxu0
      %4508 = vmatprep.mubr.bf16.mxu0 %v1647
      %4509 = vmatmul.mubr.bf16.gmra.mrb[0].mxu0 %v1646
      %v4510 = vpop.f32.mrb[0].mxu0
      %v4511 = vadd.f32 %v4414, %v4510
      %v4512 = vpop.f32.mrb[0].mxu0
      %v4513 = vpop.f32.mrb[0].mxu0
      %v4514 = vadd.f32 %v4417, %v4513
      %v4515 = vpop.f32.mrb[0].mxu0
      %4516 = vmatprep.mubr.bf16.mxu0 %v1674
      %4517 = vmatmul.mubr.bf16.gmra.mrb[0].mxu0 %v1673
      %v4518 = vpop.f32.mrb[0].mxu0
      %v4519 = vadd.f32 %v4422, %v4518
      %v4520 = vpop.f32.mrb[0].mxu0
      %v4521 = vpop.f32.mrb[0].mxu0
      %v4522 = vadd.f32 %v4425, %v4521
      %v4523 = vpop.f32.mrb[0].mxu0
      %4524 = vmatprep.mubr.bf16.mxu0 %v1701
      %4525 = vmatmul.mubr.bf16.gmra.mrb[0].mxu0 %v1700
      %v4526 = vpop.f32.mrb[0].mxu0
      %v4527 = vadd.f32 %v4430, %v4526
      %v4528 = vpop.f32.mrb[0].mxu0
      %v4529 = vpop.f32.mrb[0].mxu0
      %v4530 = vadd.f32 %v4433, %v4529
      %v4531 = vpop.f32.mrb[0].mxu0
      %4532 = vmatprep.mubr.bf16.mxu0 %v1728
      %4533 = vmatmul.mubr.bf16.gmra.mrb[0].mxu0 %v1727
      %v4534 = vpop.f32.mrb[0].mxu0
      %v4535 = vadd.f32 %v4438, %v4534
      %v4536 = vpop.f32.mrb[0].mxu0
      %v4537 = vpop.f32.mrb[0].mxu0
      %v4538 = vadd.f32 %v4441, %v4537
      %v4539 = vpop.f32.mrb[0].mxu0
      %4540 = vmatprep.mubr.bf16.mxu0 %v1755
      %4541 = vmatmul.mubr.bf16.gmra.mrb[0].mxu0 %v1754
      %v4542 = vpop.f32.mrb[0].mxu0
      %v4543 = vadd.f32 %v4446, %v4542
      %v4544 = vpop.f32.mrb[0].mxu0
      %v4545 = vpop.f32.mrb[0].mxu0
      %v4546 = vadd.f32 %v4449, %v4545
      %v4547 = vpop.f32.mrb[0].mxu0
      %4548 = vmatprep.mubr.bf16.mxu0 %v1782
      %4549 = vmatmul.mubr.bf16.gmra.mrb[0].mxu0 %v1781
      %v4550 = vpop.f32.mrb[0].mxu0
      %v4551 = vadd.f32 %v4454, %v4550
      %v4552 = vpop.f32.mrb[0].mxu0
      %v4553 = vpop.f32.mrb[0].mxu0
      %v4554 = vadd.f32 %v4457, %v4553
      %v4555 = vpop.f32.mrb[0].mxu0
      %4556 = vdwg.mxu0
      %4557 = vmatprep.subr.bf16.mxu0 0
      %4558 = vmatpush1.bf16.msra.mxu0 %v3072
      %4559 = vmatprep.subr.bf16.mxu0 0
      %4560 = vmatpush1.bf16.msra.mxu0 %v3073
      %4561 = vmatprep.subr.bf16.mxu0 0
      %4562 = vmatpush1.bf16.msra.mxu0 %v3074
      %4563 = vmatprep.subr.bf16.mxu0 0
      %4564 = vmatpush1.bf16.msra.mxu0 %v3075
      %4565 = vmatprep.subr.bf16.mxu0 0
      %4566 = vmatpush1.bf16.msra.mxu0 %v3076
      %4567 = vmatprep.subr.bf16.mxu0 0
      %4568 = vmatpush1.bf16.msra.mxu0 %v3077
      %4569 = vmatprep.subr.bf16.mxu0 0
      %4570 = vmatpush1.bf16.msra.mxu0 %v3078
      %4571 = vmatprep.subr.bf16.mxu0 0
      %4572 = vmatpush1.bf16.msra.mxu0 %v3079
      %4573 = vmatprep.subr.bf16.mxu0 0
      %4574 = vmatpush1.bf16.msra.mxu0 0
      %4575 = vmatprep.subr.bf16.mxu0 0
      %4576 = vmatpush1.bf16.msra.mxu0 0
      %4577 = vmatprep.subr.bf16.mxu0 0
      %4578 = vmatpush1.bf16.msra.mxu0 0
      %4579 = vmatprep.subr.bf16.mxu0 0
      %4580 = vmatpush1.bf16.msra.mxu0 0
      %4581 = vmatprep.subr.bf16.mxu0 0
      %4582 = vmatpush1.bf16.msra.mxu0 0
      %4583 = vmatprep.subr.bf16.mxu0 0
      %4584 = vmatpush1.bf16.msra.mxu0 0
      %4585 = vmatprep.subr.bf16.mxu0 0
      %4586 = vmatpush1.bf16.msra.mxu0 0
      %4587 = vmatprep.subr.bf16.mxu0 0
      %4588 = vmatpush1.bf16.msra.mxu0 0
      %4589 = vmatprep.mubr.bf16.mxu0 0
      %4590 = vmatmul.mubr.bf16.gmra.mrb[0].mxu0 %v1594
      %v4591 = vpop.f32.mrb[0].mxu0
      %v4592 = vadd.f32 %v4495, %v4591
      %v4593 = vpop.f32.mrb[0].mxu0
      %v4594 = vpop.f32.mrb[0].mxu0
      %v4595 = vadd.f32 %v4498, %v4594
      %v4596 = vpop.f32.mrb[0].mxu0
      %4597 = vmatprep.mubr.bf16.mxu0 0
      %4598 = vmatmul.mubr.bf16.gmra.mrb[0].mxu0 %v1621
      %v4599 = vpop.f32.mrb[0].mxu0
      %v4600 = vadd.f32 %v4503, %v4599
      %v4601 = vpop.f32.mrb[0].mxu0
      %v4602 = vpop.f32.mrb[0].mxu0
      %v4603 = vadd.f32 %v4506, %v4602
      %v4604 = vpop.f32.mrb[0].mxu0
      %4605 = vmatprep.mubr.bf16.mxu0 0
      %4606 = vmatmul.mubr.bf16.gmra.mrb[0].mxu0 %v1648
      %v4607 = vpop.f32.mrb[0].mxu0
      %v4608 = vadd.f32 %v4511, %v4607
      %v4609 = vpop.f32.mrb[0].mxu0
      %v4610 = vpop.f32.mrb[0].mxu0
      %v4611 = vadd.f32 %v4514, %v4610
      %v4612 = vpop.f32.mrb[0].mxu0
      %4613 = vmatprep.mubr.bf16.mxu0 0
      %4614 = vmatmul.mubr.bf16.gmra.mrb[0].mxu0 %v1675
      %v4615 = vpop.f32.mrb[0].mxu0
      %v4616 = vadd.f32 %v4519, %v4615
      %v4617 = vpop.f32.mrb[0].mxu0
      %v4618 = vpop.f32.mrb[0].mxu0
      %v4619 = vadd.f32 %v4522, %v4618
      %v4620 = vpop.f32.mrb[0].mxu0
      %4621 = vmatprep.mubr.bf16.mxu0 0
      %4622 = vmatmul.mubr.bf16.gmra.mrb[0].mxu0 %v1702
      %v4623 = vpop.f32.mrb[0].mxu0
      %v4624 = vadd.f32 %v4527, %v4623
      %v4625 = vpop.f32.mrb[0].mxu0
      %v4626 = vpop.f32.mrb[0].mxu0
      %v4627 = vadd.f32 %v4530, %v4626
      %v4628 = vpop.f32.mrb[0].mxu0
      %4629 = vmatprep.mubr.bf16.mxu0 0
      %4630 = vmatmul.mubr.bf16.gmra.mrb[0].mxu0 %v1729
      %v4631 = vpop.f32.mrb[0].mxu0
      %v4632 = vadd.f32 %v4535, %v4631
      %v4633 = vpop.f32.mrb[0].mxu0
      %v4634 = vpop.f32.mrb[0].mxu0
      %v4635 = vadd.f32 %v4538, %v4634
      %v4636 = vpop.f32.mrb[0].mxu0
      %4637 = vmatprep.mubr.bf16.mxu0 0
      %4638 = vmatmul.mubr.bf16.gmra.mrb[0].mxu0 %v1756
      %v4639 = vpop.f32.mrb[0].mxu0
      %v4640 = vadd.f32 %v4543, %v4639
      %v4641 = vpop.f32.mrb[0].mxu0
      %v4642 = vpop.f32.mrb[0].mxu0
      %v4643 = vadd.f32 %v4546, %v4642
      %v4644 = vpop.f32.mrb[0].mxu0
      %4645 = vmatprep.mubr.bf16.mxu0 0
      %4646 = vmatmul.mubr.bf16.gmra.mrb[0].mxu0 %v1783
      %v4647 = vpop.f32.mrb[0].mxu0
      %v4648 = vadd.f32 %v4551, %v4647
      %v4649 = vpop.f32.mrb[0].mxu0
      %v4650 = vpop.f32.mrb[0].mxu0
      %v4651 = vadd.f32 %v4554, %v4650
      %v4652 = vpop.f32.mrb[0].mxu0
      %4653 = vdwg.mxu0
      %v4654 = vpack.c.bf16 %v4595, %v4592
      %v4655 = vpack.c.bf16 %v4603, %v4600
      %v4656 = vpack.c.bf16 %v4611, %v4608
      %v4657 = vpack.c.bf16 %v4619, %v4616
      %v4658 = vpack.c.bf16 %v4627, %v4624
      %v4659 = vpack.c.bf16 %v4635, %v4632
      %v4660 = vpack.c.bf16 %v4643, %v4640
      %v4661 = vpack.c.bf16 %v4651, %v4648
      %v4670 = vunpack.c.l.b16 %v4654
      %v4671 = vunpack.c.h.b16 %v4654
      %v4672 = vunpack.c.l.b16 %v4655
      %v4673 = vunpack.c.h.b16 %v4655
      %v4674 = vunpack.c.l.b16 %v4656
      %v4675 = vunpack.c.h.b16 %v4656
      %v4676 = vunpack.c.l.b16 %v4657
      %v4677 = vunpack.c.h.b16 %v4657
      %v4678 = vunpack.c.l.b16 %v4658
      %v4679 = vunpack.c.h.b16 %v4658
      %v4680 = vunpack.c.l.b16 %v4659
      %v4681 = vunpack.c.h.b16 %v4659
      %v4682 = vunpack.c.l.b16 %v4660
      %v4683 = vunpack.c.h.b16 %v4660
      %v4684 = vunpack.c.l.b16 %v4661
      %v4685 = vunpack.c.h.b16 %v4661
      %v4686 = vpack.c.b16 %v4670, %v4670
      %v4687 = vpack.c.b16 %v4671, %v4671
      %v4688 = vpack.c.b16 %v4672, %v4672
      %v4689 = vpack.c.b16 %v4673, %v4673
      %v4690 = vpack.c.b16 %v4674, %v4674
      %v4691 = vpack.c.b16 %v4675, %v4675
      %v4692 = vpack.c.b16 %v4676, %v4676
      %v4693 = vpack.c.b16 %v4677, %v4677
      %v4694 = vpack.c.b16 %v4678, %v4678
      %v4695 = vpack.c.b16 %v4679, %v4679
      %v4696 = vpack.c.b16 %v4680, %v4680
      %v4697 = vpack.c.b16 %v4681, %v4681
      %v4698 = vpack.c.b16 %v4682, %v4682
      %v4699 = vpack.c.b16 %v4683, %v4683
      %v4700 = vpack.c.b16 %v4684, %v4684
      %v4701 = vpack.c.b16 %v4685, %v4685
      %4718 = vst [vmem:[%s240] sm:$0xf] %v4686
      %4719 = vst [vmem:[%s240 + $0x4] sm:$0xf] %v4687
      %4720 = vst [vmem:[%s240 + $0x8] sm:$0xf] %v4688
      %4721 = vst [vmem:[%s240 + $0xc] sm:$0xf] %v4689
      %4722 = vst [vmem:[%s240 + $0x10] sm:$0xf] %v4690
      %4723 = vst [vmem:[%s240 + $0x14] sm:$0xf] %v4691
      %4724 = vst [vmem:[%s240 + $0x18] sm:$0xf] %v4692
      %4725 = vst [vmem:[%s240 + $0x1c] sm:$0xf] %v4693
      %4726 = vst [vmem:[%s240 + $0x20] sm:$0xf] %v4694
      %4727 = vst [vmem:[%s240 + $0x24] sm:$0xf] %v4695
      %4728 = vst [vmem:[%s240 + $0x28] sm:$0xf] %v4696
      %4729 = vst [vmem:[%s240 + $0x2c] sm:$0xf] %v4697
      %4730 = vst [vmem:[%s240 + $0x30] sm:$0xf] %v4698
      %4731 = vst [vmem:[%s240 + $0x34] sm:$0xf] %v4699
      %4732 = vst [vmem:[%s240 + $0x38] sm:$0xf] %v4700
      %4733 = vst [vmem:[%s240 + $0x3c] sm:$0xf] %v4701
      %v4734 = vadd.f32 %v4592, %v4595
      %v4735 = vadd.f32 %v4734, %v4600
      %v4736 = vadd.f32 %v4735, %v4603
      %v4737 = vadd.f32 %v4736, %v4608
      %v4738 = vadd.f32 %v4737, %v4611
      %v4739 = vadd.f32 %v4738, %v4616
      %v4740 = vadd.f32 %v4739, %v4619
      %v4741 = vadd.f32 %v4740, %v4624
      %v4742 = vadd.f32 %v4741, %v4627
      %v4743 = vadd.f32 %v4742, %v4632
      %v4744 = vadd.f32 %v4743, %v4635
      %v4745 = vadd.f32 %v4744, %v4640
      %v4746 = vadd.f32 %v4745, %v4643
      %v4747 = vadd.f32 %v4746, %v4648
      %v4748 = vadd.f32 %v4747, %v4651
      %v4749 = vrot.slane %v4748, 4
      %v4750 = vadd.f32 %v4748, %v4749
      %v4751 = vrot.slane %v4750, 2
      %v4752 = vadd.f32 %v4750, %v4751
      %v4753 = vrot.slane %v4752, 1
      %v4754 = vadd.f32 %v4752, %v4753
      %4755 = vst [vmem:[%s244] sm:$0x1] %v4754
      %v4756 = vmul.f32 %v4592, %v4592
      %v4757 = vmul.f32 %v4595, %v4595
      %v4758 = vmul.f32 %v4600, %v4600
      %v4759 = vmul.f32 %v4603, %v4603
      %v4760 = vmul.f32 %v4608, %v4608
      %v4761 = vmul.f32 %v4611, %v4611
      %v4762 = vmul.f32 %v4616, %v4616
      %v4763 = vmul.f32 %v4619, %v4619
      %v4764 = vmul.f32 %v4624, %v4624
      %v4765 = vmul.f32 %v4627, %v4627
      %v4766 = vmul.f32 %v4632, %v4632
      %v4767 = vmul.f32 %v4635, %v4635
      %v4768 = vmul.f32 %v4640, %v4640
      %v4769 = vmul.f32 %v4643, %v4643
      %v4770 = vmul.f32 %v4648, %v4648
      %v4771 = vmul.f32 %v4651, %v4651
      %v4772 = vadd.f32 %v4756, %v4757
      %v4773 = vadd.f32 %v4772, %v4758
      %v4774 = vadd.f32 %v4773, %v4759
      %v4775 = vadd.f32 %v4774, %v4760
      %v4776 = vadd.f32 %v4775, %v4761
      %v4777 = vadd.f32 %v4776, %v4762
      %v4778 = vadd.f32 %v4777, %v4763
      %v4779 = vadd.f32 %v4778, %v4764
      %v4780 = vadd.f32 %v4779, %v4765
      %v4781 = vadd.f32 %v4780, %v4766
      %v4782 = vadd.f32 %v4781, %v4767
      %v4783 = vadd.f32 %v4782, %v4768
      %v4784 = vadd.f32 %v4783, %v4769
      %v4785 = vadd.f32 %v4784, %v4770
      %v4786 = vadd.f32 %v4785, %v4771
      %v4787 = vrot.slane %v4786, 4
      %v4788 = vadd.f32 %v4786, %v4787
      %v4789 = vrot.slane %v4788, 2
      %v4790 = vadd.f32 %v4788, %v4789
      %v4791 = vrot.slane %v4790, 1
      %v4792 = vadd.f32 %v4790, %v4791
      %4793 = vst [vmem:[%s247] sm:$0x1] %v4792
      %s4794 = smul.u32 16, %s17
      %p4795 = scmp.lt.s32.totalorder %s4794, 127
      %s4796 = scalar_select %p4795, %s4794, 127
      %s4797 = smul.addr %s4796, 4
      %s4798 = scalar_lea.vmem %s3, %s4797
      %p4799 = scmp.lt.s32.totalorder %s17, 7
      %s4800 = scalar_select %p4799, %s17, 7
      %s4801 = scalar_lea.vmem %s4, %s4800
      %p4802 = scmp.lt.s32.totalorder %s17, 7
      %s4803 = scalar_select %p4802, %s17, 7
      %s4804 = scalar_lea.vmem %s5, %s4803
      // Predicated region
      $region33: #{conv_block_3d_forward.6} parent=31 // pred_check
        %p4805 = pneg %p103
      $region34: #{conv_block_3d_forward.6} parent=31 // pred_check_branch
        %4807 = sbr.rel (%p4805) target = $region36
      $region35: #{conv_block_3d_forward.6} parent=31 // pred_region
        %s4808 = smul.u32 16, %s17
      $region36: #{conv_block_3d_forward.6} parent=31 // pred_fallthru
        _
      // Predicated region
      $region37: #{conv_block_3d_forward.6} parent=31 // pred_check
        %p4809 = pneg %p129
      $region38: #{conv_block_3d_forward.6} parent=31 // pred_check_branch
        %4811 = sbr.rel (%p4809) target = $region40
      $region39: #{conv_block_3d_forward.6} parent=31 // pred_region
        _
      $region40: #{conv_block_3d_forward.6} parent=31 // pred_fallthru
        _
      // Predicated region
      $region41: #{conv_block_3d_forward.6} parent=31 // pred_check
        %p4812 = pneg %p155
      $region42: #{conv_block_3d_forward.6} parent=31 // pred_check_branch
        %4814 = sbr.rel (%p4812) target = $region44
      $region43: #{conv_block_3d_forward.6} parent=31 // pred_region
        _
      $region44: #{conv_block_3d_forward.6} parent=31 // pred_fallthru
        _
    $region32: #{conv_block_3d_forward.6} parent=5 // pred_fallthru
      _
    %p4815 = scmp.le.s32.totalorder 2, %s12
    // Predicated region
    $region45: #{conv_block_3d_forward.6} parent=5 // pred_check
      %p4816 = pneg %p4815
    $region46: #{conv_block_3d_forward.6} parent=5 // pred_check_branch
      %4818 = sbr.rel (%p4816) target = $region48
    $region47: #{conv_block_3d_forward.6} parent=5 // pred_region
      %s4819 = ssub.s32 %s12, 2
      // Predicated region
      $region49: #{conv_block_3d_forward.6} parent=47 // pred_check
        %p4820 = pneg %p109
      $region50: #{conv_block_3d_forward.6} parent=47 // pred_check_branch
        %4822 = sbr.rel (%p4820) target = $region52
      $region51: #{conv_block_3d_forward.6} parent=47 // pred_region
        %s4823 = smul.u32 16, %s18
        %p4824 = scmp.lt.s32.totalorder %s4823, 127
        %s4825 = scalar_select %p4824, %s4823, 127
        %s4826 = smul.addr %s4825, 4
        %s4827 = scalar_lea.vmem %s3, %s4826
      $region52: #{conv_block_3d_forward.6} parent=47 // pred_fallthru
        _
      // Predicated region
      $region53: #{conv_block_3d_forward.6} parent=47 // pred_check
        %p4828 = pneg %p135
      $region54: #{conv_block_3d_forward.6} parent=47 // pred_check_branch
        %4830 = sbr.rel (%p4828) target = $region56
      $region55: #{conv_block_3d_forward.6} parent=47 // pred_region
        %p4831 = scmp.lt.s32.totalorder %s18, 7
        %s4832 = scalar_select %p4831, %s18, 7
        %s4833 = scalar_lea.vmem %s4, %s4832
      $region56: #{conv_block_3d_forward.6} parent=47 // pred_fallthru
        _
      // Predicated region
      $region57: #{conv_block_3d_forward.6} parent=47 // pred_check
        %p4834 = pneg %p161
      $region58: #{conv_block_3d_forward.6} parent=47 // pred_check_branch
        %4836 = sbr.rel (%p4834) target = $region60
      $region59: #{conv_block_3d_forward.6} parent=47 // pred_region
        %p4837 = scmp.lt.s32.totalorder %s18, 7
        %s4838 = scalar_select %p4837, %s18, 7
        %s4839 = scalar_lea.vmem %s5, %s4838
      $region60: #{conv_block_3d_forward.6} parent=47 // pred_fallthru
        _
    $region48: #{conv_block_3d_forward.6} parent=5 // pred_fallthru
      _
  $region6: #{conv_block_3d_forward.6} parent=0 // loop_footer
    %s16 = sadd.s32 1, %s12
  $region7: #{conv_block_3d_forward.6} parent=0 // loop_footer_branch
    %11 = sbr.rel target = $region3
  $region8: #{conv_block_3d_forward.6} parent=0 // loop_exit
    _

</llo_original>
